<compile_context>
chip_gen: v6e
topology: v6e:2x2x1
jax: 0.10.0
libtpu: 0.0.40
codegen_flags: <defaults>
</compile_context>

<pallas_src>
import functools

import jax
import jax.numpy as jnp
from jax.experimental import pallas as pl
from jax.experimental.pallas import tpu as pltpu

BN_EPS = 1e-5  # PyTorch BatchNorm1d/2d default eps


def _fold_bn_into_matmul(w_oi, bias_o, gamma, beta, mean, var, eps=BN_EPS):
  """Fold eval-mode BN into a preceding (out,in) weight / (out,) bias."""
  scale = gamma / jnp.sqrt(var + eps)
  w_folded = w_oi * scale[:, None]
  b_folded = (bias_o - mean) * scale + beta
  return w_folded, b_folded


def _pick_spatial_tile(hw, max_tile=128):
  """Largest multiple-of-16 divisor of hw that is <= max_tile (bf16 sublane
  packing friendly); falls back to hw (full-extent block) if none exists."""
  best = None
  t = 16
  while t <= min(hw, max_tile):
    if hw % t == 0:
      best = t
    t += 16
  return best if best is not None else hw


def _fused_head_classifier_kernel(
    x_ref,          # (b_tile, t_hw, C)  bf16 pre-head feature tile (chan-last)
    wh_ref,         # (C, F)             bf16 conv_head weight, BN2d folded
    bh_ref,         # (1, F)             f32  conv_head bias,   BN2d folded
    w1_hbm,         # (F, 512)    bf16, HBM (pl.ANY)  Linear1 weight, BN1d folded
    b1_hbm,         # (1, 512)    f32,  HBM
    w2_hbm,         # (512, 256)  bf16, HBM           Linear2 weight, BN1d folded
    b2_hbm,         # (1, 256)    f32,  HBM
    w3_hbm,         # (256, OUT_PAD) bf16, HBM        Linear3 weight, lane-padded
    b3_hbm,         # (1, OUT_PAD) f32, HBM
    out_ref,        # (b_tile, OUT_PAD) f32
    acc_ref,        # (b_tile, F) f32 scratch: running spatial sum
    w1_v, b1_v, w2_v, b2_v, w3_v, b3_v,   # VMEM scratch for classifier params
    dma_sem,        # DMA semaphores, shape (6,)
    *, inv_hw):
  s = pl.program_id(1)          # spatial-reduction step (last grid axis)

  cls_hbm = (w1_hbm, b1_hbm, w2_hbm, b2_hbm, w3_hbm, b3_hbm)
  cls_vmem = (w1_v, b1_v, w2_v, b2_v, w3_v, b3_v)

  @pl.when(s == 0)
  def _prologue():
    acc_ref[...] = jnp.zeros_like(acc_ref)
    # Kick off the classifier-weight DMAs; they complete under the conv steps.
    for i, (src, dst) in enumerate(zip(cls_hbm, cls_vmem)):
      pltpu.make_async_copy(src, dst, dma_sem.at[i]).start()

  # 1x1 conv_head as ONE 2-D bf16 MXU matmul (BatchNorm2d pre-folded).
  bt, thw, c = x_ref.shape
  x2d = x_ref[...].reshape(bt * thw, c)                  # leading-dim reshape
  h = jnp.dot(x2d, wh_ref[...], preferred_element_type=jnp.float32)
  h = h + bh_ref[...]
  # SiLU = x * sigmoid(x); approx reciprocal + exp land on the EUP slot.
  h = h * pl.reciprocal(1.0 + jnp.exp(-h), approx=True)
  # Fused global-average-pool: accumulate the spatial sum across grid steps.
  acc_ref[...] += jnp.sum(h.reshape(bt, thw, -1), axis=1)

  @pl.when(s == pl.num_programs(1) - 1)
  def _epilogue():
    for i, (src, dst) in enumerate(zip(cls_hbm, cls_vmem)):
      pltpu.make_async_copy(src, dst, dma_sem.at[i]).wait()
    pooled = (acc_ref[...] * inv_hw).astype(w1_v.dtype)  # bf16 for the MXU
    # Classifier (Dropout == identity in eval mode; BN1d folded into W/b).
    a1 = jnp.dot(pooled, w1_v[...], preferred_element_type=jnp.float32)
    a1 = jnp.maximum(a1 + b1_v[...], 0.0)
    a2 = jnp.dot(a1.astype(w2_v.dtype), w2_v[...],
                 preferred_element_type=jnp.float32)
    a2 = jnp.maximum(a2 + b2_v[...], 0.0)
    logits = jnp.dot(a2.astype(w3_v.dtype), w3_v[...],
                     preferred_element_type=jnp.float32)
    out_ref[...] = (logits + b3_hbm.dtype.type(0) + b3_v[...]).astype(out_ref.dtype)


def plant_disease_forward(x_feat, params, num_classes):
  """x_feat: (B, C, H, W) pre-head feature map (NCHW). Returns (B, num_classes)."""
  (wh, bh, w1, b1, w2, b2, w3, b3) = params
  B, C, H, W = x_feat.shape
  HW = H * W
  F = wh.shape[1]
  H1 = w1.shape[1]
  H2 = w2.shape[1]
  OUT_PAD = w3.shape[1]

  # NCHW -> (B, HW, C) channels-last so the 1x1 conv is a lane-aligned matmul.
  # TODO(synk): a channels-last backbone output would avoid this HBM transpose.
  x_cl = jnp.transpose(x_feat, (0, 2, 3, 1)).reshape(B, HW, C).astype(jnp.bfloat16)

  # Batch tiling: pad to a sublane multiple of 8; tiles of <=64 rows so a
  # leading "parallel" axis can feed both v7x TensorCores at larger batches.
  b_tile = 64 if B > 64 else max(8, -(-B // 8) * 8)
  b_pad = -(-B // b_tile) * b_tile
  if b_pad != B:
    x_cl = jnp.pad(x_cl, ((0, b_pad - B), (0, 0), (0, 0)))

  # Spatial reduction tiling (multi-step -> DMA/compute overlap).
  t_hw = _pick_spatial_tile(HW)
  grid = (b_pad // b_tile, HW // t_hw)

  bh2 = bh.reshape(1, F).astype(jnp.float32)
  b1r = b1.reshape(1, H1).astype(jnp.float32)
  b2r = b2.reshape(1, H2).astype(jnp.float32)
  b3r = b3.reshape(1, OUT_PAD).astype(jnp.float32)

  grid_spec = pltpu.PrefetchScalarGridSpec(
      num_scalar_prefetch=0,
      grid=grid,
      in_specs=[
          pl.BlockSpec((b_tile, t_hw, C), lambda b, s: (b, s, 0)),
          # conv_head params: constant block index -> VMEM-resident.
          pl.BlockSpec(wh.shape, lambda b, s: (0, 0)),
          pl.BlockSpec(bh2.shape, lambda b, s: (0, 0)),
          # Classifier params stay in HBM; fetched manually (overlapped DMA).
          pl.BlockSpec(memory_space=pl.ANY),   # w1
          pl.BlockSpec(memory_space=pl.ANY),   # b1
          pl.BlockSpec(memory_space=pl.ANY),   # w2
          pl.BlockSpec(memory_space=pl.ANY),   # b2
          pl.BlockSpec(memory_space=pl.ANY),   # w3
          pl.BlockSpec(memory_space=pl.ANY),   # b3
      ],
      out_specs=pl.BlockSpec((b_tile, OUT_PAD), lambda b, s: (b, 0)),
      scratch_shapes=[
          pltpu.VMEM((b_tile, F), jnp.float32),      # pooled-sum accumulator
          pltpu.VMEM(w1.shape, w1.dtype),
          pltpu.VMEM(b1r.shape, b1r.dtype),
          pltpu.VMEM(w2.shape, w2.dtype),
          pltpu.VMEM(b2r.shape, b2r.dtype),
          pltpu.VMEM(w3.shape, w3.dtype),
          pltpu.VMEM(b3r.shape, b3r.dtype),
          pltpu.SemaphoreType.DMA((6,)),
      ],
  )

  out = pl.pallas_call(
      functools.partial(_fused_head_classifier_kernel, inv_hw=1.0 / HW),
      out_shape=jax.ShapeDtypeStruct((b_pad, OUT_PAD), jnp.float32),
      grid_spec=grid_spec,
      compiler_params=pltpu.CompilerParams(
          dimension_semantics=("parallel", "arbitrary"),
          vmem_limit_bytes=48 * 1024 * 1024),
  )(x_cl, wh, bh2, w1, b1r, w2, b2r, w3, b3r)

  return out[:B, :num_classes]


if __name__ == "__main__":
  key = jax.random.PRNGKey(0)
  # Small stand-in shapes.  Real efficientnet_b4 tail: C=448, F=1792, H=W=12.
  B, C, H, W = 2, 64, 16, 16
  F_FEAT = 128          # TODO(synk): 1792 in the real backbone
  H1, H2 = 512, 256
  NUM_CLASSES = 39
  OUT_PAD = 128         # lane-dense logits, sliced back to 39

  ks = iter(jax.random.split(key, 32))

  def nrm(shape, scale=1.0):
    return jax.random.normal(next(ks), shape, jnp.float32) * scale

  x = nrm((B, C, H, W))

  # Backbone tail: 1x1 conv_head (no bias, timm convention) + BatchNorm2d.
  w_head = nrm((F_FEAT, C), 0.05)
  g_h, be_h = 1.0 + 0.1 * nrm((F_FEAT,)), 0.1 * nrm((F_FEAT,))
  mu_h, var_h = 0.1 * nrm((F_FEAT,)), 1.0 + 0.1 * jnp.abs(nrm((F_FEAT,)))

  # Classifier: Linear(F,512)+BN1d, Linear(512,256)+BN1d, Linear(256,39).
  w1, bb1 = nrm((H1, F_FEAT), 0.05), 0.05 * nrm((H1,))
  g1, be1 = 1.0 + 0.1 * nrm((H1,)), 0.1 * nrm((H1,))
  mu1, var1 = 0.1 * nrm((H1,)), 1.0 + 0.1 * jnp.abs(nrm((H1,)))

  w2, bb2 = nrm((H2, H1), 0.05), 0.05 * nrm((H2,))
  g2, be2 = 1.0 + 0.1 * nrm((H2,)), 0.1 * nrm((H2,))
  mu2, var2 = 0.1 * nrm((H2,)), 1.0 + 0.1 * jnp.abs(nrm((H2,)))

  w3, bb3 = nrm((NUM_CLASSES, H2), 0.05), 0.05 * nrm((NUM_CLASSES,))

  # ---- Fold eval-mode BN into matmul weights; transpose to (in, out). -----
  # Cast to bf16 AFTER folding; biases stay f32; matmuls accumulate in f32.
  wh_f, bh_f = _fold_bn_into_matmul(
      w_head, jnp.zeros((F_FEAT,), jnp.float32), g_h, be_h, mu_h, var_h)
  w1_f, b1_f = _fold_bn_into_matmul(w1, bb1, g1, be1, mu1, var1)
  w2_f, b2_f = _fold_bn_into_matmul(w2, bb2, g2, be2, mu2, var2)

  wh_t = wh_f.T.astype(jnp.bfloat16)                       # (C, F)
  w1_t = w1_f.T.astype(jnp.bfloat16)                       # (F, 512)
  w2_t = w2_f.T.astype(jnp.bfloat16)                       # (512, 256)
  w3_t = (jnp.zeros((H2, OUT_PAD), jnp.float32)
          .at[:, :NUM_CLASSES].set(w3.T)).astype(jnp.bfloat16)
  b3_p = jnp.zeros((OUT_PAD,), jnp.float32).at[:NUM_CLASSES].set(bb3)

  params = (wh_t, bh_f, w1_t, b1_f, w2_t, b2_f, w3_t, b3_p)

  out = plant_disease_forward(x, params, NUM_CLASSES)
  out = jax.block_until_ready(out)

  # ---- Pure-JAX reference (unfused, mirrors the PyTorch eval forward). ----
  def bn(v, g, b, m, var):
    return (v - m) / jnp.sqrt(var + BN_EPS) * g + b

  y = jnp.einsum('bchw,fc->bfhw', x, w_head)
  y = bn(y, g_h[None, :, None, None], be_h[None, :, None, None],
         mu_h[None, :, None, None], var_h[None, :, None, None])
  y = y * (1.0 / (1.0 + jnp.exp(-y)))                 # SiLU
  feat = jnp.mean(y, axis=(2, 3))                     # global average pool
  a1 = jnp.maximum(bn(feat @ w1.T + bb1, g1, be1, mu1, var1), 0.0)
  a2 = jnp.maximum(bn(a1 @ w2.T + bb2, g2, be2, mu2, var2), 0.0)
  ref = a2 @ w3.T + bb3

  err = float(jnp.max(jnp.abs(out - ref)))
  if not (err < 5e-2):
    raise AssertionError(f"Pallas / reference mismatch: max abs err = {err}")
  print("KERNEL_OK")
</pallas_src>

<mosaic_0001>
module attributes {stable_mosaic.version = 11 : i64} {
  func.func @_fused_head_classifier_kernel(%arg0: i32, %arg1: i32, %arg2: memref<8x128x64xbf16, #tpu.memory_space<vmem>>, %arg3: memref<64x128xbf16, #tpu.memory_space<vmem>>, %arg4: memref<1x128xf32, #tpu.memory_space<vmem>>, %arg5: memref<128x512xbf16, #tpu.memory_space<any>>, %arg6: memref<1x512xf32, #tpu.memory_space<any>>, %arg7: memref<512x256xbf16, #tpu.memory_space<any>>, %arg8: memref<1x256xf32, #tpu.memory_space<any>>, %arg9: memref<256x128xbf16, #tpu.memory_space<any>>, %arg10: memref<1x128xf32, #tpu.memory_space<any>>, %arg11: memref<8x128xf32, #tpu.memory_space<vmem>>, %arg12: memref<8x128xf32, #tpu.memory_space<vmem>>, %arg13: memref<128x512xbf16, #tpu.memory_space<vmem>>, %arg14: memref<1x512xf32, #tpu.memory_space<vmem>>, %arg15: memref<512x256xbf16, #tpu.memory_space<vmem>>, %arg16: memref<1x256xf32, #tpu.memory_space<vmem>>, %arg17: memref<256x128xbf16, #tpu.memory_space<vmem>>, %arg18: memref<1x128xf32, #tpu.memory_space<vmem>>, %arg19: memref<6x!tpu.dma_semaphore, #tpu.memory_space<semaphore_mem>>) attributes {dimension_semantics = [#tpu.dimension_semantics<parallel>, #tpu.dimension_semantics<arbitrary>], iteration_bounds = array<i64: 1, 2>, scalar_prefetch = 0 : i64, scratch_operands = 8 : i64, tpu.core_type = #tpu.core_type<tc>, window_params = [{transform_indices = @transform_0, window_bounds = array<i64: 8, 128, 64>}, {pipeline_mode = #tpu.pipeline_mode<synchronous>, transform_indices = @transform_1, window_bounds = array<i64: 64, 128>}, {pipeline_mode = #tpu.pipeline_mode<synchronous>, transform_indices = @transform_2, window_bounds = array<i64: 1, 128>}, {}, {}, {}, {}, {}, {}, {transform_indices = @transform_9, window_bounds = array<i64: 8, 128>}]} {
    %c0_i32 = arith.constant 0 : i32
    %0 = arith.cmpi eq, %arg1, %c0_i32 : i32
    %1 = arith.extui %0 : i1 to i32
    %c0_i32_0 = arith.constant 0 : i32
    %2 = arith.cmpi ne, %1, %c0_i32_0 : i32
    scf.if %2 {
      %cst_15 = arith.constant 0.000000e+00 : f32
      %25 = vector.broadcast %cst_15 : f32 to vector<8x128xf32>
      %c0_16 = arith.constant 0 : index
      %c0_17 = arith.constant 0 : index
      %26 = vector.load %arg12[%c0_16, %c0_17] : memref<8x128xf32, #tpu.memory_space<vmem>>, vector<8x128xf32>
      tpu.vector_store %arg12[%c0_16, %c0_17], %25 {strides = array<i32>} : memref<8x128xf32, #tpu.memory_space<vmem>>, vector<8x128xf32>,
      %c0_i32_18 = arith.constant 0 : i32
      %27 = tpu.memref_slice %arg19[%c0_i32_18] : memref<6x!tpu.dma_semaphore, #tpu.memory_space<semaphore_mem>> -> memref<1x!tpu.dma_semaphore, #tpu.memory_space<semaphore_mem>>
      %28 = tpu.memref_squeeze %27 : memref<1x!tpu.dma_semaphore, #tpu.memory_space<semaphore_mem>> -> memref<!tpu.dma_semaphore, #tpu.memory_space<semaphore_mem>>
      tpu.enqueue_dma source(%arg5 : memref<128x512xbf16, #tpu.memory_space<any>>) target(%arg13 : memref<128x512xbf16, #tpu.memory_space<vmem>>) target_semaphore(%28 : memref<!tpu.dma_semaphore, #tpu.memory_space<semaphore_mem>>)
      %c1_i32_19 = arith.constant 1 : i32
      %29 = tpu.memref_slice %arg19[%c1_i32_19] : memref<6x!tpu.dma_semaphore, #tpu.memory_space<semaphore_mem>> -> memref<1x!tpu.dma_semaphore, #tpu.memory_space<semaphore_mem>>
      %30 = tpu.memref_squeeze %29 : memref<1x!tpu.dma_semaphore, #tpu.memory_space<semaphore_mem>> -> memref<!tpu.dma_semaphore, #tpu.memory_space<semaphore_mem>>
      tpu.enqueue_dma source(%arg6 : memref<1x512xf32, #tpu.memory_space<any>>) target(%arg14 : memref<1x512xf32, #tpu.memory_space<vmem>>) target_semaphore(%30 : memref<!tpu.dma_semaphore, #tpu.memory_space<semaphore_mem>>)
      %c2_i32 = arith.constant 2 : i32
      %31 = tpu.memref_slice %arg19[%c2_i32] : memref<6x!tpu.dma_semaphore, #tpu.memory_space<semaphore_mem>> -> memref<1x!tpu.dma_semaphore, #tpu.memory_space<semaphore_mem>>
      %32 = tpu.memref_squeeze %31 : memref<1x!tpu.dma_semaphore, #tpu.memory_space<semaphore_mem>> -> memref<!tpu.dma_semaphore, #tpu.memory_space<semaphore_mem>>
      tpu.enqueue_dma source(%arg7 : memref<512x256xbf16, #tpu.memory_space<any>>) target(%arg15 : memref<512x256xbf16, #tpu.memory_space<vmem>>) target_semaphore(%32 : memref<!tpu.dma_semaphore, #tpu.memory_space<semaphore_mem>>)
      %c3_i32 = arith.constant 3 : i32
      %33 = tpu.memref_slice %arg19[%c3_i32] : memref<6x!tpu.dma_semaphore, #tpu.memory_space<semaphore_mem>> -> memref<1x!tpu.dma_semaphore, #tpu.memory_space<semaphore_mem>>
      %34 = tpu.memref_squeeze %33 : memref<1x!tpu.dma_semaphore, #tpu.memory_space<semaphore_mem>> -> memref<!tpu.dma_semaphore, #tpu.memory_space<semaphore_mem>>
      tpu.enqueue_dma source(%arg8 : memref<1x256xf32, #tpu.memory_space<any>>) target(%arg16 : memref<1x256xf32, #tpu.memory_space<vmem>>) target_semaphore(%34 : memref<!tpu.dma_semaphore, #tpu.memory_space<semaphore_mem>>)
      %c4_i32 = arith.constant 4 : i32
      %35 = tpu.memref_slice %arg19[%c4_i32] : memref<6x!tpu.dma_semaphore, #tpu.memory_space<semaphore_mem>> -> memref<1x!tpu.dma_semaphore, #tpu.memory_space<semaphore_mem>>
      %36 = tpu.memref_squeeze %35 : memref<1x!tpu.dma_semaphore, #tpu.memory_space<semaphore_mem>> -> memref<!tpu.dma_semaphore, #tpu.memory_space<semaphore_mem>>
      tpu.enqueue_dma source(%arg9 : memref<256x128xbf16, #tpu.memory_space<any>>) target(%arg17 : memref<256x128xbf16, #tpu.memory_space<vmem>>) target_semaphore(%36 : memref<!tpu.dma_semaphore, #tpu.memory_space<semaphore_mem>>)
      %c5_i32 = arith.constant 5 : i32
      %37 = tpu.memref_slice %arg19[%c5_i32] : memref<6x!tpu.dma_semaphore, #tpu.memory_space<semaphore_mem>> -> memref<1x!tpu.dma_semaphore, #tpu.memory_space<semaphore_mem>>
      %38 = tpu.memref_squeeze %37 : memref<1x!tpu.dma_semaphore, #tpu.memory_space<semaphore_mem>> -> memref<!tpu.dma_semaphore, #tpu.memory_space<semaphore_mem>>
      tpu.enqueue_dma source(%arg10 : memref<1x128xf32, #tpu.memory_space<any>>) target(%arg18 : memref<1x128xf32, #tpu.memory_space<vmem>>) target_semaphore(%38 : memref<!tpu.dma_semaphore, #tpu.memory_space<semaphore_mem>>)
    } else {
    }
    %c0 = arith.constant 0 : index
    %c0_1 = arith.constant 0 : index
    %c0_2 = arith.constant 0 : index
    %3 = vector.load %arg2[%c0, %c0_1, %c0_2] : memref<8x128x64xbf16, #tpu.memory_space<vmem>>, vector<8x128x64xbf16>
    %4 = vector.shape_cast %3 : vector<8x128x64xbf16> to vector<1024x64xbf16>
    %c0_3 = arith.constant 0 : index
    %c0_4 = arith.constant 0 : index
    %5 = vector.load %arg3[%c0_3, %c0_4] : memref<64x128xbf16, #tpu.memory_space<vmem>>, vector<64x128xbf16>
    %cst = arith.constant dense<0.000000e+00> : vector<1024x128xf32>
    %6 = tpu.matmul %4, %5, %cst {dimension_numbers = #tpu.dot_dimension_numbers<[1], [0], [0], [1], [0, 0, 1, 1], [], []>} : vector<1024x64xbf16>, vector<64x128xbf16>, vector<1024x128xf32> -> vector<1024x128xf32>
    %c0_5 = arith.constant 0 : index
    %c0_6 = arith.constant 0 : index
    %7 = vector.load %arg4[%c0_5, %c0_6] : memref<1x128xf32, #tpu.memory_space<vmem>>, vector<1x128xf32>
    %8 = vector.broadcast %7 : vector<1x128xf32> to vector<1024x128xf32>
    %9 = arith.addf %6, %8 : vector<1024x128xf32>
    %cst_7 = arith.constant 0.000000e+00 : f32
    %10 = vector.broadcast %cst_7 : f32 to vector<1024x128xf32>
    %11 = arith.subf %10, %9 : vector<1024x128xf32>
    %12 = math.exp %11 : vector<1024x128xf32>
    %cst_8 = arith.constant 1.000000e+00 : f32
    %13 = vector.broadcast %cst_8 : f32 to vector<1024x128xf32>
    %14 = arith.addf %13, %12 : vector<1024x128xf32>
    %15 = tpu.reciprocal %14 {approx = true} : vector<1024x128xf32> -> vector<1024x128xf32>
    %16 = arith.mulf %9, %15 : vector<1024x128xf32>
    %c0_9 = arith.constant 0 : index
    %c0_10 = arith.constant 0 : index
    %17 = vector.load %arg12[%c0_9, %c0_10] : memref<8x128xf32, #tpu.memory_space<vmem>>, vector<8x128xf32>
    %18 = vector.shape_cast %16 : vector<1024x128xf32> to vector<8x128x128xf32>
    %cst_11 = arith.constant dense<0.000000e+00> : vector<8x128xf32>
    %19 = vector.multi_reduction <add>, %18, %cst_11 [1] : vector<8x128x128xf32> to vector<8x128xf32>
    %20 = arith.addf %17, %19 : vector<8x128xf32>
    %c0_12 = arith.constant 0 : index
    %c0_13 = arith.constant 0 : index
    %21 = vector.load %arg12[%c0_12, %c0_13] : memref<8x128xf32, #tpu.memory_space<vmem>>, vector<8x128xf32>
    tpu.vector_store %arg12[%c0_12, %c0_13], %20 {strides = array<i32>} : memref<8x128xf32, #tpu.memory_space<vmem>>, vector<8x128xf32>,
    %c1_i32 = arith.constant 1 : i32
    %22 = arith.cmpi eq, %arg1, %c1_i32 : i32
    %23 = arith.extui %22 : i1 to i32
    %c0_i32_14 = arith.constant 0 : i32
    %24 = arith.cmpi ne, %23, %c0_i32_14 : i32
    scf.if %24 {
      %c0_i32_15 = arith.constant 0 : i32
      %25 = tpu.memref_slice %arg19[%c0_i32_15] : memref<6x!tpu.dma_semaphore, #tpu.memory_space<semaphore_mem>> -> memref<1x!tpu.dma_semaphore, #tpu.memory_space<semaphore_mem>>
      %26 = tpu.memref_squeeze %25 : memref<1x!tpu.dma_semaphore, #tpu.memory_space<semaphore_mem>> -> memref<!tpu.dma_semaphore, #tpu.memory_space<semaphore_mem>>
      tpu.wait_dma2 semaphore(%26 : memref<!tpu.dma_semaphore, #tpu.memory_space<semaphore_mem>>) src(%arg5 : memref<128x512xbf16, #tpu.memory_space<any>>) dst(%arg13 : memref<128x512xbf16, #tpu.memory_space<vmem>>)
      %c1_i32_16 = arith.constant 1 : i32
      %27 = tpu.memref_slice %arg19[%c1_i32_16] : memref<6x!tpu.dma_semaphore, #tpu.memory_space<semaphore_mem>> -> memref<1x!tpu.dma_semaphore, #tpu.memory_space<semaphore_mem>>
      %28 = tpu.memref_squeeze %27 : memref<1x!tpu.dma_semaphore, #tpu.memory_space<semaphore_mem>> -> memref<!tpu.dma_semaphore, #tpu.memory_space<semaphore_mem>>
      tpu.wait_dma2 semaphore(%28 : memref<!tpu.dma_semaphore, #tpu.memory_space<semaphore_mem>>) src(%arg6 : memref<1x512xf32, #tpu.memory_space<any>>) dst(%arg14 : memref<1x512xf32, #tpu.memory_space<vmem>>)
      %c2_i32 = arith.constant 2 : i32
      %29 = tpu.memref_slice %arg19[%c2_i32] : memref<6x!tpu.dma_semaphore, #tpu.memory_space<semaphore_mem>> -> memref<1x!tpu.dma_semaphore, #tpu.memory_space<semaphore_mem>>
      %30 = tpu.memref_squeeze %29 : memref<1x!tpu.dma_semaphore, #tpu.memory_space<semaphore_mem>> -> memref<!tpu.dma_semaphore, #tpu.memory_space<semaphore_mem>>
      tpu.wait_dma2 semaphore(%30 : memref<!tpu.dma_semaphore, #tpu.memory_space<semaphore_mem>>) src(%arg7 : memref<512x256xbf16, #tpu.memory_space<any>>) dst(%arg15 : memref<512x256xbf16, #tpu.memory_space<vmem>>)
      %c3_i32 = arith.constant 3 : i32
      %31 = tpu.memref_slice %arg19[%c3_i32] : memref<6x!tpu.dma_semaphore, #tpu.memory_space<semaphore_mem>> -> memref<1x!tpu.dma_semaphore, #tpu.memory_space<semaphore_mem>>
      %32 = tpu.memref_squeeze %31 : memref<1x!tpu.dma_semaphore, #tpu.memory_space<semaphore_mem>> -> memref<!tpu.dma_semaphore, #tpu.memory_space<semaphore_mem>>
      tpu.wait_dma2 semaphore(%32 : memref<!tpu.dma_semaphore, #tpu.memory_space<semaphore_mem>>) src(%arg8 : memref<1x256xf32, #tpu.memory_space<any>>) dst(%arg16 : memref<1x256xf32, #tpu.memory_space<vmem>>)
      %c4_i32 = arith.constant 4 : i32
      %33 = tpu.memref_slice %arg19[%c4_i32] : memref<6x!tpu.dma_semaphore, #tpu.memory_space<semaphore_mem>> -> memref<1x!tpu.dma_semaphore, #tpu.memory_space<semaphore_mem>>
      %34 = tpu.memref_squeeze %33 : memref<1x!tpu.dma_semaphore, #tpu.memory_space<semaphore_mem>> -> memref<!tpu.dma_semaphore, #tpu.memory_space<semaphore_mem>>
      tpu.wait_dma2 semaphore(%34 : memref<!tpu.dma_semaphore, #tpu.memory_space<semaphore_mem>>) src(%arg9 : memref<256x128xbf16, #tpu.memory_space<any>>) dst(%arg17 : memref<256x128xbf16, #tpu.memory_space<vmem>>)
      %c5_i32 = arith.constant 5 : i32
      %35 = tpu.memref_slice %arg19[%c5_i32] : memref<6x!tpu.dma_semaphore, #tpu.memory_space<semaphore_mem>> -> memref<1x!tpu.dma_semaphore, #tpu.memory_space<semaphore_mem>>
      %36 = tpu.memref_squeeze %35 : memref<1x!tpu.dma_semaphore, #tpu.memory_space<semaphore_mem>> -> memref<!tpu.dma_semaphore, #tpu.memory_space<semaphore_mem>>
      tpu.wait_dma2 semaphore(%36 : memref<!tpu.dma_semaphore, #tpu.memory_space<semaphore_mem>>) src(%arg10 : memref<1x128xf32, #tpu.memory_space<any>>) dst(%arg18 : memref<1x128xf32, #tpu.memory_space<vmem>>)
      %c0_17 = arith.constant 0 : index
      %c0_18 = arith.constant 0 : index
      %37 = vector.load %arg12[%c0_17, %c0_18] : memref<8x128xf32, #tpu.memory_space<vmem>>, vector<8x128xf32>
      %cst_19 = arith.constant 3.906250e-03 : f32
      %38 = vector.broadcast %cst_19 : f32 to vector<8x128xf32>
      %39 = arith.mulf %37, %38 : vector<8x128xf32>
      %40 = arith.truncf %39 : vector<8x128xf32> to vector<8x128xbf16>
      %c0_20 = arith.constant 0 : index
      %c0_21 = arith.constant 0 : index
      %41 = vector.load %arg13[%c0_20, %c0_21] : memref<128x512xbf16, #tpu.memory_space<vmem>>, vector<128x512xbf16>
      %cst_22 = arith.constant dense<0.000000e+00> : vector<8x512xf32>
      %42 = tpu.matmul %40, %41, %cst_22 {dimension_numbers = #tpu.dot_dimension_numbers<[1], [0], [0], [1], [0, 0, 1, 1], [], []>} : vector<8x128xbf16>, vector<128x512xbf16>, vector<8x512xf32> -> vector<8x512xf32>
      %c0_23 = arith.constant 0 : index
      %c0_24 = arith.constant 0 : index
      %43 = vector.load %arg14[%c0_23, %c0_24] : memref<1x512xf32, #tpu.memory_space<vmem>>, vector<1x512xf32>
      %44 = vector.broadcast %43 : vector<1x512xf32> to vector<8x512xf32>
      %45 = arith.addf %42, %44 : vector<8x512xf32>
      %cst_25 = arith.constant 0.000000e+00 : f32
      %46 = vector.broadcast %cst_25 : f32 to vector<8x512xf32>
      %47 = arith.maximumf %45, %46 : vector<8x512xf32>
      %48 = arith.truncf %47 : vector<8x512xf32> to vector<8x512xbf16>
      %c0_26 = arith.constant 0 : index
      %c0_27 = arith.constant 0 : index
      %49 = vector.load %arg15[%c0_26, %c0_27] : memref<512x256xbf16, #tpu.memory_space<vmem>>, vector<512x256xbf16>
      %cst_28 = arith.constant dense<0.000000e+00> : vector<8x256xf32>
      %50 = tpu.matmul %48, %49, %cst_28 {dimension_numbers = #tpu.dot_dimension_numbers<[1], [0], [0], [1], [0, 0, 1, 1], [], []>} : vector<8x512xbf16>, vector<512x256xbf16>, vector<8x256xf32> -> vector<8x256xf32>
      %c0_29 = arith.constant 0 : index
      %c0_30 = arith.constant 0 : index
      %51 = vector.load %arg16[%c0_29, %c0_30] : memref<1x256xf32, #tpu.memory_space<vmem>>, vector<1x256xf32>
      %52 = vector.broadcast %51 : vector<1x256xf32> to vector<8x256xf32>
      %53 = arith.addf %50, %52 : vector<8x256xf32>
      %cst_31 = arith.constant 0.000000e+00 : f32
      %54 = vector.broadcast %cst_31 : f32 to vector<8x256xf32>
      %55 = arith.maximumf %53, %54 : vector<8x256xf32>
      %56 = arith.truncf %55 : vector<8x256xf32> to vector<8x256xbf16>
      %c0_32 = arith.constant 0 : index
      %c0_33 = arith.constant 0 : index
      %57 = vector.load %arg17[%c0_32, %c0_33] : memref<256x128xbf16, #tpu.memory_space<vmem>>, vector<256x128xbf16>
      %cst_34 = arith.constant dense<0.000000e+00> : vector<8x128xf32>
      %58 = tpu.matmul %56, %57, %cst_34 {dimension_numbers = #tpu.dot_dimension_numbers<[1], [0], [0], [1], [0, 0, 1, 1], [], []>} : vector<8x256xbf16>, vector<256x128xbf16>, vector<8x128xf32> -> vector<8x128xf32>
      %cst_35 = arith.constant 0.000000e+00 : f32
      %59 = vector.broadcast %cst_35 : f32 to vector<8x128xf32>
      %60 = arith.addf %58, %59 : vector<8x128xf32>
      %c0_36 = arith.constant 0 : index
      %c0_37 = arith.constant 0 : index
      %61 = vector.load %arg18[%c0_36, %c0_37] : memref<1x128xf32, #tpu.memory_space<vmem>>, vector<1x128xf32>
      %62 = vector.broadcast %61 : vector<1x128xf32> to vector<8x128xf32>
      %63 = arith.addf %60, %62 : vector<8x128xf32>
      %c0_38 = arith.constant 0 : index
      %c0_39 = arith.constant 0 : index
      %64 = vector.load %arg11[%c0_38, %c0_39] : memref<8x128xf32, #tpu.memory_space<vmem>>, vector<8x128xf32>
      tpu.vector_store %arg11[%c0_38, %c0_39], %63 {strides = array<i32>} : memref<8x128xf32, #tpu.memory_space<vmem>>, vector<8x128xf32>,
    } else {
    }
    return
  }
  func.func @transform_0(%arg0: i32, %arg1: i32) -> (i32, i32, i32) {
    %c0_i32 = arith.constant 0 : i32
    %c0_i32_0 = arith.constant 0 : i32
    return %arg0, %arg1, %c0_i32 : i32, i32, i32
  }
  func.func @transform_1(%arg0: i32, %arg1: i32) -> (i32, i32) {
    %c0_i32 = arith.constant 0 : i32
    %c0_i32_0 = arith.constant 0 : i32
    %c0_i32_1 = arith.constant 0 : i32
    return %c0_i32, %c0_i32_0 : i32, i32
  }
  func.func @transform_2(%arg0: i32, %arg1: i32) -> (i32, i32) {
    %c0_i32 = arith.constant 0 : i32
    %c0_i32_0 = arith.constant 0 : i32
    %c0_i32_1 = arith.constant 0 : i32
    return %c0_i32, %c0_i32_0 : i32, i32
  }
  func.func @transform_9(%arg0: i32, %arg1: i32) -> (i32, i32) {
    %c0_i32 = arith.constant 0 : i32
    %c0_i32_0 = arith.constant 0 : i32
    return %arg0, %c0_i32 : i32, i32
  }
}

</mosaic_0001>

<llo_original>
// kernel: tpu_custom_call.1
$region0: #{tpu_custom_call.1}
  #allocation0 [shape = 'u32[]', space=smem, size = 0x4, offset = 0x4, fixed_abs, tag = 'smem constant byte address 0x4 - core index']
  #allocation1 [shape = 'u32[144,128]{1,0:T(1,128)}', space=vmem, size = 0x12000, scoped, tag = 'internal scratch']
  #allocation2 [shape = 'f32[8,128]{1,0:T(8,128)}', space=vmem, size = 0x1000, scoped, tag = 'scratch operand']
  #allocation3 [shape = 'bf16[128,512]{1,0:T(8,128)(2,1)}', space=vmem, size = 0x20000, scoped, tag = 'scratch operand']
  #allocation4 [shape = 'f32[1,512]{1,0:T(1,128)}', space=vmem, size = 0x800, scoped, tag = 'scratch operand']
  #allocation5 [shape = 'bf16[512,256]{1,0:T(8,128)(2,1)}', space=vmem, size = 0x40000, scoped, tag = 'scratch operand']
  #allocation6 [shape = 'f32[1,256]{1,0:T(1,128)}', space=vmem, size = 0x400, scoped, tag = 'scratch operand']
  #allocation7 [shape = 'bf16[256,128]{1,0:T(8,128)(2,1)}', space=vmem, size = 0x10000, scoped, tag = 'scratch operand']
  #allocation8 [shape = 'f32[1,128]{1,0:T(1,128)}', space=vmem, size = 0x200, scoped, tag = 'scratch operand']
  #allocation9 [shape = 's32[6]{0}', space=sflag, size = 0x18, scoped, tag = 'scratch operand']
  #allocation13 [shape = 's32[]', space=sflag, size = 0x4, offset = 0, fixed_abs, tag = 'sflag constant byte address 0x0 - dummy sync flag']
  #allocation14 [shape = 's32[]', space=sflag, size = 0x4, offset = 0, fixed_abs, tag = 'sflag constant byte address 0x0 - dummy sync flag']
  #allocation15 [shape = 's32[]', space=sflag, size = 0x4, offset = 0, fixed_abs, tag = 'sflag constant byte address 0x0 - dummy sync flag']
  #allocation16 [shape = 's32[]', space=sflag, size = 0x4, offset = 0, fixed_abs, tag = 'sflag constant byte address 0x0 - dummy sync flag']
  #allocation17 [shape = 's32[]', space=sflag, size = 0x4, offset = 0, fixed_abs, tag = 'sflag constant byte address 0x0 - dummy sync flag']
  #allocation18 [shape = 's32[]', space=sflag, size = 0x4, offset = 0, fixed_abs, tag = 'sflag constant byte address 0x0 - dummy sync flag']
  %s0 = inlined_call_operand.vmem [shape: bf16[8,256,64], index: 0, kind: input, shape index: {}]
  %s1 = inlined_call_operand.vmem [shape: bf16[64,128], index: 1, kind: input, shape index: {}]
  %s2 = inlined_call_operand.vmem [shape: f32[1,128], index: 2, kind: input, shape index: {}]
  %s3 = inlined_call_operand.vmem [shape: bf16[128,512], index: 3, kind: input, shape index: {}]
  %s4 = inlined_call_operand.vmem [shape: f32[1,512], index: 4, kind: input, shape index: {}]
  %s5 = inlined_call_operand.vmem [shape: bf16[512,256], index: 5, kind: input, shape index: {}]
  %s6 = inlined_call_operand.vmem [shape: f32[1,256], index: 6, kind: input, shape index: {}]
  %s7 = inlined_call_operand.vmem [shape: bf16[256,128], index: 7, kind: input, shape index: {}]
  %s8 = inlined_call_operand.vmem [shape: f32[1,128], index: 8, kind: input, shape index: {}]
  %s9 = inlined_call_operand.hbm [shape: f32[8,128], index: 9, kind: output, shape index: {}]
  %s10 = sld [smem:[#allocation0]]
  $region286: #{tpu_custom_call.1} parent=0
    _
  %s12 = ssub.s32 1, %s10
  %s13 = scalar_select 0, %s12, %s10
  $region1: #{tpu_custom_call.1} parent=0
    #allocation10 [shape = 'u8[524288]{0}', space=vmem, size = 0x80000, scoped, tag = 'input window, operand 0']
    #allocation11 [shape = 'u8[4096]{0}', space=vmem, size = 0x1000, scoped, tag = 'output window, operand 0, single buffered']
    #allocation12 [shape = 's32[2]{0}', space=sflag, size = 0x8, scoped, tag = 'scoped memory for tpu_custom_call.1']
    %14 = vsyncpa [#allocation12], 0
    loop: start=0, step=1, limit=4
    $region2: #{tpu_custom_call.1} parent=1 // loop_pre_header
      _
    $region3: #{tpu_custom_call.1} parent=1 // loop_header
      %s16 = sphi 0, %s20
      %p17 = scmp.ge.s32.totalorder %s16, 4
      %s23 = sphi 0, %s35
      %s24 = sphi 0, %s31
      %s25 = sphi 0, %s23
      %s26 = sphi 0, %s24
      %s27 = sphi 0, %s25
      %s28 = sphi 0, %s26
      %s40 = sphi 0, %s42
      %s43 = sphi 0, %s40
      %s44 = sphi 0, %s43
      %s60 = sphi 0, %s44
      %s64 = sphi 0, %s64
      %s66 = sphi 0, %s64
      %s67 = sphi 0, %s66
      %s81 = sphi 0, %s67
      %s85 = sphi 0, %s85
      %s87 = sphi 0, %s85
      %s88 = sphi 0, %s87
      %s102 = sphi 0, %s88
      %s108 = sphi 0, %s110
      %s111 = sphi 0, %s108
      %s112 = sphi 0, %s111
      %s128 = sphi 0, %s112
    $region4: #{tpu_custom_call.1} parent=1 // loop_header_branch
      %19 = sbr.rel (%p17) target = $region8
    $region5: #{tpu_custom_call.1} parent=1 // loop_body
      %s21 = ssub.s32 %s16, 1
      %s22 = ssub.s32 %s16, 2
      %s29 = sadd.s32 1, %s24
      %p30 = scmp.ge.s32.totalorder %s29, 2
      %s31 = scalar_select %p30, 0, %s29
      %s32 = sadd.s32 1, %s23
      %s33 = scalar_select %p30, %s32, %s23
      %p34 = scmp.ge.s32.totalorder %s33, 1
      %s35 = scalar_select %p34, 0, %s33
      %s36 = ssub.s32 %s23, %s35
      %s37 = ssub.s32 %s24, %s31
      %s38 = sor.u32 %s36, %s37
      %p39 = scmp.eq.s32.totalorder %s38, 0
      %s41 = sadd.s32 %s40, 1
      %s42 = scalar_select %p39, %s40, %s41
      %p45 = pneg %p39
      %p46 = scmp.eq.s32.totalorder %s16, 1
      %p47 = por %p45, %p46
      %p48 = scmp.ne.s32.totalorder %s40, %s43
      %p49 = scmp.eq.s32.totalorder %s16, 0
      %p50 = por %p48, %p49
      %p51 = scmp.ne.s32.totalorder %s40, %s43
      %p52 = scmp.eq.s32.totalorder %s21, 1
      %p53 = por %p51, %p52
      %p54 = scmp.ne.s32.totalorder %s43, %s44
      %p55 = scmp.eq.s32.totalorder %s21, 0
      %p56 = por %p54, %p55
      %p57 = scmp.ne.s32.totalorder %s43, %s44
      %p58 = scmp.eq.s32.totalorder %s22, 1
      %p59 = por %p57, %p58
      %p61 = scmp.ne.s32.totalorder %s44, %s60
      %p62 = scmp.eq.s32.totalorder %s22, 0
      %p63 = por %p61, %p62
      %s65 = sadd.s32 %s64, 1
      %p68 = scmp.eq.s32.totalorder %s16, 1
      %p69 = scmp.ne.s32.totalorder %s64, %s66
      %p70 = scmp.eq.s32.totalorder %s16, 0
      %p71 = por %p69, %p70
      %p72 = scmp.ne.s32.totalorder %s64, %s66
      %p73 = scmp.eq.s32.totalorder %s21, 1
      %p74 = por %p72, %p73
      %p75 = scmp.ne.s32.totalorder %s66, %s67
      %p76 = scmp.eq.s32.totalorder %s21, 0
      %p77 = por %p75, %p76
      %p78 = scmp.ne.s32.totalorder %s66, %s67
      %p79 = scmp.eq.s32.totalorder %s22, 1
      %p80 = por %p78, %p79
      %p82 = scmp.ne.s32.totalorder %s67, %s81
      %p83 = scmp.eq.s32.totalorder %s22, 0
      %p84 = por %p82, %p83
      %s86 = sadd.s32 %s85, 1
      %p89 = scmp.eq.s32.totalorder %s16, 1
      %p90 = scmp.ne.s32.totalorder %s85, %s87
      %p91 = scmp.eq.s32.totalorder %s16, 0
      %p92 = por %p90, %p91
      %p93 = scmp.ne.s32.totalorder %s85, %s87
      %p94 = scmp.eq.s32.totalorder %s21, 1
      %p95 = por %p93, %p94
      %p96 = scmp.ne.s32.totalorder %s87, %s88
      %p97 = scmp.eq.s32.totalorder %s21, 0
      %p98 = por %p96, %p97
      %p99 = scmp.ne.s32.totalorder %s87, %s88
      %p100 = scmp.eq.s32.totalorder %s22, 1
      %p101 = por %p99, %p100
      %p103 = scmp.ne.s32.totalorder %s88, %s102
      %p104 = scmp.eq.s32.totalorder %s22, 0
      %p105 = por %p103, %p104
      %s106 = ssub.s32 %s23, %s35
      %p107 = scmp.eq.s32.totalorder %s106, 0
      %s109 = sadd.s32 %s108, 1
      %s110 = scalar_select %p107, %s108, %s109
      %p113 = pneg %p107
      %p114 = scmp.eq.s32.totalorder %s16, 1
      %p115 = por %p113, %p114
      %p116 = scmp.ne.s32.totalorder %s108, %s111
      %p117 = scmp.eq.s32.totalorder %s16, 0
      %p118 = por %p116, %p117
      %p119 = scmp.ne.s32.totalorder %s108, %s111
      %p120 = scmp.eq.s32.totalorder %s21, 1
      %p121 = por %p119, %p120
      %p122 = scmp.ne.s32.totalorder %s111, %s112
      %p123 = scmp.eq.s32.totalorder %s21, 0
      %p124 = por %p122, %p123
      %p125 = scmp.ne.s32.totalorder %s111, %s112
      %p126 = scmp.eq.s32.totalorder %s22, 1
      %p127 = por %p125, %p126
      %p129 = scmp.ne.s32.totalorder %s112, %s128
      %p130 = scmp.eq.s32.totalorder %s22, 0
      %p131 = por %p129, %p130
      %p132 = scmp.le.s32.totalorder 1, %s16
      %p133 = scmp.lt.s32.totalorder %s16, 3
      %p134 = pnand %p132, %p133
      %p135 = pneg %p134
      // Predicated region
      $region9: #{tpu_custom_call.1} parent=5 // pred_check
        _
      $region10: #{tpu_custom_call.1} parent=5 // pred_check_branch
        %137 = sbr.rel (%p134) target = $region12
      $region11: #{tpu_custom_call.1} parent=5 // pred_region
        %s138 = ssub.s32 %s16, 1
        // Predicated region
        $region13: #{tpu_custom_call.1} parent=11 // pred_check
          %p139 = pneg %p77
        $region14: #{tpu_custom_call.1} parent=11 // pred_check_branch
          %141 = sbr.rel (%p139) target = $region16
        $region15: #{tpu_custom_call.1} parent=11 // pred_region
          _
        $region16: #{tpu_custom_call.1} parent=11 // pred_fallthru
          _
        // Predicated region
        $region17: #{tpu_custom_call.1} parent=11 // pred_check
          %p142 = pneg %p98
        $region18: #{tpu_custom_call.1} parent=11 // pred_check_branch
          %144 = sbr.rel (%p142) target = $region20
        $region19: #{tpu_custom_call.1} parent=11 // pred_region
          _
        $region20: #{tpu_custom_call.1} parent=11 // pred_fallthru
          _
      $region12: #{tpu_custom_call.1} parent=5 // pred_fallthru
        _
      %p145 = scmp.lt.s32.totalorder %s16, 2
      // Predicated region
      $region21: #{tpu_custom_call.1} parent=5 // pred_check
        %p146 = pneg %p145
      $region22: #{tpu_custom_call.1} parent=5 // pred_check_branch
        %148 = sbr.rel (%p146) target = $region24
      $region23: #{tpu_custom_call.1} parent=5 // pred_region
        // Predicated region
        $region25: #{tpu_custom_call.1} parent=23 // pred_check
          %p149 = pneg %p50
        $region26: #{tpu_custom_call.1} parent=23 // pred_check_branch
          %151 = sbr.rel (%p149) target = $region28
        $region27: #{tpu_custom_call.1} parent=23 // pred_region
          %s152 = sand.u32 %s40, 1
          %s153 = sand.u32 %s40, 1
          %s154 = smul.addr %s153, 512
          %s155 = scalar_lea.vmem [#allocation10], %s154
          %s156 = smul.u32 8, %s23
          %s157 = smul.u32 16, %s24
          %s158 = smul.addr %s156, 32
          %s159 = sadd.s32 %s157, %s158
          %s160 = smul.addr %s159, 4
          %s161 = scalar_lea.vmem %s0, %s160
          // Predicated region
          $region29: #{tpu_custom_call.1} parent=27 // pred_check
            _
          $region30: #{tpu_custom_call.1} parent=27 // pred_check_branch
            %163 = sbr.rel (0) target = $region32
          $region31: #{tpu_custom_call.1} parent=27 // pred_region
            // Predicated region
            $region33: #{tpu_custom_call.1} parent=31 // pred_check
              _
            $region34: #{tpu_custom_call.1} parent=31 // pred_check_branch
              %165 = sbr.rel target = $region36
            $region35: #{tpu_custom_call.1} parent=31 // pred_region
              // Predicated region
              $region48: #{tpu_custom_call.1} parent=35 // pred_check
                _
              $region49: #{tpu_custom_call.1} parent=35 // pred_check_branch
                %435 = sbr.rel (0) target = $region51
              $region50: #{tpu_custom_call.1} parent=35 // pred_region
                loop: start=0, step=1, limit=1
                $region52: #{tpu_custom_call.1} parent=50 // loop_pre_header
                  _
                $region53: #{tpu_custom_call.1} parent=50 // loop_header
                  %s437 = sphi 0, %s441
                  %p438 = scmp.ge.s32.totalorder %s437, 1
                  %s442 = sphi %s161, %s161
                  %s443 = sphi %s155, %s155
                $region54: #{tpu_custom_call.1} parent=50 // loop_header_branch
                  %440 = sbr.rel (%p438) target = $region58
                $region55: #{tpu_custom_call.1} parent=50 // loop_body
                  _
                $region56: #{tpu_custom_call.1} parent=50 // loop_footer
                  %s441 = sadd.s32 1, %s437
                $region57: #{tpu_custom_call.1} parent=50 // loop_footer_branch
                  %436 = sbr.rel target = $region53
                $region58: #{tpu_custom_call.1} parent=50 // loop_exit
                  _
                %s445 = ssub.s32 16, 1
                loop: start=0, step=1, limit=1
                $region59: #{tpu_custom_call.1} parent=50 // loop_pre_header
                  _
                $region60: #{tpu_custom_call.1} parent=50 // loop_header
                  %s447 = sphi 0, %s451
                  %p448 = scmp.ge.s32.totalorder %s447, 1
                  %s452 = sphi %s161, %s161
                  %s453 = sphi %s155, %s155
                $region61: #{tpu_custom_call.1} parent=50 // loop_header_branch
                  %450 = sbr.rel (%p448) target = $region65
                $region62: #{tpu_custom_call.1} parent=50 // loop_body
                  %v454 = vld [vmem:[%s452] sm:%s445]
                  %455 = vst [vmem:[%s453] sm:%s445] %v454
                  %v456 = vld [vmem:[%s452 + $0x4] sm:%s445]
                  %457 = vst [vmem:[%s453 + $0x4] sm:%s445] %v456
                  %v458 = vld [vmem:[%s452 + $0x8] sm:%s445]
                  %459 = vst [vmem:[%s453 + $0x8] sm:%s445] %v458
                  %v460 = vld [vmem:[%s452 + $0xc] sm:%s445]
                  %461 = vst [vmem:[%s453 + $0xc] sm:%s445] %v460
                  %v462 = vld [vmem:[%s452 + $0x10] sm:%s445]
                  %463 = vst [vmem:[%s453 + $0x10] sm:%s445] %v462
                  %v464 = vld [vmem:[%s452 + $0x14] sm:%s445]
                  %465 = vst [vmem:[%s453 + $0x14] sm:%s445] %v464
                  %v466 = vld [vmem:[%s452 + $0x18] sm:%s445]
                  %467 = vst [vmem:[%s453 + $0x18] sm:%s445] %v466
                  %v468 = vld [vmem:[%s452 + $0x1c] sm:%s445]
                  %469 = vst [vmem:[%s453 + $0x1c] sm:%s445] %v468
                  %v470 = vld [vmem:[%s452 + $0x20] sm:%s445]
                  %471 = vst [vmem:[%s453 + $0x20] sm:%s445] %v470
                  %v472 = vld [vmem:[%s452 + $0x24] sm:%s445]
                  %473 = vst [vmem:[%s453 + $0x24] sm:%s445] %v472
                  %v474 = vld [vmem:[%s452 + $0x28] sm:%s445]
                  %475 = vst [vmem:[%s453 + $0x28] sm:%s445] %v474
                  %v476 = vld [vmem:[%s452 + $0x2c] sm:%s445]
                  %477 = vst [vmem:[%s453 + $0x2c] sm:%s445] %v476
                  %v478 = vld [vmem:[%s452 + $0x30] sm:%s445]
                  %479 = vst [vmem:[%s453 + $0x30] sm:%s445] %v478
                  %v480 = vld [vmem:[%s452 + $0x34] sm:%s445]
                  %481 = vst [vmem:[%s453 + $0x34] sm:%s445] %v480
                  %v482 = vld [vmem:[%s452 + $0x38] sm:%s445]
                  %483 = vst [vmem:[%s453 + $0x38] sm:%s445] %v482
                  %v484 = vld [vmem:[%s452 + $0x3c] sm:%s445]
                  %485 = vst [vmem:[%s453 + $0x3c] sm:%s445] %v484
                  %v486 = vld [vmem:[%s452 + $0x80] sm:%s445]
                  %487 = vst [vmem:[%s453 + $0x40] sm:%s445] %v486
                  %v488 = vld [vmem:[%s452 + $0x84] sm:%s445]
                  %489 = vst [vmem:[%s453 + $0x44] sm:%s445] %v488
                  %v490 = vld [vmem:[%s452 + $0x88] sm:%s445]
                  %491 = vst [vmem:[%s453 + $0x48] sm:%s445] %v490
                  %v492 = vld [vmem:[%s452 + $0x8c] sm:%s445]
                  %493 = vst [vmem:[%s453 + $0x4c] sm:%s445] %v492
                  %v494 = vld [vmem:[%s452 + $0x90] sm:%s445]
                  %495 = vst [vmem:[%s453 + $0x50] sm:%s445] %v494
                  %v496 = vld [vmem:[%s452 + $0x94] sm:%s445]
                  %497 = vst [vmem:[%s453 + $0x54] sm:%s445] %v496
                  %v498 = vld [vmem:[%s452 + $0x98] sm:%s445]
                  %499 = vst [vmem:[%s453 + $0x58] sm:%s445] %v498
                  %v500 = vld [vmem:[%s452 + $0x9c] sm:%s445]
                  %501 = vst [vmem:[%s453 + $0x5c] sm:%s445] %v500
                  %v502 = vld [vmem:[%s452 + $0xa0] sm:%s445]
                  %503 = vst [vmem:[%s453 + $0x60] sm:%s445] %v502
                  %v504 = vld [vmem:[%s452 + $0xa4] sm:%s445]
                  %505 = vst [vmem:[%s453 + $0x64] sm:%s445] %v504
                  %v506 = vld [vmem:[%s452 + $0xa8] sm:%s445]
                  %507 = vst [vmem:[%s453 + $0x68] sm:%s445] %v506
                  %v508 = vld [vmem:[%s452 + $0xac] sm:%s445]
                  %509 = vst [vmem:[%s453 + $0x6c] sm:%s445] %v508
                  %v510 = vld [vmem:[%s452 + $0xb0] sm:%s445]
                  %511 = vst [vmem:[%s453 + $0x70] sm:%s445] %v510
                  %v512 = vld [vmem:[%s452 + $0xb4] sm:%s445]
                  %513 = vst [vmem:[%s453 + $0x74] sm:%s445] %v512
                  %v514 = vld [vmem:[%s452 + $0xb8] sm:%s445]
                  %515 = vst [vmem:[%s453 + $0x78] sm:%s445] %v514
                  %v516 = vld [vmem:[%s452 + $0xbc] sm:%s445]
                  %517 = vst [vmem:[%s453 + $0x7c] sm:%s445] %v516
                  %v518 = vld [vmem:[%s452 + $0x100] sm:%s445]
                  %519 = vst [vmem:[%s453 + $0x80] sm:%s445] %v518
                  %v520 = vld [vmem:[%s452 + $0x104] sm:%s445]
                  %521 = vst [vmem:[%s453 + $0x84] sm:%s445] %v520
                  %v522 = vld [vmem:[%s452 + $0x108] sm:%s445]
                  %523 = vst [vmem:[%s453 + $0x88] sm:%s445] %v522
                  %v524 = vld [vmem:[%s452 + $0x10c] sm:%s445]
                  %525 = vst [vmem:[%s453 + $0x8c] sm:%s445] %v524
                  %v526 = vld [vmem:[%s452 + $0x110] sm:%s445]
                  %527 = vst [vmem:[%s453 + $0x90] sm:%s445] %v526
                  %v528 = vld [vmem:[%s452 + $0x114] sm:%s445]
                  %529 = vst [vmem:[%s453 + $0x94] sm:%s445] %v528
                  %v530 = vld [vmem:[%s452 + $0x118] sm:%s445]
                  %531 = vst [vmem:[%s453 + $0x98] sm:%s445] %v530
                  %v532 = vld [vmem:[%s452 + $0x11c] sm:%s445]
                  %533 = vst [vmem:[%s453 + $0x9c] sm:%s445] %v532
                  %v534 = vld [vmem:[%s452 + $0x120] sm:%s445]
                  %535 = vst [vmem:[%s453 + $0xa0] sm:%s445] %v534
                  %v536 = vld [vmem:[%s452 + $0x124] sm:%s445]
                  %537 = vst [vmem:[%s453 + $0xa4] sm:%s445] %v536
                  %v538 = vld [vmem:[%s452 + $0x128] sm:%s445]
                  %539 = vst [vmem:[%s453 + $0xa8] sm:%s445] %v538
                  %v540 = vld [vmem:[%s452 + $0x12c] sm:%s445]
                  %541 = vst [vmem:[%s453 + $0xac] sm:%s445] %v540
                  %v542 = vld [vmem:[%s452 + $0x130] sm:%s445]
                  %543 = vst [vmem:[%s453 + $0xb0] sm:%s445] %v542
                  %v544 = vld [vmem:[%s452 + $0x134] sm:%s445]
                  %545 = vst [vmem:[%s453 + $0xb4] sm:%s445] %v544
                  %v546 = vld [vmem:[%s452 + $0x138] sm:%s445]
                  %547 = vst [vmem:[%s453 + $0xb8] sm:%s445] %v546
                  %v548 = vld [vmem:[%s452 + $0x13c] sm:%s445]
                  %549 = vst [vmem:[%s453 + $0xbc] sm:%s445] %v548
                  %v550 = vld [vmem:[%s452 + $0x180] sm:%s445]
                  %551 = vst [vmem:[%s453 + $0xc0] sm:%s445] %v550
                  %v552 = vld [vmem:[%s452 + $0x184] sm:%s445]
                  %553 = vst [vmem:[%s453 + $0xc4] sm:%s445] %v552
                  %v554 = vld [vmem:[%s452 + $0x188] sm:%s445]
                  %555 = vst [vmem:[%s453 + $0xc8] sm:%s445] %v554
                  %v556 = vld [vmem:[%s452 + $0x18c] sm:%s445]
                  %557 = vst [vmem:[%s453 + $0xcc] sm:%s445] %v556
                  %v558 = vld [vmem:[%s452 + $0x190] sm:%s445]
                  %559 = vst [vmem:[%s453 + $0xd0] sm:%s445] %v558
                  %v560 = vld [vmem:[%s452 + $0x194] sm:%s445]
                  %561 = vst [vmem:[%s453 + $0xd4] sm:%s445] %v560
                  %v562 = vld [vmem:[%s452 + $0x198] sm:%s445]
                  %563 = vst [vmem:[%s453 + $0xd8] sm:%s445] %v562
                  %v564 = vld [vmem:[%s452 + $0x19c] sm:%s445]
                  %565 = vst [vmem:[%s453 + $0xdc] sm:%s445] %v564
                  %v566 = vld [vmem:[%s452 + $0x1a0] sm:%s445]
                  %567 = vst [vmem:[%s453 + $0xe0] sm:%s445] %v566
                  %v568 = vld [vmem:[%s452 + $0x1a4] sm:%s445]
                  %569 = vst [vmem:[%s453 + $0xe4] sm:%s445] %v568
                  %v570 = vld [vmem:[%s452 + $0x1a8] sm:%s445]
                  %571 = vst [vmem:[%s453 + $0xe8] sm:%s445] %v570
                  %v572 = vld [vmem:[%s452 + $0x1ac] sm:%s445]
                  %573 = vst [vmem:[%s453 + $0xec] sm:%s445] %v572
                  %v574 = vld [vmem:[%s452 + $0x1b0] sm:%s445]
                  %575 = vst [vmem:[%s453 + $0xf0] sm:%s445] %v574
                  %v576 = vld [vmem:[%s452 + $0x1b4] sm:%s445]
                  %577 = vst [vmem:[%s453 + $0xf4] sm:%s445] %v576
                  %v578 = vld [vmem:[%s452 + $0x1b8] sm:%s445]
                  %579 = vst [vmem:[%s453 + $0xf8] sm:%s445] %v578
                  %v580 = vld [vmem:[%s452 + $0x1bc] sm:%s445]
                  %581 = vst [vmem:[%s453 + $0xfc] sm:%s445] %v580
                  %v582 = vld [vmem:[%s452 + $0x200] sm:%s445]
                  %583 = vst [vmem:[%s453 + $0x100] sm:%s445] %v582
                  %v584 = vld [vmem:[%s452 + $0x204] sm:%s445]
                  %585 = vst [vmem:[%s453 + $0x104] sm:%s445] %v584
                  %v586 = vld [vmem:[%s452 + $0x208] sm:%s445]
                  %587 = vst [vmem:[%s453 + $0x108] sm:%s445] %v586
                  %v588 = vld [vmem:[%s452 + $0x20c] sm:%s445]
                  %589 = vst [vmem:[%s453 + $0x10c] sm:%s445] %v588
                  %v590 = vld [vmem:[%s452 + $0x210] sm:%s445]
                  %591 = vst [vmem:[%s453 + $0x110] sm:%s445] %v590
                  %v592 = vld [vmem:[%s452 + $0x214] sm:%s445]
                  %593 = vst [vmem:[%s453 + $0x114] sm:%s445] %v592
                  %v594 = vld [vmem:[%s452 + $0x218] sm:%s445]
                  %595 = vst [vmem:[%s453 + $0x118] sm:%s445] %v594
                  %v596 = vld [vmem:[%s452 + $0x21c] sm:%s445]
                  %597 = vst [vmem:[%s453 + $0x11c] sm:%s445] %v596
                  %v598 = vld [vmem:[%s452 + $0x220] sm:%s445]
                  %599 = vst [vmem:[%s453 + $0x120] sm:%s445] %v598
                  %v600 = vld [vmem:[%s452 + $0x224] sm:%s445]
                  %601 = vst [vmem:[%s453 + $0x124] sm:%s445] %v600
                  %v602 = vld [vmem:[%s452 + $0x228] sm:%s445]
                  %603 = vst [vmem:[%s453 + $0x128] sm:%s445] %v602
                  %v604 = vld [vmem:[%s452 + $0x22c] sm:%s445]
                  %605 = vst [vmem:[%s453 + $0x12c] sm:%s445] %v604
                  %v606 = vld [vmem:[%s452 + $0x230] sm:%s445]
                  %607 = vst [vmem:[%s453 + $0x130] sm:%s445] %v606
                  %v608 = vld [vmem:[%s452 + $0x234] sm:%s445]
                  %609 = vst [vmem:[%s453 + $0x134] sm:%s445] %v608
                  %v610 = vld [vmem:[%s452 + $0x238] sm:%s445]
                  %611 = vst [vmem:[%s453 + $0x138] sm:%s445] %v610
                  %v612 = vld [vmem:[%s452 + $0x23c] sm:%s445]
                  %613 = vst [vmem:[%s453 + $0x13c] sm:%s445] %v612
                  %v614 = vld [vmem:[%s452 + $0x280] sm:%s445]
                  %615 = vst [vmem:[%s453 + $0x140] sm:%s445] %v614
                  %v616 = vld [vmem:[%s452 + $0x284] sm:%s445]
                  %617 = vst [vmem:[%s453 + $0x144] sm:%s445] %v616
                  %v618 = vld [vmem:[%s452 + $0x288] sm:%s445]
                  %619 = vst [vmem:[%s453 + $0x148] sm:%s445] %v618
                  %v620 = vld [vmem:[%s452 + $0x28c] sm:%s445]
                  %621 = vst [vmem:[%s453 + $0x14c] sm:%s445] %v620
                  %v622 = vld [vmem:[%s452 + $0x290] sm:%s445]
                  %623 = vst [vmem:[%s453 + $0x150] sm:%s445] %v622
                  %v624 = vld [vmem:[%s452 + $0x294] sm:%s445]
                  %625 = vst [vmem:[%s453 + $0x154] sm:%s445] %v624
                  %v626 = vld [vmem:[%s452 + $0x298] sm:%s445]
                  %627 = vst [vmem:[%s453 + $0x158] sm:%s445] %v626
                  %v628 = vld [vmem:[%s452 + $0x29c] sm:%s445]
                  %629 = vst [vmem:[%s453 + $0x15c] sm:%s445] %v628
                  %v630 = vld [vmem:[%s452 + $0x2a0] sm:%s445]
                  %631 = vst [vmem:[%s453 + $0x160] sm:%s445] %v630
                  %v632 = vld [vmem:[%s452 + $0x2a4] sm:%s445]
                  %633 = vst [vmem:[%s453 + $0x164] sm:%s445] %v632
                  %v634 = vld [vmem:[%s452 + $0x2a8] sm:%s445]
                  %635 = vst [vmem:[%s453 + $0x168] sm:%s445] %v634
                  %v636 = vld [vmem:[%s452 + $0x2ac] sm:%s445]
                  %637 = vst [vmem:[%s453 + $0x16c] sm:%s445] %v636
                  %v638 = vld [vmem:[%s452 + $0x2b0] sm:%s445]
                  %639 = vst [vmem:[%s453 + $0x170] sm:%s445] %v638
                  %v640 = vld [vmem:[%s452 + $0x2b4] sm:%s445]
                  %641 = vst [vmem:[%s453 + $0x174] sm:%s445] %v640
                  %v642 = vld [vmem:[%s452 + $0x2b8] sm:%s445]
                  %643 = vst [vmem:[%s453 + $0x178] sm:%s445] %v642
                  %v644 = vld [vmem:[%s452 + $0x2bc] sm:%s445]
                  %645 = vst [vmem:[%s453 + $0x17c] sm:%s445] %v644
                  %v646 = vld [vmem:[%s452 + $0x300] sm:%s445]
                  %647 = vst [vmem:[%s453 + $0x180] sm:%s445] %v646
                  %v648 = vld [vmem:[%s452 + $0x304] sm:%s445]
                  %649 = vst [vmem:[%s453 + $0x184] sm:%s445] %v648
                  %v650 = vld [vmem:[%s452 + $0x308] sm:%s445]
                  %651 = vst [vmem:[%s453 + $0x188] sm:%s445] %v650
                  %v652 = vld [vmem:[%s452 + $0x30c] sm:%s445]
                  %653 = vst [vmem:[%s453 + $0x18c] sm:%s445] %v652
                  %v654 = vld [vmem:[%s452 + $0x310] sm:%s445]
                  %655 = vst [vmem:[%s453 + $0x190] sm:%s445] %v654
                  %v656 = vld [vmem:[%s452 + $0x314] sm:%s445]
                  %657 = vst [vmem:[%s453 + $0x194] sm:%s445] %v656
                  %v658 = vld [vmem:[%s452 + $0x318] sm:%s445]
                  %659 = vst [vmem:[%s453 + $0x198] sm:%s445] %v658
                  %v660 = vld [vmem:[%s452 + $0x31c] sm:%s445]
                  %661 = vst [vmem:[%s453 + $0x19c] sm:%s445] %v660
                  %v662 = vld [vmem:[%s452 + $0x320] sm:%s445]
                  %663 = vst [vmem:[%s453 + $0x1a0] sm:%s445] %v662
                  %v664 = vld [vmem:[%s452 + $0x324] sm:%s445]
                  %665 = vst [vmem:[%s453 + $0x1a4] sm:%s445] %v664
                  %v666 = vld [vmem:[%s452 + $0x328] sm:%s445]
                  %667 = vst [vmem:[%s453 + $0x1a8] sm:%s445] %v666
                  %v668 = vld [vmem:[%s452 + $0x32c] sm:%s445]
                  %669 = vst [vmem:[%s453 + $0x1ac] sm:%s445] %v668
                  %v670 = vld [vmem:[%s452 + $0x330] sm:%s445]
                  %671 = vst [vmem:[%s453 + $0x1b0] sm:%s445] %v670
                  %v672 = vld [vmem:[%s452 + $0x334] sm:%s445]
                  %673 = vst [vmem:[%s453 + $0x1b4] sm:%s445] %v672
                  %v674 = vld [vmem:[%s452 + $0x338] sm:%s445]
                  %675 = vst [vmem:[%s453 + $0x1b8] sm:%s445] %v674
                  %v676 = vld [vmem:[%s452 + $0x33c] sm:%s445]
                  %677 = vst [vmem:[%s453 + $0x1bc] sm:%s445] %v676
                  %v678 = vld [vmem:[%s452 + $0x380] sm:%s445]
                  %679 = vst [vmem:[%s453 + $0x1c0] sm:%s445] %v678
                  %v680 = vld [vmem:[%s452 + $0x384] sm:%s445]
                  %681 = vst [vmem:[%s453 + $0x1c4] sm:%s445] %v680
                  %v682 = vld [vmem:[%s452 + $0x388] sm:%s445]
                  %683 = vst [vmem:[%s453 + $0x1c8] sm:%s445] %v682
                  %v684 = vld [vmem:[%s452 + $0x38c] sm:%s445]
                  %685 = vst [vmem:[%s453 + $0x1cc] sm:%s445] %v684
                  %v686 = vld [vmem:[%s452 + $0x390] sm:%s445]
                  %687 = vst [vmem:[%s453 + $0x1d0] sm:%s445] %v686
                  %v688 = vld [vmem:[%s452 + $0x394] sm:%s445]
                  %689 = vst [vmem:[%s453 + $0x1d4] sm:%s445] %v688
                  %v690 = vld [vmem:[%s452 + $0x398] sm:%s445]
                  %691 = vst [vmem:[%s453 + $0x1d8] sm:%s445] %v690
                  %v692 = vld [vmem:[%s452 + $0x39c] sm:%s445]
                  %693 = vst [vmem:[%s453 + $0x1dc] sm:%s445] %v692
                  %v694 = vld [vmem:[%s452 + $0x3a0] sm:%s445]
                  %695 = vst [vmem:[%s453 + $0x1e0] sm:%s445] %v694
                  %v696 = vld [vmem:[%s452 + $0x3a4] sm:%s445]
                  %697 = vst [vmem:[%s453 + $0x1e4] sm:%s445] %v696
                  %v698 = vld [vmem:[%s452 + $0x3a8] sm:%s445]
                  %699 = vst [vmem:[%s453 + $0x1e8] sm:%s445] %v698
                  %v700 = vld [vmem:[%s452 + $0x3ac] sm:%s445]
                  %701 = vst [vmem:[%s453 + $0x1ec] sm:%s445] %v700
                  %v702 = vld [vmem:[%s452 + $0x3b0] sm:%s445]
                  %703 = vst [vmem:[%s453 + $0x1f0] sm:%s445] %v702
                  %v704 = vld [vmem:[%s452 + $0x3b4] sm:%s445]
                  %705 = vst [vmem:[%s453 + $0x1f4] sm:%s445] %v704
                  %v706 = vld [vmem:[%s452 + $0x3b8] sm:%s445]
                  %707 = vst [vmem:[%s453 + $0x1f8] sm:%s445] %v706
                  %v708 = vld [vmem:[%s452 + $0x3bc] sm:%s445]
                  %709 = vst [vmem:[%s453 + $0x1fc] sm:%s445] %v708
                $region63: #{tpu_custom_call.1} parent=50 // loop_footer
                  %s451 = sadd.s32 1, %s447
                $region64: #{tpu_custom_call.1} parent=50 // loop_footer_branch
                  %446 = sbr.rel target = $region60
                $region65: #{tpu_custom_call.1} parent=50 // loop_exit
                  _
              $region51: #{tpu_custom_call.1} parent=35 // pred_fallthru
                _
            $region36: #{tpu_custom_call.1} parent=31 // pred_fallthru
              _
            // Predicated region
            $region37: #{tpu_custom_call.1} parent=31 // pred_check
              _
            $region38: #{tpu_custom_call.1} parent=31 // pred_check_branch
              %167 = sbr.rel (0) target = $region40
            $region39: #{tpu_custom_call.1} parent=31 // pred_region
              %s169 = ssub.s32 16, 1
              loop: start=0, step=1, limit=1
              $region41: #{tpu_custom_call.1} parent=39 // loop_pre_header
                _
              $region42: #{tpu_custom_call.1} parent=39 // loop_header
                %s171 = sphi 0, %s175
                %p172 = scmp.ge.s32.totalorder %s171, 1
                %s176 = sphi %s161, %s161
                %s177 = sphi %s155, %s155
              $region43: #{tpu_custom_call.1} parent=39 // loop_header_branch
                %174 = sbr.rel (%p172) target = $region47
              $region44: #{tpu_custom_call.1} parent=39 // loop_body
                %v178 = vld [vmem:[%s176] sm:%s169]
                %179 = vst [vmem:[%s177] sm:%s169] %v178
                %v180 = vld [vmem:[%s176 + $0x4] sm:%s169]
                %181 = vst [vmem:[%s177 + $0x4] sm:%s169] %v180
                %v182 = vld [vmem:[%s176 + $0x8] sm:%s169]
                %183 = vst [vmem:[%s177 + $0x8] sm:%s169] %v182
                %v184 = vld [vmem:[%s176 + $0xc] sm:%s169]
                %185 = vst [vmem:[%s177 + $0xc] sm:%s169] %v184
                %v186 = vld [vmem:[%s176 + $0x10] sm:%s169]
                %187 = vst [vmem:[%s177 + $0x10] sm:%s169] %v186
                %v188 = vld [vmem:[%s176 + $0x14] sm:%s169]
                %189 = vst [vmem:[%s177 + $0x14] sm:%s169] %v188
                %v190 = vld [vmem:[%s176 + $0x18] sm:%s169]
                %191 = vst [vmem:[%s177 + $0x18] sm:%s169] %v190
                %v192 = vld [vmem:[%s176 + $0x1c] sm:%s169]
                %193 = vst [vmem:[%s177 + $0x1c] sm:%s169] %v192
                %v194 = vld [vmem:[%s176 + $0x20] sm:%s169]
                %195 = vst [vmem:[%s177 + $0x20] sm:%s169] %v194
                %v196 = vld [vmem:[%s176 + $0x24] sm:%s169]
                %197 = vst [vmem:[%s177 + $0x24] sm:%s169] %v196
                %v198 = vld [vmem:[%s176 + $0x28] sm:%s169]
                %199 = vst [vmem:[%s177 + $0x28] sm:%s169] %v198
                %v200 = vld [vmem:[%s176 + $0x2c] sm:%s169]
                %201 = vst [vmem:[%s177 + $0x2c] sm:%s169] %v200
                %v202 = vld [vmem:[%s176 + $0x30] sm:%s169]
                %203 = vst [vmem:[%s177 + $0x30] sm:%s169] %v202
                %v204 = vld [vmem:[%s176 + $0x34] sm:%s169]
                %205 = vst [vmem:[%s177 + $0x34] sm:%s169] %v204
                %v206 = vld [vmem:[%s176 + $0x38] sm:%s169]
                %207 = vst [vmem:[%s177 + $0x38] sm:%s169] %v206
                %v208 = vld [vmem:[%s176 + $0x3c] sm:%s169]
                %209 = vst [vmem:[%s177 + $0x3c] sm:%s169] %v208
                %v210 = vld [vmem:[%s176 + $0x80] sm:%s169]
                %211 = vst [vmem:[%s177 + $0x40] sm:%s169] %v210
                %v212 = vld [vmem:[%s176 + $0x84] sm:%s169]
                %213 = vst [vmem:[%s177 + $0x44] sm:%s169] %v212
                %v214 = vld [vmem:[%s176 + $0x88] sm:%s169]
                %215 = vst [vmem:[%s177 + $0x48] sm:%s169] %v214
                %v216 = vld [vmem:[%s176 + $0x8c] sm:%s169]
                %217 = vst [vmem:[%s177 + $0x4c] sm:%s169] %v216
                %v218 = vld [vmem:[%s176 + $0x90] sm:%s169]
                %219 = vst [vmem:[%s177 + $0x50] sm:%s169] %v218
                %v220 = vld [vmem:[%s176 + $0x94] sm:%s169]
                %221 = vst [vmem:[%s177 + $0x54] sm:%s169] %v220
                %v222 = vld [vmem:[%s176 + $0x98] sm:%s169]
                %223 = vst [vmem:[%s177 + $0x58] sm:%s169] %v222
                %v224 = vld [vmem:[%s176 + $0x9c] sm:%s169]
                %225 = vst [vmem:[%s177 + $0x5c] sm:%s169] %v224
                %v226 = vld [vmem:[%s176 + $0xa0] sm:%s169]
                %227 = vst [vmem:[%s177 + $0x60] sm:%s169] %v226
                %v228 = vld [vmem:[%s176 + $0xa4] sm:%s169]
                %229 = vst [vmem:[%s177 + $0x64] sm:%s169] %v228
                %v230 = vld [vmem:[%s176 + $0xa8] sm:%s169]
                %231 = vst [vmem:[%s177 + $0x68] sm:%s169] %v230
                %v232 = vld [vmem:[%s176 + $0xac] sm:%s169]
                %233 = vst [vmem:[%s177 + $0x6c] sm:%s169] %v232
                %v234 = vld [vmem:[%s176 + $0xb0] sm:%s169]
                %235 = vst [vmem:[%s177 + $0x70] sm:%s169] %v234
                %v236 = vld [vmem:[%s176 + $0xb4] sm:%s169]
                %237 = vst [vmem:[%s177 + $0x74] sm:%s169] %v236
                %v238 = vld [vmem:[%s176 + $0xb8] sm:%s169]
                %239 = vst [vmem:[%s177 + $0x78] sm:%s169] %v238
                %v240 = vld [vmem:[%s176 + $0xbc] sm:%s169]
                %241 = vst [vmem:[%s177 + $0x7c] sm:%s169] %v240
                %v242 = vld [vmem:[%s176 + $0x100] sm:%s169]
                %243 = vst [vmem:[%s177 + $0x80] sm:%s169] %v242
                %v244 = vld [vmem:[%s176 + $0x104] sm:%s169]
                %245 = vst [vmem:[%s177 + $0x84] sm:%s169] %v244
                %v246 = vld [vmem:[%s176 + $0x108] sm:%s169]
                %247 = vst [vmem:[%s177 + $0x88] sm:%s169] %v246
                %v248 = vld [vmem:[%s176 + $0x10c] sm:%s169]
                %249 = vst [vmem:[%s177 + $0x8c] sm:%s169] %v248
                %v250 = vld [vmem:[%s176 + $0x110] sm:%s169]
                %251 = vst [vmem:[%s177 + $0x90] sm:%s169] %v250
                %v252 = vld [vmem:[%s176 + $0x114] sm:%s169]
                %253 = vst [vmem:[%s177 + $0x94] sm:%s169] %v252
                %v254 = vld [vmem:[%s176 + $0x118] sm:%s169]
                %255 = vst [vmem:[%s177 + $0x98] sm:%s169] %v254
                %v256 = vld [vmem:[%s176 + $0x11c] sm:%s169]
                %257 = vst [vmem:[%s177 + $0x9c] sm:%s169] %v256
                %v258 = vld [vmem:[%s176 + $0x120] sm:%s169]
                %259 = vst [vmem:[%s177 + $0xa0] sm:%s169] %v258
                %v260 = vld [vmem:[%s176 + $0x124] sm:%s169]
                %261 = vst [vmem:[%s177 + $0xa4] sm:%s169] %v260
                %v262 = vld [vmem:[%s176 + $0x128] sm:%s169]
                %263 = vst [vmem:[%s177 + $0xa8] sm:%s169] %v262
                %v264 = vld [vmem:[%s176 + $0x12c] sm:%s169]
                %265 = vst [vmem:[%s177 + $0xac] sm:%s169] %v264
                %v266 = vld [vmem:[%s176 + $0x130] sm:%s169]
                %267 = vst [vmem:[%s177 + $0xb0] sm:%s169] %v266
                %v268 = vld [vmem:[%s176 + $0x134] sm:%s169]
                %269 = vst [vmem:[%s177 + $0xb4] sm:%s169] %v268
                %v270 = vld [vmem:[%s176 + $0x138] sm:%s169]
                %271 = vst [vmem:[%s177 + $0xb8] sm:%s169] %v270
                %v272 = vld [vmem:[%s176 + $0x13c] sm:%s169]
                %273 = vst [vmem:[%s177 + $0xbc] sm:%s169] %v272
                %v274 = vld [vmem:[%s176 + $0x180] sm:%s169]
                %275 = vst [vmem:[%s177 + $0xc0] sm:%s169] %v274
                %v276 = vld [vmem:[%s176 + $0x184] sm:%s169]
                %277 = vst [vmem:[%s177 + $0xc4] sm:%s169] %v276
                %v278 = vld [vmem:[%s176 + $0x188] sm:%s169]
                %279 = vst [vmem:[%s177 + $0xc8] sm:%s169] %v278
                %v280 = vld [vmem:[%s176 + $0x18c] sm:%s169]
                %281 = vst [vmem:[%s177 + $0xcc] sm:%s169] %v280
                %v282 = vld [vmem:[%s176 + $0x190] sm:%s169]
                %283 = vst [vmem:[%s177 + $0xd0] sm:%s169] %v282
                %v284 = vld [vmem:[%s176 + $0x194] sm:%s169]
                %285 = vst [vmem:[%s177 + $0xd4] sm:%s169] %v284
                %v286 = vld [vmem:[%s176 + $0x198] sm:%s169]
                %287 = vst [vmem:[%s177 + $0xd8] sm:%s169] %v286
                %v288 = vld [vmem:[%s176 + $0x19c] sm:%s169]
                %289 = vst [vmem:[%s177 + $0xdc] sm:%s169] %v288
                %v290 = vld [vmem:[%s176 + $0x1a0] sm:%s169]
                %291 = vst [vmem:[%s177 + $0xe0] sm:%s169] %v290
                %v292 = vld [vmem:[%s176 + $0x1a4] sm:%s169]
                %293 = vst [vmem:[%s177 + $0xe4] sm:%s169] %v292
                %v294 = vld [vmem:[%s176 + $0x1a8] sm:%s169]
                %295 = vst [vmem:[%s177 + $0xe8] sm:%s169] %v294
                %v296 = vld [vmem:[%s176 + $0x1ac] sm:%s169]
                %297 = vst [vmem:[%s177 + $0xec] sm:%s169] %v296
                %v298 = vld [vmem:[%s176 + $0x1b0] sm:%s169]
                %299 = vst [vmem:[%s177 + $0xf0] sm:%s169] %v298
                %v300 = vld [vmem:[%s176 + $0x1b4] sm:%s169]
                %301 = vst [vmem:[%s177 + $0xf4] sm:%s169] %v300
                %v302 = vld [vmem:[%s176 + $0x1b8] sm:%s169]
                %303 = vst [vmem:[%s177 + $0xf8] sm:%s169] %v302
                %v304 = vld [vmem:[%s176 + $0x1bc] sm:%s169]
                %305 = vst [vmem:[%s177 + $0xfc] sm:%s169] %v304
                %v306 = vld [vmem:[%s176 + $0x200] sm:%s169]
                %307 = vst [vmem:[%s177 + $0x100] sm:%s169] %v306
                %v308 = vld [vmem:[%s176 + $0x204] sm:%s169]
                %309 = vst [vmem:[%s177 + $0x104] sm:%s169] %v308
                %v310 = vld [vmem:[%s176 + $0x208] sm:%s169]
                %311 = vst [vmem:[%s177 + $0x108] sm:%s169] %v310
                %v312 = vld [vmem:[%s176 + $0x20c] sm:%s169]
                %313 = vst [vmem:[%s177 + $0x10c] sm:%s169] %v312
                %v314 = vld [vmem:[%s176 + $0x210] sm:%s169]
                %315 = vst [vmem:[%s177 + $0x110] sm:%s169] %v314
                %v316 = vld [vmem:[%s176 + $0x214] sm:%s169]
                %317 = vst [vmem:[%s177 + $0x114] sm:%s169] %v316
                %v318 = vld [vmem:[%s176 + $0x218] sm:%s169]
                %319 = vst [vmem:[%s177 + $0x118] sm:%s169] %v318
                %v320 = vld [vmem:[%s176 + $0x21c] sm:%s169]
                %321 = vst [vmem:[%s177 + $0x11c] sm:%s169] %v320
                %v322 = vld [vmem:[%s176 + $0x220] sm:%s169]
                %323 = vst [vmem:[%s177 + $0x120] sm:%s169] %v322
                %v324 = vld [vmem:[%s176 + $0x224] sm:%s169]
                %325 = vst [vmem:[%s177 + $0x124] sm:%s169] %v324
                %v326 = vld [vmem:[%s176 + $0x228] sm:%s169]
                %327 = vst [vmem:[%s177 + $0x128] sm:%s169] %v326
                %v328 = vld [vmem:[%s176 + $0x22c] sm:%s169]
                %329 = vst [vmem:[%s177 + $0x12c] sm:%s169] %v328
                %v330 = vld [vmem:[%s176 + $0x230] sm:%s169]
                %331 = vst [vmem:[%s177 + $0x130] sm:%s169] %v330
                %v332 = vld [vmem:[%s176 + $0x234] sm:%s169]
                %333 = vst [vmem:[%s177 + $0x134] sm:%s169] %v332
                %v334 = vld [vmem:[%s176 + $0x238] sm:%s169]
                %335 = vst [vmem:[%s177 + $0x138] sm:%s169] %v334
                %v336 = vld [vmem:[%s176 + $0x23c] sm:%s169]
                %337 = vst [vmem:[%s177 + $0x13c] sm:%s169] %v336
                %v338 = vld [vmem:[%s176 + $0x280] sm:%s169]
                %339 = vst [vmem:[%s177 + $0x140] sm:%s169] %v338
                %v340 = vld [vmem:[%s176 + $0x284] sm:%s169]
                %341 = vst [vmem:[%s177 + $0x144] sm:%s169] %v340
                %v342 = vld [vmem:[%s176 + $0x288] sm:%s169]
                %343 = vst [vmem:[%s177 + $0x148] sm:%s169] %v342
                %v344 = vld [vmem:[%s176 + $0x28c] sm:%s169]
                %345 = vst [vmem:[%s177 + $0x14c] sm:%s169] %v344
                %v346 = vld [vmem:[%s176 + $0x290] sm:%s169]
                %347 = vst [vmem:[%s177 + $0x150] sm:%s169] %v346
                %v348 = vld [vmem:[%s176 + $0x294] sm:%s169]
                %349 = vst [vmem:[%s177 + $0x154] sm:%s169] %v348
                %v350 = vld [vmem:[%s176 + $0x298] sm:%s169]
                %351 = vst [vmem:[%s177 + $0x158] sm:%s169] %v350
                %v352 = vld [vmem:[%s176 + $0x29c] sm:%s169]
                %353 = vst [vmem:[%s177 + $0x15c] sm:%s169] %v352
                %v354 = vld [vmem:[%s176 + $0x2a0] sm:%s169]
                %355 = vst [vmem:[%s177 + $0x160] sm:%s169] %v354
                %v356 = vld [vmem:[%s176 + $0x2a4] sm:%s169]
                %357 = vst [vmem:[%s177 + $0x164] sm:%s169] %v356
                %v358 = vld [vmem:[%s176 + $0x2a8] sm:%s169]
                %359 = vst [vmem:[%s177 + $0x168] sm:%s169] %v358
                %v360 = vld [vmem:[%s176 + $0x2ac] sm:%s169]
                %361 = vst [vmem:[%s177 + $0x16c] sm:%s169] %v360
                %v362 = vld [vmem:[%s176 + $0x2b0] sm:%s169]
                %363 = vst [vmem:[%s177 + $0x170] sm:%s169] %v362
                %v364 = vld [vmem:[%s176 + $0x2b4] sm:%s169]
                %365 = vst [vmem:[%s177 + $0x174] sm:%s169] %v364
                %v366 = vld [vmem:[%s176 + $0x2b8] sm:%s169]
                %367 = vst [vmem:[%s177 + $0x178] sm:%s169] %v366
                %v368 = vld [vmem:[%s176 + $0x2bc] sm:%s169]
                %369 = vst [vmem:[%s177 + $0x17c] sm:%s169] %v368
                %v370 = vld [vmem:[%s176 + $0x300] sm:%s169]
                %371 = vst [vmem:[%s177 + $0x180] sm:%s169] %v370
                %v372 = vld [vmem:[%s176 + $0x304] sm:%s169]
                %373 = vst [vmem:[%s177 + $0x184] sm:%s169] %v372
                %v374 = vld [vmem:[%s176 + $0x308] sm:%s169]
                %375 = vst [vmem:[%s177 + $0x188] sm:%s169] %v374
                %v376 = vld [vmem:[%s176 + $0x30c] sm:%s169]
                %377 = vst [vmem:[%s177 + $0x18c] sm:%s169] %v376
                %v378 = vld [vmem:[%s176 + $0x310] sm:%s169]
                %379 = vst [vmem:[%s177 + $0x190] sm:%s169] %v378
                %v380 = vld [vmem:[%s176 + $0x314] sm:%s169]
                %381 = vst [vmem:[%s177 + $0x194] sm:%s169] %v380
                %v382 = vld [vmem:[%s176 + $0x318] sm:%s169]
                %383 = vst [vmem:[%s177 + $0x198] sm:%s169] %v382
                %v384 = vld [vmem:[%s176 + $0x31c] sm:%s169]
                %385 = vst [vmem:[%s177 + $0x19c] sm:%s169] %v384
                %v386 = vld [vmem:[%s176 + $0x320] sm:%s169]
                %387 = vst [vmem:[%s177 + $0x1a0] sm:%s169] %v386
                %v388 = vld [vmem:[%s176 + $0x324] sm:%s169]
                %389 = vst [vmem:[%s177 + $0x1a4] sm:%s169] %v388
                %v390 = vld [vmem:[%s176 + $0x328] sm:%s169]
                %391 = vst [vmem:[%s177 + $0x1a8] sm:%s169] %v390
                %v392 = vld [vmem:[%s176 + $0x32c] sm:%s169]
                %393 = vst [vmem:[%s177 + $0x1ac] sm:%s169] %v392
                %v394 = vld [vmem:[%s176 + $0x330] sm:%s169]
                %395 = vst [vmem:[%s177 + $0x1b0] sm:%s169] %v394
                %v396 = vld [vmem:[%s176 + $0x334] sm:%s169]
                %397 = vst [vmem:[%s177 + $0x1b4] sm:%s169] %v396
                %v398 = vld [vmem:[%s176 + $0x338] sm:%s169]
                %399 = vst [vmem:[%s177 + $0x1b8] sm:%s169] %v398
                %v400 = vld [vmem:[%s176 + $0x33c] sm:%s169]
                %401 = vst [vmem:[%s177 + $0x1bc] sm:%s169] %v400
                %v402 = vld [vmem:[%s176 + $0x380] sm:%s169]
                %403 = vst [vmem:[%s177 + $0x1c0] sm:%s169] %v402
                %v404 = vld [vmem:[%s176 + $0x384] sm:%s169]
                %405 = vst [vmem:[%s177 + $0x1c4] sm:%s169] %v404
                %v406 = vld [vmem:[%s176 + $0x388] sm:%s169]
                %407 = vst [vmem:[%s177 + $0x1c8] sm:%s169] %v406
                %v408 = vld [vmem:[%s176 + $0x38c] sm:%s169]
                %409 = vst [vmem:[%s177 + $0x1cc] sm:%s169] %v408
                %v410 = vld [vmem:[%s176 + $0x390] sm:%s169]
                %411 = vst [vmem:[%s177 + $0x1d0] sm:%s169] %v410
                %v412 = vld [vmem:[%s176 + $0x394] sm:%s169]
                %413 = vst [vmem:[%s177 + $0x1d4] sm:%s169] %v412
                %v414 = vld [vmem:[%s176 + $0x398] sm:%s169]
                %415 = vst [vmem:[%s177 + $0x1d8] sm:%s169] %v414
                %v416 = vld [vmem:[%s176 + $0x39c] sm:%s169]
                %417 = vst [vmem:[%s177 + $0x1dc] sm:%s169] %v416
                %v418 = vld [vmem:[%s176 + $0x3a0] sm:%s169]
                %419 = vst [vmem:[%s177 + $0x1e0] sm:%s169] %v418
                %v420 = vld [vmem:[%s176 + $0x3a4] sm:%s169]
                %421 = vst [vmem:[%s177 + $0x1e4] sm:%s169] %v420
                %v422 = vld [vmem:[%s176 + $0x3a8] sm:%s169]
                %423 = vst [vmem:[%s177 + $0x1e8] sm:%s169] %v422
                %v424 = vld [vmem:[%s176 + $0x3ac] sm:%s169]
                %425 = vst [vmem:[%s177 + $0x1ec] sm:%s169] %v424
                %v426 = vld [vmem:[%s176 + $0x3b0] sm:%s169]
                %427 = vst [vmem:[%s177 + $0x1f0] sm:%s169] %v426
                %v428 = vld [vmem:[%s176 + $0x3b4] sm:%s169]
                %429 = vst [vmem:[%s177 + $0x1f4] sm:%s169] %v428
                %v430 = vld [vmem:[%s176 + $0x3b8] sm:%s169]
                %431 = vst [vmem:[%s177 + $0x1f8] sm:%s169] %v430
                %v432 = vld [vmem:[%s176 + $0x3bc] sm:%s169]
                %433 = vst [vmem:[%s177 + $0x1fc] sm:%s169] %v432
              $region45: #{tpu_custom_call.1} parent=39 // loop_footer
                %s175 = sadd.s32 1, %s171
              $region46: #{tpu_custom_call.1} parent=39 // loop_footer_branch
                %170 = sbr.rel target = $region42
              $region47: #{tpu_custom_call.1} parent=39 // loop_exit
                _
            $region40: #{tpu_custom_call.1} parent=31 // pred_fallthru
              _
          $region32: #{tpu_custom_call.1} parent=27 // pred_fallthru
            _
          %710 = vnop
        $region28: #{tpu_custom_call.1} parent=23 // pred_fallthru
          _
      $region24: #{tpu_custom_call.1} parent=5 // pred_fallthru
        _
      %p711 = scmp.le.s32.totalorder 1, %s16
      %p712 = scmp.lt.s32.totalorder %s16, 3
      %p713 = pnand %p711, %p712
      %p714 = pneg %p713
      // Predicated region
      $region66: #{tpu_custom_call.1} parent=5 // pred_check
        _
      $region67: #{tpu_custom_call.1} parent=5 // pred_check_branch
        %716 = sbr.rel (%p713) target = $region69
      $region68: #{tpu_custom_call.1} parent=5 // pred_region
        %s717 = ssub.s32 %s16, 1
        %s718 = sand.u32 %s43, 1
        %s719 = sand.u32 %s43, 1
        %s720 = smul.addr %s719, 512
        %s721 = scalar_lea.vmem [#allocation10], %s720
        // Predicated region
        $region70: #{tpu_custom_call.1} parent=68 // pred_check
          %p722 = pneg %p56
        $region71: #{tpu_custom_call.1} parent=68 // pred_check_branch
          %724 = sbr.rel (%p722) target = $region73
        $region72: #{tpu_custom_call.1} parent=68 // pred_region
          _
        $region73: #{tpu_custom_call.1} parent=68 // pred_fallthru
          _
        %s725 = sand.u32 %s43, 1
        %s726 = sand.u32 %s43, 1
        %s727 = smul.addr %s726, 512
        %s728 = scalar_lea.vmem [#allocation10], %s727
        %p729 = pneg %p56
        %p730 = pneg %p53
        %p731 = pneg %p77
        %p732 = pneg %p74
        %p733 = pneg %p98
        %p734 = pneg %p95
        %p735 = pneg %p124
        %p736 = pneg %p121
        %s737 = smul.u32 8, %s25
        %s738 = smul.u32 16, %s26
        %p740 = scmp.eq.s32.totalorder %s26, 0
        // Predicated region
        $region74: #{tpu_custom_call.1} parent=68 // pred_check
          %p741 = pneg %p740
        $region75: #{tpu_custom_call.1} parent=68 // pred_check_branch
          %743 = sbr.rel (%p741) target = $region77
        $region76: #{tpu_custom_call.1} parent=68 // pred_region
          %744 = vst [vmem:[#allocation2] sm:$0xff] 0.0
          %p746 = scmp.lt.u32.totalorder 256, 8
          %p747 = pneg %p746
          // Predicated region
          $region78: #{tpu_custom_call.1} parent=76 // pred_check
            _
          $region79: #{tpu_custom_call.1} parent=76 // pred_check_branch
            %749 = sbr.rel (%p746) target = $region81
          $region80: #{tpu_custom_call.1} parent=76 // pred_region
            %s765 = sand.u32 256, 7
            %p766 = scmp.eq.s32.totalorder %s765, 0
            // Predicated region
            $region93: #{tpu_custom_call.1} parent=80 // pred_check
              %p767 = pneg %p766
            $region94: #{tpu_custom_call.1} parent=80 // pred_check_branch
              %769 = sbr.rel (%p767) target = $region96
            $region95: #{tpu_custom_call.1} parent=80 // pred_region
              loop: start=0, step=1, limit=1
              $region97: #{tpu_custom_call.1} parent=95 // loop_pre_header
                _
              $region98: #{tpu_custom_call.1} parent=95 // loop_header
                %s771 = sphi 0, %s775
                %p772 = scmp.ge.s32.totalorder %s771, 1
                %s776 = sphi %s3, %s3
                %s777 = sphi [#allocation3], [#allocation3]
              $region99: #{tpu_custom_call.1} parent=95 // loop_header_branch
                %774 = sbr.rel (%p772) target = $region103
              $region100: #{tpu_custom_call.1} parent=95 // loop_body
                %v778 = vld [vmem:[%s776] sm:$0xff]
                %779 = vst [vmem:[%s777] sm:$0xff] %v778
                %v780 = vld [vmem:[%s776 + $0x8] sm:$0xff]
                %781 = vst [vmem:[%s777 + $0x8] sm:$0xff] %v780
                %v782 = vld [vmem:[%s776 + $0x10] sm:$0xff]
                %783 = vst [vmem:[%s777 + $0x10] sm:$0xff] %v782
                %v784 = vld [vmem:[%s776 + $0x18] sm:$0xff]
                %785 = vst [vmem:[%s777 + $0x18] sm:$0xff] %v784
                %v786 = vld [vmem:[%s776 + $0x20] sm:$0xff]
                %787 = vst [vmem:[%s777 + $0x20] sm:$0xff] %v786
                %v788 = vld [vmem:[%s776 + $0x28] sm:$0xff]
                %789 = vst [vmem:[%s777 + $0x28] sm:$0xff] %v788
                %v790 = vld [vmem:[%s776 + $0x30] sm:$0xff]
                %791 = vst [vmem:[%s777 + $0x30] sm:$0xff] %v790
                %v792 = vld [vmem:[%s776 + $0x38] sm:$0xff]
                %793 = vst [vmem:[%s777 + $0x38] sm:$0xff] %v792
                %v794 = vld [vmem:[%s776 + $0x40] sm:$0xff]
                %795 = vst [vmem:[%s777 + $0x40] sm:$0xff] %v794
                %v796 = vld [vmem:[%s776 + $0x48] sm:$0xff]
                %797 = vst [vmem:[%s777 + $0x48] sm:$0xff] %v796
                %v798 = vld [vmem:[%s776 + $0x50] sm:$0xff]
                %799 = vst [vmem:[%s777 + $0x50] sm:$0xff] %v798
                %v800 = vld [vmem:[%s776 + $0x58] sm:$0xff]
                %801 = vst [vmem:[%s777 + $0x58] sm:$0xff] %v800
                %v802 = vld [vmem:[%s776 + $0x60] sm:$0xff]
                %803 = vst [vmem:[%s777 + $0x60] sm:$0xff] %v802
                %v804 = vld [vmem:[%s776 + $0x68] sm:$0xff]
                %805 = vst [vmem:[%s777 + $0x68] sm:$0xff] %v804
                %v806 = vld [vmem:[%s776 + $0x70] sm:$0xff]
                %807 = vst [vmem:[%s777 + $0x70] sm:$0xff] %v806
                %v808 = vld [vmem:[%s776 + $0x78] sm:$0xff]
                %809 = vst [vmem:[%s777 + $0x78] sm:$0xff] %v808
                %v810 = vld [vmem:[%s776 + $0x80] sm:$0xff]
                %811 = vst [vmem:[%s777 + $0x80] sm:$0xff] %v810
                %v812 = vld [vmem:[%s776 + $0x88] sm:$0xff]
                %813 = vst [vmem:[%s777 + $0x88] sm:$0xff] %v812
                %v814 = vld [vmem:[%s776 + $0x90] sm:$0xff]
                %815 = vst [vmem:[%s777 + $0x90] sm:$0xff] %v814
                %v816 = vld [vmem:[%s776 + $0x98] sm:$0xff]
                %817 = vst [vmem:[%s777 + $0x98] sm:$0xff] %v816
                %v818 = vld [vmem:[%s776 + $0xa0] sm:$0xff]
                %819 = vst [vmem:[%s777 + $0xa0] sm:$0xff] %v818
                %v820 = vld [vmem:[%s776 + $0xa8] sm:$0xff]
                %821 = vst [vmem:[%s777 + $0xa8] sm:$0xff] %v820
                %v822 = vld [vmem:[%s776 + $0xb0] sm:$0xff]
                %823 = vst [vmem:[%s777 + $0xb0] sm:$0xff] %v822
                %v824 = vld [vmem:[%s776 + $0xb8] sm:$0xff]
                %825 = vst [vmem:[%s777 + $0xb8] sm:$0xff] %v824
                %v826 = vld [vmem:[%s776 + $0xc0] sm:$0xff]
                %827 = vst [vmem:[%s777 + $0xc0] sm:$0xff] %v826
                %v828 = vld [vmem:[%s776 + $0xc8] sm:$0xff]
                %829 = vst [vmem:[%s777 + $0xc8] sm:$0xff] %v828
                %v830 = vld [vmem:[%s776 + $0xd0] sm:$0xff]
                %831 = vst [vmem:[%s777 + $0xd0] sm:$0xff] %v830
                %v832 = vld [vmem:[%s776 + $0xd8] sm:$0xff]
                %833 = vst [vmem:[%s777 + $0xd8] sm:$0xff] %v832
                %v834 = vld [vmem:[%s776 + $0xe0] sm:$0xff]
                %835 = vst [vmem:[%s777 + $0xe0] sm:$0xff] %v834
                %v836 = vld [vmem:[%s776 + $0xe8] sm:$0xff]
                %837 = vst [vmem:[%s777 + $0xe8] sm:$0xff] %v836
                %v838 = vld [vmem:[%s776 + $0xf0] sm:$0xff]
                %839 = vst [vmem:[%s777 + $0xf0] sm:$0xff] %v838
                %v840 = vld [vmem:[%s776 + $0xf8] sm:$0xff]
                %841 = vst [vmem:[%s777 + $0xf8] sm:$0xff] %v840
              $region101: #{tpu_custom_call.1} parent=95 // loop_footer
                %s775 = sadd.s32 1, %s771
              $region102: #{tpu_custom_call.1} parent=95 // loop_footer_branch
                %770 = sbr.rel target = $region98
              $region103: #{tpu_custom_call.1} parent=95 // loop_exit
                _
            $region96: #{tpu_custom_call.1} parent=80 // pred_fallthru
              _
            %p842 = pneg %p766
            // Predicated region
            $region104: #{tpu_custom_call.1} parent=80 // pred_check
              _
            $region105: #{tpu_custom_call.1} parent=80 // pred_check_branch
              %844 = sbr.rel (%p766) target = $region107
            $region106: #{tpu_custom_call.1} parent=80 // pred_region
              %s845 = sand.u32 256, 7
            $region107: #{tpu_custom_call.1} parent=80 // pred_fallthru
              _
          $region81: #{tpu_custom_call.1} parent=76 // pred_fallthru
            _
          // Predicated region
          $region82: #{tpu_custom_call.1} parent=76 // pred_check
            %p750 = pneg %p746
          $region83: #{tpu_custom_call.1} parent=76 // pred_check_branch
            %752 = sbr.rel (%p750) target = $region85
          $region84: #{tpu_custom_call.1} parent=76 // pred_region
            %s753 = sshll.u32 1, 256
            %s754 = ssub.s32 %s753, 1
            loop: start=0, step=1, limit=1
            $region86: #{tpu_custom_call.1} parent=84 // loop_pre_header
              _
            $region87: #{tpu_custom_call.1} parent=84 // loop_header
              %s756 = sphi 0, %s760
              %p757 = scmp.ge.s32.totalorder %s756, 1
              %s761 = sphi %s3, %s3
              %s762 = sphi [#allocation3], [#allocation3]
            $region88: #{tpu_custom_call.1} parent=84 // loop_header_branch
              %759 = sbr.rel (%p757) target = $region92
            $region89: #{tpu_custom_call.1} parent=84 // loop_body
              %v763 = vld [vmem:[%s761] sm:%s754]
              %764 = vst [vmem:[%s762] sm:%s754] %v763
            $region90: #{tpu_custom_call.1} parent=84 // loop_footer
              %s760 = sadd.s32 1, %s756
            $region91: #{tpu_custom_call.1} parent=84 // loop_footer_branch
              %755 = sbr.rel target = $region87
            $region92: #{tpu_custom_call.1} parent=84 // loop_exit
              _
          $region85: #{tpu_custom_call.1} parent=76 // pred_fallthru
            _
          // Predicated region
          $region108: #{tpu_custom_call.1} parent=76 // pred_check
            _
          $region109: #{tpu_custom_call.1} parent=76 // pred_check_branch
            %848 = sbr.rel (0) target = $region111
          $region110: #{tpu_custom_call.1} parent=76 // pred_region
            %849 = vsyncadd [#allocation9], 4096
          $region111: #{tpu_custom_call.1} parent=76 // pred_fallthru
            _
          %s850 = scalar_lea.sflag [#allocation9], 1
          %p852 = scmp.lt.u32.totalorder 4, 8
          %p853 = pneg %p852
          // Predicated region
          $region112: #{tpu_custom_call.1} parent=76 // pred_check
            _
          $region113: #{tpu_custom_call.1} parent=76 // pred_check_branch
            %855 = sbr.rel (%p852) target = $region115
          $region114: #{tpu_custom_call.1} parent=76 // pred_region
            %s871 = sand.u32 4, 7
            %p872 = scmp.eq.s32.totalorder %s871, 0
            %p873 = pneg %p872
            // Predicated region
            $region127: #{tpu_custom_call.1} parent=114 // pred_check
              _
            $region128: #{tpu_custom_call.1} parent=114 // pred_check_branch
              %875 = sbr.rel (%p872) target = $region130
            $region129: #{tpu_custom_call.1} parent=114 // pred_region
              %s876 = sand.u32 4, 7
              %s877 = ssub.s32 4, %s876
              %s878 = scalar_lea.vmem %s4, %s877
              %s879 = ssub.s32 4, %s876
              %s880 = scalar_lea.vmem [#allocation4], %s879
              %s881 = sshll.u32 1, %s876
              %s882 = ssub.s32 %s881, 1
              loop: start=0, step=1, limit=1
              $region131: #{tpu_custom_call.1} parent=129 // loop_pre_header
                _
              $region132: #{tpu_custom_call.1} parent=129 // loop_header
                %s884 = sphi 0, %s888
                %p885 = scmp.ge.s32.totalorder %s884, 1
                %s889 = sphi %s878, %s878
                %s890 = sphi %s880, %s880
              $region133: #{tpu_custom_call.1} parent=129 // loop_header_branch
                %887 = sbr.rel (%p885) target = $region137
              $region134: #{tpu_custom_call.1} parent=129 // loop_body
                %v891 = vld [vmem:[%s889] sm:%s882]
                %892 = vst [vmem:[%s890] sm:%s882] %v891
              $region135: #{tpu_custom_call.1} parent=129 // loop_footer
                %s888 = sadd.s32 1, %s884
              $region136: #{tpu_custom_call.1} parent=129 // loop_footer_branch
                %883 = sbr.rel target = $region132
              $region137: #{tpu_custom_call.1} parent=129 // loop_exit
                _
            $region130: #{tpu_custom_call.1} parent=114 // pred_fallthru
              _
          $region115: #{tpu_custom_call.1} parent=76 // pred_fallthru
            _
          // Predicated region
          $region116: #{tpu_custom_call.1} parent=76 // pred_check
            %p856 = pneg %p852
          $region117: #{tpu_custom_call.1} parent=76 // pred_check_branch
            %858 = sbr.rel (%p856) target = $region119
          $region118: #{tpu_custom_call.1} parent=76 // pred_region
            %s859 = sshll.u32 1, 4
            %s860 = ssub.s32 %s859, 1
            loop: start=0, step=1, limit=1
            $region120: #{tpu_custom_call.1} parent=118 // loop_pre_header
              _
            $region121: #{tpu_custom_call.1} parent=118 // loop_header
              %s862 = sphi 0, %s866
              %p863 = scmp.ge.s32.totalorder %s862, 1
              %s867 = sphi %s4, %s4
              %s868 = sphi [#allocation4], [#allocation4]
            $region122: #{tpu_custom_call.1} parent=118 // loop_header_branch
              %865 = sbr.rel (%p863) target = $region126
            $region123: #{tpu_custom_call.1} parent=118 // loop_body
              %v869 = vld [vmem:[%s867] sm:%s860]
              %870 = vst [vmem:[%s868] sm:%s860] %v869
            $region124: #{tpu_custom_call.1} parent=118 // loop_footer
              %s866 = sadd.s32 1, %s862
            $region125: #{tpu_custom_call.1} parent=118 // loop_footer_branch
              %861 = sbr.rel target = $region121
            $region126: #{tpu_custom_call.1} parent=118 // loop_exit
              _
          $region119: #{tpu_custom_call.1} parent=76 // pred_fallthru
            _
          // Predicated region
          $region138: #{tpu_custom_call.1} parent=76 // pred_check
            _
          $region139: #{tpu_custom_call.1} parent=76 // pred_check_branch
            %895 = sbr.rel (0) target = $region141
          $region140: #{tpu_custom_call.1} parent=76 // pred_region
            %896 = vsyncadd %s850, 64
          $region141: #{tpu_custom_call.1} parent=76 // pred_fallthru
            _
          %s897 = scalar_lea.sflag [#allocation9], 2
          %p899 = scmp.lt.u32.totalorder 512, 8
          %p900 = pneg %p899
          // Predicated region
          $region142: #{tpu_custom_call.1} parent=76 // pred_check
            _
          $region143: #{tpu_custom_call.1} parent=76 // pred_check_branch
            %902 = sbr.rel (%p899) target = $region145
          $region144: #{tpu_custom_call.1} parent=76 // pred_region
            %s918 = sand.u32 512, 7
            %p919 = scmp.eq.s32.totalorder %s918, 0
            // Predicated region
            $region157: #{tpu_custom_call.1} parent=144 // pred_check
              %p920 = pneg %p919
            $region158: #{tpu_custom_call.1} parent=144 // pred_check_branch
              %922 = sbr.rel (%p920) target = $region160
            $region159: #{tpu_custom_call.1} parent=144 // pred_region
              loop: start=0, step=1, limit=1
              $region161: #{tpu_custom_call.1} parent=159 // loop_pre_header
                _
              $region162: #{tpu_custom_call.1} parent=159 // loop_header
                %s924 = sphi 0, %s928
                %p925 = scmp.ge.s32.totalorder %s924, 1
                %s929 = sphi %s5, %s5
                %s930 = sphi [#allocation5], [#allocation5]
              $region163: #{tpu_custom_call.1} parent=159 // loop_header_branch
                %927 = sbr.rel (%p925) target = $region167
              $region164: #{tpu_custom_call.1} parent=159 // loop_body
                %v931 = vld [vmem:[%s929] sm:$0xff]
                %932 = vst [vmem:[%s930] sm:$0xff] %v931
                %v933 = vld [vmem:[%s929 + $0x8] sm:$0xff]
                %934 = vst [vmem:[%s930 + $0x8] sm:$0xff] %v933
                %v935 = vld [vmem:[%s929 + $0x10] sm:$0xff]
                %936 = vst [vmem:[%s930 + $0x10] sm:$0xff] %v935
                %v937 = vld [vmem:[%s929 + $0x18] sm:$0xff]
                %938 = vst [vmem:[%s930 + $0x18] sm:$0xff] %v937
                %v939 = vld [vmem:[%s929 + $0x20] sm:$0xff]
                %940 = vst [vmem:[%s930 + $0x20] sm:$0xff] %v939
                %v941 = vld [vmem:[%s929 + $0x28] sm:$0xff]
                %942 = vst [vmem:[%s930 + $0x28] sm:$0xff] %v941
                %v943 = vld [vmem:[%s929 + $0x30] sm:$0xff]
                %944 = vst [vmem:[%s930 + $0x30] sm:$0xff] %v943
                %v945 = vld [vmem:[%s929 + $0x38] sm:$0xff]
                %946 = vst [vmem:[%s930 + $0x38] sm:$0xff] %v945
                %v947 = vld [vmem:[%s929 + $0x40] sm:$0xff]
                %948 = vst [vmem:[%s930 + $0x40] sm:$0xff] %v947
                %v949 = vld [vmem:[%s929 + $0x48] sm:$0xff]
                %950 = vst [vmem:[%s930 + $0x48] sm:$0xff] %v949
                %v951 = vld [vmem:[%s929 + $0x50] sm:$0xff]
                %952 = vst [vmem:[%s930 + $0x50] sm:$0xff] %v951
                %v953 = vld [vmem:[%s929 + $0x58] sm:$0xff]
                %954 = vst [vmem:[%s930 + $0x58] sm:$0xff] %v953
                %v955 = vld [vmem:[%s929 + $0x60] sm:$0xff]
                %956 = vst [vmem:[%s930 + $0x60] sm:$0xff] %v955
                %v957 = vld [vmem:[%s929 + $0x68] sm:$0xff]
                %958 = vst [vmem:[%s930 + $0x68] sm:$0xff] %v957
                %v959 = vld [vmem:[%s929 + $0x70] sm:$0xff]
                %960 = vst [vmem:[%s930 + $0x70] sm:$0xff] %v959
                %v961 = vld [vmem:[%s929 + $0x78] sm:$0xff]
                %962 = vst [vmem:[%s930 + $0x78] sm:$0xff] %v961
                %v963 = vld [vmem:[%s929 + $0x80] sm:$0xff]
                %964 = vst [vmem:[%s930 + $0x80] sm:$0xff] %v963
                %v965 = vld [vmem:[%s929 + $0x88] sm:$0xff]
                %966 = vst [vmem:[%s930 + $0x88] sm:$0xff] %v965
                %v967 = vld [vmem:[%s929 + $0x90] sm:$0xff]
                %968 = vst [vmem:[%s930 + $0x90] sm:$0xff] %v967
                %v969 = vld [vmem:[%s929 + $0x98] sm:$0xff]
                %970 = vst [vmem:[%s930 + $0x98] sm:$0xff] %v969
                %v971 = vld [vmem:[%s929 + $0xa0] sm:$0xff]
                %972 = vst [vmem:[%s930 + $0xa0] sm:$0xff] %v971
                %v973 = vld [vmem:[%s929 + $0xa8] sm:$0xff]
                %974 = vst [vmem:[%s930 + $0xa8] sm:$0xff] %v973
                %v975 = vld [vmem:[%s929 + $0xb0] sm:$0xff]
                %976 = vst [vmem:[%s930 + $0xb0] sm:$0xff] %v975
                %v977 = vld [vmem:[%s929 + $0xb8] sm:$0xff]
                %978 = vst [vmem:[%s930 + $0xb8] sm:$0xff] %v977
                %v979 = vld [vmem:[%s929 + $0xc0] sm:$0xff]
                %980 = vst [vmem:[%s930 + $0xc0] sm:$0xff] %v979
                %v981 = vld [vmem:[%s929 + $0xc8] sm:$0xff]
                %982 = vst [vmem:[%s930 + $0xc8] sm:$0xff] %v981
                %v983 = vld [vmem:[%s929 + $0xd0] sm:$0xff]
                %984 = vst [vmem:[%s930 + $0xd0] sm:$0xff] %v983
                %v985 = vld [vmem:[%s929 + $0xd8] sm:$0xff]
                %986 = vst [vmem:[%s930 + $0xd8] sm:$0xff] %v985
                %v987 = vld [vmem:[%s929 + $0xe0] sm:$0xff]
                %988 = vst [vmem:[%s930 + $0xe0] sm:$0xff] %v987
                %v989 = vld [vmem:[%s929 + $0xe8] sm:$0xff]
                %990 = vst [vmem:[%s930 + $0xe8] sm:$0xff] %v989
                %v991 = vld [vmem:[%s929 + $0xf0] sm:$0xff]
                %992 = vst [vmem:[%s930 + $0xf0] sm:$0xff] %v991
                %v993 = vld [vmem:[%s929 + $0xf8] sm:$0xff]
                %994 = vst [vmem:[%s930 + $0xf8] sm:$0xff] %v993
                %v995 = vld [vmem:[%s929 + $0x100] sm:$0xff]
                %996 = vst [vmem:[%s930 + $0x100] sm:$0xff] %v995
                %v997 = vld [vmem:[%s929 + $0x108] sm:$0xff]
                %998 = vst [vmem:[%s930 + $0x108] sm:$0xff] %v997
                %v999 = vld [vmem:[%s929 + $0x110] sm:$0xff]
                %1000 = vst [vmem:[%s930 + $0x110] sm:$0xff] %v999
                %v1001 = vld [vmem:[%s929 + $0x118] sm:$0xff]
                %1002 = vst [vmem:[%s930 + $0x118] sm:$0xff] %v1001
                %v1003 = vld [vmem:[%s929 + $0x120] sm:$0xff]
                %1004 = vst [vmem:[%s930 + $0x120] sm:$0xff] %v1003
                %v1005 = vld [vmem:[%s929 + $0x128] sm:$0xff]
                %1006 = vst [vmem:[%s930 + $0x128] sm:$0xff] %v1005
                %v1007 = vld [vmem:[%s929 + $0x130] sm:$0xff]
                %1008 = vst [vmem:[%s930 + $0x130] sm:$0xff] %v1007
                %v1009 = vld [vmem:[%s929 + $0x138] sm:$0xff]
                %1010 = vst [vmem:[%s930 + $0x138] sm:$0xff] %v1009
                %v1011 = vld [vmem:[%s929 + $0x140] sm:$0xff]
                %1012 = vst [vmem:[%s930 + $0x140] sm:$0xff] %v1011
                %v1013 = vld [vmem:[%s929 + $0x148] sm:$0xff]
                %1014 = vst [vmem:[%s930 + $0x148] sm:$0xff] %v1013
                %v1015 = vld [vmem:[%s929 + $0x150] sm:$0xff]
                %1016 = vst [vmem:[%s930 + $0x150] sm:$0xff] %v1015
                %v1017 = vld [vmem:[%s929 + $0x158] sm:$0xff]
                %1018 = vst [vmem:[%s930 + $0x158] sm:$0xff] %v1017
                %v1019 = vld [vmem:[%s929 + $0x160] sm:$0xff]
                %1020 = vst [vmem:[%s930 + $0x160] sm:$0xff] %v1019
                %v1021 = vld [vmem:[%s929 + $0x168] sm:$0xff]
                %1022 = vst [vmem:[%s930 + $0x168] sm:$0xff] %v1021
                %v1023 = vld [vmem:[%s929 + $0x170] sm:$0xff]
                %1024 = vst [vmem:[%s930 + $0x170] sm:$0xff] %v1023
                %v1025 = vld [vmem:[%s929 + $0x178] sm:$0xff]
                %1026 = vst [vmem:[%s930 + $0x178] sm:$0xff] %v1025
                %v1027 = vld [vmem:[%s929 + $0x180] sm:$0xff]
                %1028 = vst [vmem:[%s930 + $0x180] sm:$0xff] %v1027
                %v1029 = vld [vmem:[%s929 + $0x188] sm:$0xff]
                %1030 = vst [vmem:[%s930 + $0x188] sm:$0xff] %v1029
                %v1031 = vld [vmem:[%s929 + $0x190] sm:$0xff]
                %1032 = vst [vmem:[%s930 + $0x190] sm:$0xff] %v1031
                %v1033 = vld [vmem:[%s929 + $0x198] sm:$0xff]
                %1034 = vst [vmem:[%s930 + $0x198] sm:$0xff] %v1033
                %v1035 = vld [vmem:[%s929 + $0x1a0] sm:$0xff]
                %1036 = vst [vmem:[%s930 + $0x1a0] sm:$0xff] %v1035
                %v1037 = vld [vmem:[%s929 + $0x1a8] sm:$0xff]
                %1038 = vst [vmem:[%s930 + $0x1a8] sm:$0xff] %v1037
                %v1039 = vld [vmem:[%s929 + $0x1b0] sm:$0xff]
                %1040 = vst [vmem:[%s930 + $0x1b0] sm:$0xff] %v1039
                %v1041 = vld [vmem:[%s929 + $0x1b8] sm:$0xff]
                %1042 = vst [vmem:[%s930 + $0x1b8] sm:$0xff] %v1041
                %v1043 = vld [vmem:[%s929 + $0x1c0] sm:$0xff]
                %1044 = vst [vmem:[%s930 + $0x1c0] sm:$0xff] %v1043
                %v1045 = vld [vmem:[%s929 + $0x1c8] sm:$0xff]
                %1046 = vst [vmem:[%s930 + $0x1c8] sm:$0xff] %v1045
                %v1047 = vld [vmem:[%s929 + $0x1d0] sm:$0xff]
                %1048 = vst [vmem:[%s930 + $0x1d0] sm:$0xff] %v1047
                %v1049 = vld [vmem:[%s929 + $0x1d8] sm:$0xff]
                %1050 = vst [vmem:[%s930 + $0x1d8] sm:$0xff] %v1049
                %v1051 = vld [vmem:[%s929 + $0x1e0] sm:$0xff]
                %1052 = vst [vmem:[%s930 + $0x1e0] sm:$0xff] %v1051
                %v1053 = vld [vmem:[%s929 + $0x1e8] sm:$0xff]
                %1054 = vst [vmem:[%s930 + $0x1e8] sm:$0xff] %v1053
                %v1055 = vld [vmem:[%s929 + $0x1f0] sm:$0xff]
                %1056 = vst [vmem:[%s930 + $0x1f0] sm:$0xff] %v1055
                %v1057 = vld [vmem:[%s929 + $0x1f8] sm:$0xff]
                %1058 = vst [vmem:[%s930 + $0x1f8] sm:$0xff] %v1057
              $region165: #{tpu_custom_call.1} parent=159 // loop_footer
                %s928 = sadd.s32 1, %s924
              $region166: #{tpu_custom_call.1} parent=159 // loop_footer_branch
                %923 = sbr.rel target = $region162
              $region167: #{tpu_custom_call.1} parent=159 // loop_exit
                _
            $region160: #{tpu_custom_call.1} parent=144 // pred_fallthru
              _
            %p1059 = pneg %p919
            // Predicated region
            $region168: #{tpu_custom_call.1} parent=144 // pred_check
              _
            $region169: #{tpu_custom_call.1} parent=144 // pred_check_branch
              %1061 = sbr.rel (%p919) target = $region171
            $region170: #{tpu_custom_call.1} parent=144 // pred_region
              %s1062 = sand.u32 512, 7
            $region171: #{tpu_custom_call.1} parent=144 // pred_fallthru
              _
          $region145: #{tpu_custom_call.1} parent=76 // pred_fallthru
            _
          // Predicated region
          $region146: #{tpu_custom_call.1} parent=76 // pred_check
            %p903 = pneg %p899
          $region147: #{tpu_custom_call.1} parent=76 // pred_check_branch
            %905 = sbr.rel (%p903) target = $region149
          $region148: #{tpu_custom_call.1} parent=76 // pred_region
            %s906 = sshll.u32 1, 512
            %s907 = ssub.s32 %s906, 1
            loop: start=0, step=1, limit=1
            $region150: #{tpu_custom_call.1} parent=148 // loop_pre_header
              _
            $region151: #{tpu_custom_call.1} parent=148 // loop_header
              %s909 = sphi 0, %s913
              %p910 = scmp.ge.s32.totalorder %s909, 1
              %s914 = sphi %s5, %s5
              %s915 = sphi [#allocation5], [#allocation5]
            $region152: #{tpu_custom_call.1} parent=148 // loop_header_branch
              %912 = sbr.rel (%p910) target = $region156
            $region153: #{tpu_custom_call.1} parent=148 // loop_body
              %v916 = vld [vmem:[%s914] sm:%s907]
              %917 = vst [vmem:[%s915] sm:%s907] %v916
            $region154: #{tpu_custom_call.1} parent=148 // loop_footer
              %s913 = sadd.s32 1, %s909
            $region155: #{tpu_custom_call.1} parent=148 // loop_footer_branch
              %908 = sbr.rel target = $region151
            $region156: #{tpu_custom_call.1} parent=148 // loop_exit
              _
          $region149: #{tpu_custom_call.1} parent=76 // pred_fallthru
            _
          // Predicated region
          $region172: #{tpu_custom_call.1} parent=76 // pred_check
            _
          $region173: #{tpu_custom_call.1} parent=76 // pred_check_branch
            %1065 = sbr.rel (0) target = $region175
          $region174: #{tpu_custom_call.1} parent=76 // pred_region
            %1066 = vsyncadd %s897, 8192
          $region175: #{tpu_custom_call.1} parent=76 // pred_fallthru
            _
          %s1067 = scalar_lea.sflag [#allocation9], 3
          %p1069 = scmp.lt.u32.totalorder 2, 8
          %p1070 = pneg %p1069
          // Predicated region
          $region176: #{tpu_custom_call.1} parent=76 // pred_check
            _
          $region177: #{tpu_custom_call.1} parent=76 // pred_check_branch
            %1072 = sbr.rel (%p1069) target = $region179
          $region178: #{tpu_custom_call.1} parent=76 // pred_region
            %s1088 = sand.u32 2, 7
            %p1089 = scmp.eq.s32.totalorder %s1088, 0
            %p1090 = pneg %p1089
            // Predicated region
            $region191: #{tpu_custom_call.1} parent=178 // pred_check
              _
            $region192: #{tpu_custom_call.1} parent=178 // pred_check_branch
              %1092 = sbr.rel (%p1089) target = $region194
            $region193: #{tpu_custom_call.1} parent=178 // pred_region
              %s1093 = sand.u32 2, 7
              %s1094 = ssub.s32 2, %s1093
              %s1095 = scalar_lea.vmem %s6, %s1094
              %s1096 = ssub.s32 2, %s1093
              %s1097 = scalar_lea.vmem [#allocation6], %s1096
              %s1098 = sshll.u32 1, %s1093
              %s1099 = ssub.s32 %s1098, 1
              loop: start=0, step=1, limit=1
              $region195: #{tpu_custom_call.1} parent=193 // loop_pre_header
                _
              $region196: #{tpu_custom_call.1} parent=193 // loop_header
                %s1101 = sphi 0, %s1105
                %p1102 = scmp.ge.s32.totalorder %s1101, 1
                %s1106 = sphi %s1095, %s1095
                %s1107 = sphi %s1097, %s1097
              $region197: #{tpu_custom_call.1} parent=193 // loop_header_branch
                %1104 = sbr.rel (%p1102) target = $region201
              $region198: #{tpu_custom_call.1} parent=193 // loop_body
                %v1108 = vld [vmem:[%s1106] sm:%s1099]
                %1109 = vst [vmem:[%s1107] sm:%s1099] %v1108
              $region199: #{tpu_custom_call.1} parent=193 // loop_footer
                %s1105 = sadd.s32 1, %s1101
              $region200: #{tpu_custom_call.1} parent=193 // loop_footer_branch
                %1100 = sbr.rel target = $region196
              $region201: #{tpu_custom_call.1} parent=193 // loop_exit
                _
            $region194: #{tpu_custom_call.1} parent=178 // pred_fallthru
              _
          $region179: #{tpu_custom_call.1} parent=76 // pred_fallthru
            _
          // Predicated region
          $region180: #{tpu_custom_call.1} parent=76 // pred_check
            %p1073 = pneg %p1069
          $region181: #{tpu_custom_call.1} parent=76 // pred_check_branch
            %1075 = sbr.rel (%p1073) target = $region183
          $region182: #{tpu_custom_call.1} parent=76 // pred_region
            %s1076 = sshll.u32 1, 2
            %s1077 = ssub.s32 %s1076, 1
            loop: start=0, step=1, limit=1
            $region184: #{tpu_custom_call.1} parent=182 // loop_pre_header
              _
            $region185: #{tpu_custom_call.1} parent=182 // loop_header
              %s1079 = sphi 0, %s1083
              %p1080 = scmp.ge.s32.totalorder %s1079, 1
              %s1084 = sphi %s6, %s6
              %s1085 = sphi [#allocation6], [#allocation6]
            $region186: #{tpu_custom_call.1} parent=182 // loop_header_branch
              %1082 = sbr.rel (%p1080) target = $region190
            $region187: #{tpu_custom_call.1} parent=182 // loop_body
              %v1086 = vld [vmem:[%s1084] sm:%s1077]
              %1087 = vst [vmem:[%s1085] sm:%s1077] %v1086
            $region188: #{tpu_custom_call.1} parent=182 // loop_footer
              %s1083 = sadd.s32 1, %s1079
            $region189: #{tpu_custom_call.1} parent=182 // loop_footer_branch
              %1078 = sbr.rel target = $region185
            $region190: #{tpu_custom_call.1} parent=182 // loop_exit
              _
          $region183: #{tpu_custom_call.1} parent=76 // pred_fallthru
            _
          // Predicated region
          $region202: #{tpu_custom_call.1} parent=76 // pred_check
            _
          $region203: #{tpu_custom_call.1} parent=76 // pred_check_branch
            %1112 = sbr.rel (0) target = $region205
          $region204: #{tpu_custom_call.1} parent=76 // pred_region
            %1113 = vsyncadd %s1067, 32
          $region205: #{tpu_custom_call.1} parent=76 // pred_fallthru
            _
          %s1114 = scalar_lea.sflag [#allocation9], 4
          %p1116 = scmp.lt.u32.totalorder 128, 8
          %p1117 = pneg %p1116
          // Predicated region
          $region206: #{tpu_custom_call.1} parent=76 // pred_check
            _
          $region207: #{tpu_custom_call.1} parent=76 // pred_check_branch
            %1119 = sbr.rel (%p1116) target = $region209
          $region208: #{tpu_custom_call.1} parent=76 // pred_region
            %s1135 = sand.u32 128, 7
            %p1136 = scmp.eq.s32.totalorder %s1135, 0
            // Predicated region
            $region221: #{tpu_custom_call.1} parent=208 // pred_check
              %p1137 = pneg %p1136
            $region222: #{tpu_custom_call.1} parent=208 // pred_check_branch
              %1139 = sbr.rel (%p1137) target = $region224
            $region223: #{tpu_custom_call.1} parent=208 // pred_region
              loop: start=0, step=1, limit=1
              $region225: #{tpu_custom_call.1} parent=223 // loop_pre_header
                _
              $region226: #{tpu_custom_call.1} parent=223 // loop_header
                %s1141 = sphi 0, %s1145
                %p1142 = scmp.ge.s32.totalorder %s1141, 1
                %s1146 = sphi %s7, %s7
                %s1147 = sphi [#allocation7], [#allocation7]
              $region227: #{tpu_custom_call.1} parent=223 // loop_header_branch
                %1144 = sbr.rel (%p1142) target = $region231
              $region228: #{tpu_custom_call.1} parent=223 // loop_body
                %v1148 = vld [vmem:[%s1146] sm:$0xff]
                %1149 = vst [vmem:[%s1147] sm:$0xff] %v1148
                %v1150 = vld [vmem:[%s1146 + $0x8] sm:$0xff]
                %1151 = vst [vmem:[%s1147 + $0x8] sm:$0xff] %v1150
                %v1152 = vld [vmem:[%s1146 + $0x10] sm:$0xff]
                %1153 = vst [vmem:[%s1147 + $0x10] sm:$0xff] %v1152
                %v1154 = vld [vmem:[%s1146 + $0x18] sm:$0xff]
                %1155 = vst [vmem:[%s1147 + $0x18] sm:$0xff] %v1154
                %v1156 = vld [vmem:[%s1146 + $0x20] sm:$0xff]
                %1157 = vst [vmem:[%s1147 + $0x20] sm:$0xff] %v1156
                %v1158 = vld [vmem:[%s1146 + $0x28] sm:$0xff]
                %1159 = vst [vmem:[%s1147 + $0x28] sm:$0xff] %v1158
                %v1160 = vld [vmem:[%s1146 + $0x30] sm:$0xff]
                %1161 = vst [vmem:[%s1147 + $0x30] sm:$0xff] %v1160
                %v1162 = vld [vmem:[%s1146 + $0x38] sm:$0xff]
                %1163 = vst [vmem:[%s1147 + $0x38] sm:$0xff] %v1162
                %v1164 = vld [vmem:[%s1146 + $0x40] sm:$0xff]
                %1165 = vst [vmem:[%s1147 + $0x40] sm:$0xff] %v1164
                %v1166 = vld [vmem:[%s1146 + $0x48] sm:$0xff]
                %1167 = vst [vmem:[%s1147 + $0x48] sm:$0xff] %v1166
                %v1168 = vld [vmem:[%s1146 + $0x50] sm:$0xff]
                %1169 = vst [vmem:[%s1147 + $0x50] sm:$0xff] %v1168
                %v1170 = vld [vmem:[%s1146 + $0x58] sm:$0xff]
                %1171 = vst [vmem:[%s1147 + $0x58] sm:$0xff] %v1170
                %v1172 = vld [vmem:[%s1146 + $0x60] sm:$0xff]
                %1173 = vst [vmem:[%s1147 + $0x60] sm:$0xff] %v1172
                %v1174 = vld [vmem:[%s1146 + $0x68] sm:$0xff]
                %1175 = vst [vmem:[%s1147 + $0x68] sm:$0xff] %v1174
                %v1176 = vld [vmem:[%s1146 + $0x70] sm:$0xff]
                %1177 = vst [vmem:[%s1147 + $0x70] sm:$0xff] %v1176
                %v1178 = vld [vmem:[%s1146 + $0x78] sm:$0xff]
                %1179 = vst [vmem:[%s1147 + $0x78] sm:$0xff] %v1178
              $region229: #{tpu_custom_call.1} parent=223 // loop_footer
                %s1145 = sadd.s32 1, %s1141
              $region230: #{tpu_custom_call.1} parent=223 // loop_footer_branch
                %1140 = sbr.rel target = $region226
              $region231: #{tpu_custom_call.1} parent=223 // loop_exit
                _
            $region224: #{tpu_custom_call.1} parent=208 // pred_fallthru
              _
            %p1180 = pneg %p1136
            // Predicated region
            $region232: #{tpu_custom_call.1} parent=208 // pred_check
              _
            $region233: #{tpu_custom_call.1} parent=208 // pred_check_branch
              %1182 = sbr.rel (%p1136) target = $region235
            $region234: #{tpu_custom_call.1} parent=208 // pred_region
              %s1183 = sand.u32 128, 7
            $region235: #{tpu_custom_call.1} parent=208 // pred_fallthru
              _
          $region209: #{tpu_custom_call.1} parent=76 // pred_fallthru
            _
          // Predicated region
          $region210: #{tpu_custom_call.1} parent=76 // pred_check
            %p1120 = pneg %p1116
          $region211: #{tpu_custom_call.1} parent=76 // pred_check_branch
            %1122 = sbr.rel (%p1120) target = $region213
          $region212: #{tpu_custom_call.1} parent=76 // pred_region
            %s1123 = sshll.u32 1, 128
            %s1124 = ssub.s32 %s1123, 1
            loop: start=0, step=1, limit=1
            $region214: #{tpu_custom_call.1} parent=212 // loop_pre_header
              _
            $region215: #{tpu_custom_call.1} parent=212 // loop_header
              %s1126 = sphi 0, %s1130
              %p1127 = scmp.ge.s32.totalorder %s1126, 1
              %s1131 = sphi %s7, %s7
              %s1132 = sphi [#allocation7], [#allocation7]
            $region216: #{tpu_custom_call.1} parent=212 // loop_header_branch
              %1129 = sbr.rel (%p1127) target = $region220
            $region217: #{tpu_custom_call.1} parent=212 // loop_body
              %v1133 = vld [vmem:[%s1131] sm:%s1124]
              %1134 = vst [vmem:[%s1132] sm:%s1124] %v1133
            $region218: #{tpu_custom_call.1} parent=212 // loop_footer
              %s1130 = sadd.s32 1, %s1126
            $region219: #{tpu_custom_call.1} parent=212 // loop_footer_branch
              %1125 = sbr.rel target = $region215
            $region220: #{tpu_custom_call.1} parent=212 // loop_exit
              _
          $region213: #{tpu_custom_call.1} parent=76 // pred_fallthru
            _
          // Predicated region
          $region236: #{tpu_custom_call.1} parent=76 // pred_check
            _
          $region237: #{tpu_custom_call.1} parent=76 // pred_check_branch
            %1186 = sbr.rel (0) target = $region239
          $region238: #{tpu_custom_call.1} parent=76 // pred_region
            %1187 = vsyncadd %s1114, 2048
          $region239: #{tpu_custom_call.1} parent=76 // pred_fallthru
            _
          %s1188 = scalar_lea.sflag [#allocation9], 5
          %p1190 = scmp.lt.u32.totalorder 1, 8
          %p1191 = pneg %p1190
          // Predicated region
          $region240: #{tpu_custom_call.1} parent=76 // pred_check
            _
          $region241: #{tpu_custom_call.1} parent=76 // pred_check_branch
            %1193 = sbr.rel (%p1190) target = $region243
          $region242: #{tpu_custom_call.1} parent=76 // pred_region
            %s1209 = sand.u32 1, 7
            %p1210 = scmp.eq.s32.totalorder %s1209, 0
            %p1211 = pneg %p1210
            // Predicated region
            $region255: #{tpu_custom_call.1} parent=242 // pred_check
              _
            $region256: #{tpu_custom_call.1} parent=242 // pred_check_branch
              %1213 = sbr.rel (%p1210) target = $region258
            $region257: #{tpu_custom_call.1} parent=242 // pred_region
              %s1214 = sand.u32 1, 7
              %s1215 = ssub.s32 1, %s1214
              %s1216 = scalar_lea.vmem %s8, %s1215
              %s1217 = ssub.s32 1, %s1214
              %s1218 = scalar_lea.vmem [#allocation8], %s1217
              %s1219 = sshll.u32 1, %s1214
              %s1220 = ssub.s32 %s1219, 1
              loop: start=0, step=1, limit=1
              $region259: #{tpu_custom_call.1} parent=257 // loop_pre_header
                _
              $region260: #{tpu_custom_call.1} parent=257 // loop_header
                %s1222 = sphi 0, %s1226
                %p1223 = scmp.ge.s32.totalorder %s1222, 1
                %s1227 = sphi %s1216, %s1216
                %s1228 = sphi %s1218, %s1218
              $region261: #{tpu_custom_call.1} parent=257 // loop_header_branch
                %1225 = sbr.rel (%p1223) target = $region265
              $region262: #{tpu_custom_call.1} parent=257 // loop_body
                %v1229 = vld [vmem:[%s1227] sm:%s1220]
                %1230 = vst [vmem:[%s1228] sm:%s1220] %v1229
              $region263: #{tpu_custom_call.1} parent=257 // loop_footer
                %s1226 = sadd.s32 1, %s1222
              $region264: #{tpu_custom_call.1} parent=257 // loop_footer_branch
                %1221 = sbr.rel target = $region260
              $region265: #{tpu_custom_call.1} parent=257 // loop_exit
                _
            $region258: #{tpu_custom_call.1} parent=242 // pred_fallthru
              _
          $region243: #{tpu_custom_call.1} parent=76 // pred_fallthru
            _
          // Predicated region
          $region244: #{tpu_custom_call.1} parent=76 // pred_check
            %p1194 = pneg %p1190
          $region245: #{tpu_custom_call.1} parent=76 // pred_check_branch
            %1196 = sbr.rel (%p1194) target = $region247
          $region246: #{tpu_custom_call.1} parent=76 // pred_region
            %s1197 = sshll.u32 1, 1
            %s1198 = ssub.s32 %s1197, 1
            loop: start=0, step=1, limit=1
            $region248: #{tpu_custom_call.1} parent=246 // loop_pre_header
              _
            $region249: #{tpu_custom_call.1} parent=246 // loop_header
              %s1200 = sphi 0, %s1204
              %p1201 = scmp.ge.s32.totalorder %s1200, 1
              %s1205 = sphi %s8, %s8
              %s1206 = sphi [#allocation8], [#allocation8]
            $region250: #{tpu_custom_call.1} parent=246 // loop_header_branch
              %1203 = sbr.rel (%p1201) target = $region254
            $region251: #{tpu_custom_call.1} parent=246 // loop_body
              %v1207 = vld [vmem:[%s1205] sm:%s1198]
              %1208 = vst [vmem:[%s1206] sm:%s1198] %v1207
            $region252: #{tpu_custom_call.1} parent=246 // loop_footer
              %s1204 = sadd.s32 1, %s1200
            $region253: #{tpu_custom_call.1} parent=246 // loop_footer_branch
              %1199 = sbr.rel target = $region249
            $region254: #{tpu_custom_call.1} parent=246 // loop_exit
              _
          $region247: #{tpu_custom_call.1} parent=76 // pred_fallthru
            _
          // Predicated region
          $region266: #{tpu_custom_call.1} parent=76 // pred_check
            _
          $region267: #{tpu_custom_call.1} parent=76 // pred_check_branch
            %1233 = sbr.rel (0) target = $region269
          $region268: #{tpu_custom_call.1} parent=76 // pred_region
            %1234 = vsyncadd %s1188, 16
          $region269: #{tpu_custom_call.1} parent=76 // pred_fallthru
            _
        $region77: #{tpu_custom_call.1} parent=68 // pred_fallthru
          _
        %v1235 = vld [vmem:[%s721] sm:$0xf]
        %v1236 = vld [vmem:[%s721 + $0x4] sm:$0xf]
        %v1237 = vld [vmem:[%s721 + $0x8] sm:$0xf]
        %v1238 = vld [vmem:[%s721 + $0xc] sm:$0xf]
        %v1239 = vld [vmem:[%s721 + $0x10] sm:$0xf]
        %v1240 = vld [vmem:[%s721 + $0x14] sm:$0xf]
        %v1241 = vld [vmem:[%s721 + $0x18] sm:$0xf]
        %v1242 = vld [vmem:[%s721 + $0x1c] sm:$0xf]
        %v1243 = vld [vmem:[%s721 + $0x20] sm:$0xf]
        %v1244 = vld [vmem:[%s721 + $0x24] sm:$0xf]
        %v1245 = vld [vmem:[%s721 + $0x28] sm:$0xf]
        %v1246 = vld [vmem:[%s721 + $0x2c] sm:$0xf]
        %v1247 = vld [vmem:[%s721 + $0x30] sm:$0xf]
        %v1248 = vld [vmem:[%s721 + $0x34] sm:$0xf]
        %v1249 = vld [vmem:[%s721 + $0x38] sm:$0xf]
        %v1250 = vld [vmem:[%s721 + $0x3c] sm:$0xf]
        %v1251 = vld [vmem:[%s721 + $0x40] sm:$0xf]
        %v1252 = vld [vmem:[%s721 + $0x44] sm:$0xf]
        %v1253 = vld [vmem:[%s721 + $0x48] sm:$0xf]
        %v1254 = vld [vmem:[%s721 + $0x4c] sm:$0xf]
        %v1255 = vld [vmem:[%s721 + $0x50] sm:$0xf]
        %v1256 = vld [vmem:[%s721 + $0x54] sm:$0xf]
        %v1257 = vld [vmem:[%s721 + $0x58] sm:$0xf]
        %v1258 = vld [vmem:[%s721 + $0x5c] sm:$0xf]
        %v1259 = vld [vmem:[%s721 + $0x60] sm:$0xf]
        %v1260 = vld [vmem:[%s721 + $0x64] sm:$0xf]
        %v1261 = vld [vmem:[%s721 + $0x68] sm:$0xf]
        %v1262 = vld [vmem:[%s721 + $0x6c] sm:$0xf]
        %v1263 = vld [vmem:[%s721 + $0x70] sm:$0xf]
        %v1264 = vld [vmem:[%s721 + $0x74] sm:$0xf]
        %v1265 = vld [vmem:[%s721 + $0x78] sm:$0xf]
        %v1266 = vld [vmem:[%s721 + $0x7c] sm:$0xf]
        %v1267 = vld [vmem:[%s721 + $0x80] sm:$0xf]
        %v1268 = vld [vmem:[%s721 + $0x84] sm:$0xf]
        %v1269 = vld [vmem:[%s721 + $0x88] sm:$0xf]
        %v1270 = vld [vmem:[%s721 + $0x8c] sm:$0xf]
        %v1271 = vld [vmem:[%s721 + $0x90] sm:$0xf]
        %v1272 = vld [vmem:[%s721 + $0x94] sm:$0xf]
        %v1273 = vld [vmem:[%s721 + $0x98] sm:$0xf]
        %v1274 = vld [vmem:[%s721 + $0x9c] sm:$0xf]
        %v1275 = vld [vmem:[%s721 + $0xa0] sm:$0xf]
        %v1276 = vld [vmem:[%s721 + $0xa4] sm:$0xf]
        %v1277 = vld [vmem:[%s721 + $0xa8] sm:$0xf]
        %v1278 = vld [vmem:[%s721 + $0xac] sm:$0xf]
        %v1279 = vld [vmem:[%s721 + $0xb0] sm:$0xf]
        %v1280 = vld [vmem:[%s721 + $0xb4] sm:$0xf]
        %v1281 = vld [vmem:[%s721 + $0xb8] sm:$0xf]
        %v1282 = vld [vmem:[%s721 + $0xbc] sm:$0xf]
        %v1283 = vld [vmem:[%s721 + $0xc0] sm:$0xf]
        %v1284 = vld [vmem:[%s721 + $0xc4] sm:$0xf]
        %v1285 = vld [vmem:[%s721 + $0xc8] sm:$0xf]
        %v1286 = vld [vmem:[%s721 + $0xcc] sm:$0xf]
        %v1287 = vld [vmem:[%s721 + $0xd0] sm:$0xf]
        %v1288 = vld [vmem:[%s721 + $0xd4] sm:$0xf]
        %v1289 = vld [vmem:[%s721 + $0xd8] sm:$0xf]
        %v1290 = vld [vmem:[%s721 + $0xdc] sm:$0xf]
        %v1291 = vld [vmem:[%s721 + $0xe0] sm:$0xf]
        %v1292 = vld [vmem:[%s721 + $0xe4] sm:$0xf]
        %v1293 = vld [vmem:[%s721 + $0xe8] sm:$0xf]
        %v1294 = vld [vmem:[%s721 + $0xec] sm:$0xf]
        %v1295 = vld [vmem:[%s721 + $0xf0] sm:$0xf]
        %v1296 = vld [vmem:[%s721 + $0xf4] sm:$0xf]
        %v1297 = vld [vmem:[%s721 + $0xf8] sm:$0xf]
        %v1298 = vld [vmem:[%s721 + $0xfc] sm:$0xf]
        %v1299 = vld [vmem:[%s721 + $0x100] sm:$0xf]
        %v1300 = vld [vmem:[%s721 + $0x104] sm:$0xf]
        %v1301 = vld [vmem:[%s721 + $0x108] sm:$0xf]
        %v1302 = vld [vmem:[%s721 + $0x10c] sm:$0xf]
        %v1303 = vld [vmem:[%s721 + $0x110] sm:$0xf]
        %v1304 = vld [vmem:[%s721 + $0x114] sm:$0xf]
        %v1305 = vld [vmem:[%s721 + $0x118] sm:$0xf]
        %v1306 = vld [vmem:[%s721 + $0x11c] sm:$0xf]
        %v1307 = vld [vmem:[%s721 + $0x120] sm:$0xf]
        %v1308 = vld [vmem:[%s721 + $0x124] sm:$0xf]
        %v1309 = vld [vmem:[%s721 + $0x128] sm:$0xf]
        %v1310 = vld [vmem:[%s721 + $0x12c] sm:$0xf]
        %v1311 = vld [vmem:[%s721 + $0x130] sm:$0xf]
        %v1312 = vld [vmem:[%s721 + $0x134] sm:$0xf]
        %v1313 = vld [vmem:[%s721 + $0x138] sm:$0xf]
        %v1314 = vld [vmem:[%s721 + $0x13c] sm:$0xf]
        %v1315 = vld [vmem:[%s721 + $0x140] sm:$0xf]
        %v1316 = vld [vmem:[%s721 + $0x144] sm:$0xf]
        %v1317 = vld [vmem:[%s721 + $0x148] sm:$0xf]
        %v1318 = vld [vmem:[%s721 + $0x14c] sm:$0xf]
        %v1319 = vld [vmem:[%s721 + $0x150] sm:$0xf]
        %v1320 = vld [vmem:[%s721 + $0x154] sm:$0xf]
        %v1321 = vld [vmem:[%s721 + $0x158] sm:$0xf]
        %v1322 = vld [vmem:[%s721 + $0x15c] sm:$0xf]
        %v1323 = vld [vmem:[%s721 + $0x160] sm:$0xf]
        %v1324 = vld [vmem:[%s721 + $0x164] sm:$0xf]
        %v1325 = vld [vmem:[%s721 + $0x168] sm:$0xf]
        %v1326 = vld [vmem:[%s721 + $0x16c] sm:$0xf]
        %v1327 = vld [vmem:[%s721 + $0x170] sm:$0xf]
        %v1328 = vld [vmem:[%s721 + $0x174] sm:$0xf]
        %v1329 = vld [vmem:[%s721 + $0x178] sm:$0xf]
        %v1330 = vld [vmem:[%s721 + $0x17c] sm:$0xf]
        %v1331 = vld [vmem:[%s721 + $0x180] sm:$0xf]
        %v1332 = vld [vmem:[%s721 + $0x184] sm:$0xf]
        %v1333 = vld [vmem:[%s721 + $0x188] sm:$0xf]
        %v1334 = vld [vmem:[%s721 + $0x18c] sm:$0xf]
        %v1335 = vld [vmem:[%s721 + $0x190] sm:$0xf]
        %v1336 = vld [vmem:[%s721 + $0x194] sm:$0xf]
        %v1337 = vld [vmem:[%s721 + $0x198] sm:$0xf]
        %v1338 = vld [vmem:[%s721 + $0x19c] sm:$0xf]
        %v1339 = vld [vmem:[%s721 + $0x1a0] sm:$0xf]
        %v1340 = vld [vmem:[%s721 + $0x1a4] sm:$0xf]
        %v1341 = vld [vmem:[%s721 + $0x1a8] sm:$0xf]
        %v1342 = vld [vmem:[%s721 + $0x1ac] sm:$0xf]
        %v1343 = vld [vmem:[%s721 + $0x1b0] sm:$0xf]
        %v1344 = vld [vmem:[%s721 + $0x1b4] sm:$0xf]
        %v1345 = vld [vmem:[%s721 + $0x1b8] sm:$0xf]
        %v1346 = vld [vmem:[%s721 + $0x1bc] sm:$0xf]
        %v1347 = vld [vmem:[%s721 + $0x1c0] sm:$0xf]
        %v1348 = vld [vmem:[%s721 + $0x1c4] sm:$0xf]
        %v1349 = vld [vmem:[%s721 + $0x1c8] sm:$0xf]
        %v1350 = vld [vmem:[%s721 + $0x1cc] sm:$0xf]
        %v1351 = vld [vmem:[%s721 + $0x1d0] sm:$0xf]
        %v1352 = vld [vmem:[%s721 + $0x1d4] sm:$0xf]
        %v1353 = vld [vmem:[%s721 + $0x1d8] sm:$0xf]
        %v1354 = vld [vmem:[%s721 + $0x1dc] sm:$0xf]
        %v1355 = vld [vmem:[%s721 + $0x1e0] sm:$0xf]
        %v1356 = vld [vmem:[%s721 + $0x1e4] sm:$0xf]
        %v1357 = vld [vmem:[%s721 + $0x1e8] sm:$0xf]
        %v1358 = vld [vmem:[%s721 + $0x1ec] sm:$0xf]
        %v1359 = vld [vmem:[%s721 + $0x1f0] sm:$0xf]
        %v1360 = vld [vmem:[%s721 + $0x1f4] sm:$0xf]
        %v1361 = vld [vmem:[%s721 + $0x1f8] sm:$0xf]
        %v1362 = vld [vmem:[%s721 + $0x1fc] sm:$0xf]
        %v1363 = vld [vmem:[%s1] sm:$0xf]
        %v1364 = vld [vmem:[%s1 + $0x4] sm:$0xf]
        %v1365 = vld [vmem:[%s1 + $0x8] sm:$0xf]
        %v1366 = vld [vmem:[%s1 + $0xc] sm:$0xf]
        %v1367 = vld [vmem:[%s1 + $0x10] sm:$0xf]
        %v1368 = vld [vmem:[%s1 + $0x14] sm:$0xf]
        %v1369 = vld [vmem:[%s1 + $0x18] sm:$0xf]
        %v1370 = vld [vmem:[%s1 + $0x1c] sm:$0xf]
        %v1371 = vld [vmem:[%s2] sm:$0x1]
        %v1373 = vlaneseq
        %v1374 = vshrl.u32 %v1373, 7
        %v1375 = vsub.s32 0, %v1374
        %v1376 = vrot.slane %v1371, %v1375
        %v1506 = vunpack.c.l.b16 %v1235
        %v1507 = vunpack.c.l.b16 %v1236
        %v1508 = vunpack.c.l.b16 %v1237
        %v1509 = vunpack.c.l.b16 %v1238
        %v1510 = vunpack.c.l.b16 %v1239
        %v1511 = vunpack.c.l.b16 %v1240
        %v1512 = vunpack.c.l.b16 %v1241
        %v1513 = vunpack.c.l.b16 %v1242
        %v1514 = vunpack.c.l.b16 %v1243
        %v1515 = vunpack.c.l.b16 %v1244
        %v1516 = vunpack.c.l.b16 %v1245
        %v1517 = vunpack.c.l.b16 %v1246
        %v1518 = vunpack.c.l.b16 %v1247
        %v1519 = vunpack.c.l.b16 %v1248
        %v1520 = vunpack.c.l.b16 %v1249
        %v1521 = vunpack.c.l.b16 %v1250
        %v1522 = vunpack.c.l.b16 %v1251
        %v1523 = vunpack.c.l.b16 %v1252
        %v1524 = vunpack.c.l.b16 %v1253
        %v1525 = vunpack.c.l.b16 %v1254
        %v1526 = vunpack.c.l.b16 %v1255
        %v1527 = vunpack.c.l.b16 %v1256
        %v1528 = vunpack.c.l.b16 %v1257
        %v1529 = vunpack.c.l.b16 %v1258
        %v1530 = vunpack.c.l.b16 %v1259
        %v1531 = vunpack.c.l.b16 %v1260
        %v1532 = vunpack.c.l.b16 %v1261
        %v1533 = vunpack.c.l.b16 %v1262
        %v1534 = vunpack.c.l.b16 %v1263
        %v1535 = vunpack.c.l.b16 %v1264
        %v1536 = vunpack.c.l.b16 %v1265
        %v1537 = vunpack.c.l.b16 %v1266
        %v1538 = vunpack.c.l.b16 %v1267
        %v1539 = vunpack.c.l.b16 %v1268
        %v1540 = vunpack.c.l.b16 %v1269
        %v1541 = vunpack.c.l.b16 %v1270
        %v1542 = vunpack.c.l.b16 %v1271
        %v1543 = vunpack.c.l.b16 %v1272
        %v1544 = vunpack.c.l.b16 %v1273
        %v1545 = vunpack.c.l.b16 %v1274
        %v1546 = vunpack.c.l.b16 %v1275
        %v1547 = vunpack.c.l.b16 %v1276
        %v1548 = vunpack.c.l.b16 %v1277
        %v1549 = vunpack.c.l.b16 %v1278
        %v1550 = vunpack.c.l.b16 %v1279
        %v1551 = vunpack.c.l.b16 %v1280
        %v1552 = vunpack.c.l.b16 %v1281
        %v1553 = vunpack.c.l.b16 %v1282
        %v1554 = vunpack.c.l.b16 %v1283
        %v1555 = vunpack.c.l.b16 %v1284
        %v1556 = vunpack.c.l.b16 %v1285
        %v1557 = vunpack.c.l.b16 %v1286
        %v1558 = vunpack.c.l.b16 %v1287
        %v1559 = vunpack.c.l.b16 %v1288
        %v1560 = vunpack.c.l.b16 %v1289
        %v1561 = vunpack.c.l.b16 %v1290
        %v1562 = vunpack.c.l.b16 %v1291
        %v1563 = vunpack.c.l.b16 %v1292
        %v1564 = vunpack.c.l.b16 %v1293
        %v1565 = vunpack.c.l.b16 %v1294
        %v1566 = vunpack.c.l.b16 %v1295
        %v1567 = vunpack.c.l.b16 %v1296
        %v1568 = vunpack.c.l.b16 %v1297
        %v1569 = vunpack.c.l.b16 %v1298
        %v1570 = vunpack.c.l.b16 %v1299
        %v1571 = vunpack.c.l.b16 %v1300
        %v1572 = vunpack.c.l.b16 %v1301
        %v1573 = vunpack.c.l.b16 %v1302
        %v1574 = vunpack.c.l.b16 %v1303
        %v1575 = vunpack.c.l.b16 %v1304
        %v1576 = vunpack.c.l.b16 %v1305
        %v1577 = vunpack.c.l.b16 %v1306
        %v1578 = vunpack.c.l.b16 %v1307
        %v1579 = vunpack.c.l.b16 %v1308
        %v1580 = vunpack.c.l.b16 %v1309
        %v1581 = vunpack.c.l.b16 %v1310
        %v1582 = vunpack.c.l.b16 %v1311
        %v1583 = vunpack.c.l.b16 %v1312
        %v1584 = vunpack.c.l.b16 %v1313
        %v1585 = vunpack.c.l.b16 %v1314
        %v1586 = vunpack.c.l.b16 %v1315
        %v1587 = vunpack.c.l.b16 %v1316
        %v1588 = vunpack.c.l.b16 %v1317
        %v1589 = vunpack.c.l.b16 %v1318
        %v1590 = vunpack.c.l.b16 %v1319
        %v1591 = vunpack.c.l.b16 %v1320
        %v1592 = vunpack.c.l.b16 %v1321
        %v1593 = vunpack.c.l.b16 %v1322
        %v1594 = vunpack.c.l.b16 %v1323
        %v1595 = vunpack.c.l.b16 %v1324
        %v1596 = vunpack.c.l.b16 %v1325
        %v1597 = vunpack.c.l.b16 %v1326
        %v1598 = vunpack.c.l.b16 %v1327
        %v1599 = vunpack.c.l.b16 %v1328
        %v1600 = vunpack.c.l.b16 %v1329
        %v1601 = vunpack.c.l.b16 %v1330
        %v1602 = vunpack.c.l.b16 %v1331
        %v1603 = vunpack.c.l.b16 %v1332
        %v1604 = vunpack.c.l.b16 %v1333
        %v1605 = vunpack.c.l.b16 %v1334
        %v1606 = vunpack.c.l.b16 %v1335
        %v1607 = vunpack.c.l.b16 %v1336
        %v1608 = vunpack.c.l.b16 %v1337
        %v1609 = vunpack.c.l.b16 %v1338
        %v1610 = vunpack.c.l.b16 %v1339
        %v1611 = vunpack.c.l.b16 %v1340
        %v1612 = vunpack.c.l.b16 %v1341
        %v1613 = vunpack.c.l.b16 %v1342
        %v1614 = vunpack.c.l.b16 %v1343
        %v1615 = vunpack.c.l.b16 %v1344
        %v1616 = vunpack.c.l.b16 %v1345
        %v1617 = vunpack.c.l.b16 %v1346
        %v1618 = vunpack.c.l.b16 %v1347
        %v1619 = vunpack.c.l.b16 %v1348
        %v1620 = vunpack.c.l.b16 %v1349
        %v1621 = vunpack.c.l.b16 %v1350
        %v1622 = vunpack.c.l.b16 %v1351
        %v1623 = vunpack.c.l.b16 %v1352
        %v1624 = vunpack.c.l.b16 %v1353
        %v1625 = vunpack.c.l.b16 %v1354
        %v1626 = vunpack.c.l.b16 %v1355
        %v1627 = vunpack.c.l.b16 %v1356
        %v1628 = vunpack.c.l.b16 %v1357
        %v1629 = vunpack.c.l.b16 %v1358
        %v1630 = vunpack.c.l.b16 %v1359
        %v1631 = vunpack.c.l.b16 %v1360
        %v1632 = vunpack.c.l.b16 %v1361
        %v1633 = vunpack.c.l.b16 %v1362
        %v1634 = vpack.c.b16 %v1507, %v1506
        %v1635 = vpack.c.b16 %v1509, %v1508
        %v1636 = vpack.c.b16 %v1511, %v1510
        %v1637 = vpack.c.b16 %v1513, %v1512
        %v1638 = vpack.c.b16 %v1515, %v1514
        %v1639 = vpack.c.b16 %v1517, %v1516
        %v1640 = vpack.c.b16 %v1519, %v1518
        %v1641 = vpack.c.b16 %v1521, %v1520
        %v1642 = vpack.c.b16 %v1523, %v1522
        %v1643 = vpack.c.b16 %v1525, %v1524
        %v1644 = vpack.c.b16 %v1527, %v1526
        %v1645 = vpack.c.b16 %v1529, %v1528
        %v1646 = vpack.c.b16 %v1531, %v1530
        %v1647 = vpack.c.b16 %v1533, %v1532
        %v1648 = vpack.c.b16 %v1535, %v1534
        %v1649 = vpack.c.b16 %v1537, %v1536
        %v1650 = vpack.c.b16 %v1539, %v1538
        %v1651 = vpack.c.b16 %v1541, %v1540
        %v1652 = vpack.c.b16 %v1543, %v1542
        %v1653 = vpack.c.b16 %v1545, %v1544
        %v1654 = vpack.c.b16 %v1547, %v1546
        %v1655 = vpack.c.b16 %v1549, %v1548
        %v1656 = vpack.c.b16 %v1551, %v1550
        %v1657 = vpack.c.b16 %v1553, %v1552
        %v1658 = vpack.c.b16 %v1555, %v1554
        %v1659 = vpack.c.b16 %v1557, %v1556
        %v1660 = vpack.c.b16 %v1559, %v1558
        %v1661 = vpack.c.b16 %v1561, %v1560
        %v1662 = vpack.c.b16 %v1563, %v1562
        %v1663 = vpack.c.b16 %v1565, %v1564
        %v1664 = vpack.c.b16 %v1567, %v1566
        %v1665 = vpack.c.b16 %v1569, %v1568
        %v1666 = vpack.c.b16 %v1571, %v1570
        %v1667 = vpack.c.b16 %v1573, %v1572
        %v1668 = vpack.c.b16 %v1575, %v1574
        %v1669 = vpack.c.b16 %v1577, %v1576
        %v1670 = vpack.c.b16 %v1579, %v1578
        %v1671 = vpack.c.b16 %v1581, %v1580
        %v1672 = vpack.c.b16 %v1583, %v1582
        %v1673 = vpack.c.b16 %v1585, %v1584
        %v1674 = vpack.c.b16 %v1587, %v1586
        %v1675 = vpack.c.b16 %v1589, %v1588
        %v1676 = vpack.c.b16 %v1591, %v1590
        %v1677 = vpack.c.b16 %v1593, %v1592
        %v1678 = vpack.c.b16 %v1595, %v1594
        %v1679 = vpack.c.b16 %v1597, %v1596
        %v1680 = vpack.c.b16 %v1599, %v1598
        %v1681 = vpack.c.b16 %v1601, %v1600
        %v1682 = vpack.c.b16 %v1603, %v1602
        %v1683 = vpack.c.b16 %v1605, %v1604
        %v1684 = vpack.c.b16 %v1607, %v1606
        %v1685 = vpack.c.b16 %v1609, %v1608
        %v1686 = vpack.c.b16 %v1611, %v1610
        %v1687 = vpack.c.b16 %v1613, %v1612
        %v1688 = vpack.c.b16 %v1615, %v1614
        %v1689 = vpack.c.b16 %v1617, %v1616
        %v1690 = vpack.c.b16 %v1619, %v1618
        %v1691 = vpack.c.b16 %v1621, %v1620
        %v1692 = vpack.c.b16 %v1623, %v1622
        %v1693 = vpack.c.b16 %v1625, %v1624
        %v1694 = vpack.c.b16 %v1627, %v1626
        %v1695 = vpack.c.b16 %v1629, %v1628
        %v1696 = vpack.c.b16 %v1631, %v1630
        %v1697 = vpack.c.b16 %v1633, %v1632
        %v1706 = vunpack.c.l.b16 %v1363
        %v1707 = vunpack.c.l.b16 %v1364
        %v1708 = vunpack.c.l.b16 %v1365
        %v1709 = vunpack.c.l.b16 %v1366
        %v1710 = vunpack.c.l.b16 %v1367
        %v1711 = vunpack.c.l.b16 %v1368
        %v1712 = vunpack.c.l.b16 %v1369
        %v1713 = vunpack.c.l.b16 %v1370
        %v1714 = vpack.c.b16 %v1707, %v1706
        %v1715 = vpack.c.b16 %v1709, %v1708
        %v1716 = vpack.c.b16 %v1711, %v1710
        %v1717 = vpack.c.b16 %v1713, %v1712
        %vm1722 = vcmask 523264
        %v1724 = vsel %vm1722, %v1634, 0
        %v1727 = vsel %vm1722, %v1635, 0
        %v1730 = vsel %vm1722, %v1636, 0
        %v1733 = vsel %vm1722, %v1637, 0
        %v1736 = vsel %vm1722, %v1638, 0
        %v1739 = vsel %vm1722, %v1639, 0
        %v1742 = vsel %vm1722, %v1640, 0
        %v1745 = vsel %vm1722, %v1641, 0
        %v1748 = vsel %vm1722, %v1642, 0
        %v1751 = vsel %vm1722, %v1643, 0
        %v1754 = vsel %vm1722, %v1644, 0
        %v1757 = vsel %vm1722, %v1645, 0
        %v1760 = vsel %vm1722, %v1646, 0
        %v1763 = vsel %vm1722, %v1647, 0
        %v1766 = vsel %vm1722, %v1648, 0
        %v1769 = vsel %vm1722, %v1649, 0
        %v1772 = vsel %vm1722, %v1650, 0
        %v1775 = vsel %vm1722, %v1651, 0
        %v1778 = vsel %vm1722, %v1652, 0
        %v1781 = vsel %vm1722, %v1653, 0
        %v1784 = vsel %vm1722, %v1654, 0
        %v1787 = vsel %vm1722, %v1655, 0
        %v1790 = vsel %vm1722, %v1656, 0
        %v1793 = vsel %vm1722, %v1657, 0
        %v1796 = vsel %vm1722, %v1658, 0
        %v1799 = vsel %vm1722, %v1659, 0
        %v1802 = vsel %vm1722, %v1660, 0
        %v1805 = vsel %vm1722, %v1661, 0
        %v1808 = vsel %vm1722, %v1662, 0
        %v1811 = vsel %vm1722, %v1663, 0
        %v1814 = vsel %vm1722, %v1664, 0
        %v1817 = vsel %vm1722, %v1665, 0
        %v1820 = vsel %vm1722, %v1666, 0
        %v1823 = vsel %vm1722, %v1667, 0
        %v1826 = vsel %vm1722, %v1668, 0
        %v1829 = vsel %vm1722, %v1669, 0
        %v1832 = vsel %vm1722, %v1670, 0
        %v1835 = vsel %vm1722, %v1671, 0
        %v1838 = vsel %vm1722, %v1672, 0
        %v1841 = vsel %vm1722, %v1673, 0
        %v1844 = vsel %vm1722, %v1674, 0
        %v1847 = vsel %vm1722, %v1675, 0
        %v1850 = vsel %vm1722, %v1676, 0
        %v1853 = vsel %vm1722, %v1677, 0
        %v1856 = vsel %vm1722, %v1678, 0
        %v1859 = vsel %vm1722, %v1679, 0
        %v1862 = vsel %vm1722, %v1680, 0
        %v1865 = vsel %vm1722, %v1681, 0
        %v1868 = vsel %vm1722, %v1682, 0
        %v1871 = vsel %vm1722, %v1683, 0
        %v1874 = vsel %vm1722, %v1684, 0
        %v1877 = vsel %vm1722, %v1685, 0
        %v1880 = vsel %vm1722, %v1686, 0
        %v1883 = vsel %vm1722, %v1687, 0
        %v1886 = vsel %vm1722, %v1688, 0
        %v1889 = vsel %vm1722, %v1689, 0
        %v1892 = vsel %vm1722, %v1690, 0
        %v1895 = vsel %vm1722, %v1691, 0
        %v1898 = vsel %vm1722, %v1692, 0
        %v1901 = vsel %vm1722, %v1693, 0
        %v1904 = vsel %vm1722, %v1694, 0
        %v1907 = vsel %vm1722, %v1695, 0
        %v1910 = vsel %vm1722, %v1696, 0
        %v1913 = vsel %vm1722, %v1697, 0
        %1915 = vmatprep.subr.bf16.mxu0 0
        %1916 = vmatpush1.bf16.msra.mxu0 0
        %1917 = vmatprep.subr.bf16.mxu0 0
        %1918 = vmatpush1.bf16.msra.mxu0 0
        %1919 = vmatprep.subr.bf16.mxu0 0
        %1920 = vmatpush1.bf16.msra.mxu0 0
        %1921 = vmatprep.subr.bf16.mxu0 0
        %1922 = vmatpush1.bf16.msra.mxu0 0
        %1923 = vmatprep.subr.bf16.mxu0 0
        %1924 = vmatpush1.bf16.msra.mxu0 %v1717
        %1925 = vmatprep.subr.bf16.mxu0 0
        %1926 = vmatpush1.bf16.msra.mxu0 %v1716
        %1927 = vmatprep.subr.bf16.mxu0 0
        %1928 = vmatpush1.bf16.msra.mxu0 %v1715
        %1929 = vmatprep.subr.bf16.mxu0 0
        %1930 = vmatpush1.bf16.msra.mxu0 %v1714
        %1931 = vmatprep.subr.bf16.mxu0 0
        %1932 = vmatpush2.bf16.msra.mxu0 0
        %1933 = vmatprep.subr.bf16.mxu0 0
        %1934 = vmatpush2.bf16.msra.mxu0 0
        %1935 = vmatprep.subr.bf16.mxu0 0
        %1936 = vmatpush2.bf16.msra.mxu0 0
        %1937 = vmatprep.subr.bf16.mxu0 0
        %1938 = vmatpush2.bf16.msra.mxu0 0
        %1939 = vmatprep.subr.bf16.mxu0 0
        %1940 = vmatpush2.bf16.msra.mxu0 0
        %1941 = vmatprep.subr.bf16.mxu0 0
        %1942 = vmatpush2.bf16.msra.mxu0 0
        %1943 = vmatprep.subr.bf16.mxu0 0
        %1944 = vmatpush2.bf16.msra.mxu0 0
        %1945 = vmatprep.subr.bf16.mxu0 0
        %1946 = vmatpush2.bf16.msra.mxu0 0
        %1947 = vmatprep.mubr.bf16.mxu0 0
        %1948 = vmatmul.mubr.bf16.gmra.mxu0 %v1724
        %v1949 = vpop.f32.mrf.mxu0
        %v1950 = vadd.f32 %v1376, %v1949
        %v1951 = vpop.f32.mrf.mxu0
        %v1952 = vpop.f32.mrf.mxu0
        %v1953 = vadd.f32 %v1376, %v1952
        %v1954 = vpop.f32.mrf.mxu0
        %1955 = vmatprep.mubr.bf16.mxu0 0
        %1956 = vmatmul.mubr.bf16.gmra.mxu0 %v1727
        %v1957 = vpop.f32.mrf.mxu0
        %v1958 = vadd.f32 %v1376, %v1957
        %v1959 = vpop.f32.mrf.mxu0
        %v1960 = vpop.f32.mrf.mxu0
        %v1961 = vadd.f32 %v1376, %v1960
        %v1962 = vpop.f32.mrf.mxu0
        %1963 = vmatprep.mubr.bf16.mxu0 0
        %1964 = vmatmul.mubr.bf16.gmra.mxu0 %v1730
        %v1965 = vpop.f32.mrf.mxu0
        %v1966 = vadd.f32 %v1376, %v1965
        %v1967 = vpop.f32.mrf.mxu0
        %v1968 = vpop.f32.mrf.mxu0
        %v1969 = vadd.f32 %v1376, %v1968
        %v1970 = vpop.f32.mrf.mxu0
        %1971 = vmatprep.mubr.bf16.mxu0 0
        %1972 = vmatmul.mubr.bf16.gmra.mxu0 %v1733
        %v1973 = vpop.f32.mrf.mxu0
        %v1974 = vadd.f32 %v1376, %v1973
        %v1975 = vpop.f32.mrf.mxu0
        %v1976 = vpop.f32.mrf.mxu0
        %v1977 = vadd.f32 %v1376, %v1976
        %v1978 = vpop.f32.mrf.mxu0
        %1979 = vmatprep.mubr.bf16.mxu0 0
        %1980 = vmatmul.mubr.bf16.gmra.mxu0 %v1736
        %v1981 = vpop.f32.mrf.mxu0
        %v1982 = vadd.f32 %v1376, %v1981
        %v1983 = vpop.f32.mrf.mxu0
        %v1984 = vpop.f32.mrf.mxu0
        %v1985 = vadd.f32 %v1376, %v1984
        %v1986 = vpop.f32.mrf.mxu0
        %1987 = vmatprep.mubr.bf16.mxu0 0
        %1988 = vmatmul.mubr.bf16.gmra.mxu0 %v1739
        %v1989 = vpop.f32.mrf.mxu0
        %v1990 = vadd.f32 %v1376, %v1989
        %v1991 = vpop.f32.mrf.mxu0
        %v1992 = vpop.f32.mrf.mxu0
        %v1993 = vadd.f32 %v1376, %v1992
        %v1994 = vpop.f32.mrf.mxu0
        %1995 = vmatprep.mubr.bf16.mxu0 0
        %1996 = vmatmul.mubr.bf16.gmra.mxu0 %v1742
        %v1997 = vpop.f32.mrf.mxu0
        %v1998 = vadd.f32 %v1376, %v1997
        %v1999 = vpop.f32.mrf.mxu0
        %v2000 = vpop.f32.mrf.mxu0
        %v2001 = vadd.f32 %v1376, %v2000
        %v2002 = vpop.f32.mrf.mxu0
        %2003 = vmatprep.mubr.bf16.mxu0 0
        %2004 = vmatmul.mubr.bf16.gmra.mxu0 %v1745
        %v2005 = vpop.f32.mrf.mxu0
        %v2006 = vadd.f32 %v1376, %v2005
        %v2007 = vpop.f32.mrf.mxu0
        %v2008 = vpop.f32.mrf.mxu0
        %v2009 = vadd.f32 %v1376, %v2008
        %v2010 = vpop.f32.mrf.mxu0
        %2011 = vmatprep.mubr.bf16.mxu0 0
        %2012 = vmatmul.mubr.bf16.gmra.mxu0 %v1748
        %v2013 = vpop.f32.mrf.mxu0
        %v2014 = vadd.f32 %v1376, %v2013
        %v2015 = vpop.f32.mrf.mxu0
        %v2016 = vpop.f32.mrf.mxu0
        %v2017 = vadd.f32 %v1376, %v2016
        %v2018 = vpop.f32.mrf.mxu0
        %2019 = vmatprep.mubr.bf16.mxu0 0
        %2020 = vmatmul.mubr.bf16.gmra.mxu0 %v1751
        %v2021 = vpop.f32.mrf.mxu0
        %v2022 = vadd.f32 %v1376, %v2021
        %v2023 = vpop.f32.mrf.mxu0
        %v2024 = vpop.f32.mrf.mxu0
        %v2025 = vadd.f32 %v1376, %v2024
        %v2026 = vpop.f32.mrf.mxu0
        %2027 = vmatprep.mubr.bf16.mxu0 0
        %2028 = vmatmul.mubr.bf16.gmra.mxu0 %v1754
        %v2029 = vpop.f32.mrf.mxu0
        %v2030 = vadd.f32 %v1376, %v2029
        %v2031 = vpop.f32.mrf.mxu0
        %v2032 = vpop.f32.mrf.mxu0
        %v2033 = vadd.f32 %v1376, %v2032
        %v2034 = vpop.f32.mrf.mxu0
        %2035 = vmatprep.mubr.bf16.mxu0 0
        %2036 = vmatmul.mubr.bf16.gmra.mxu0 %v1757
        %v2037 = vpop.f32.mrf.mxu0
        %v2038 = vadd.f32 %v1376, %v2037
        %v2039 = vpop.f32.mrf.mxu0
        %v2040 = vpop.f32.mrf.mxu0
        %v2041 = vadd.f32 %v1376, %v2040
        %v2042 = vpop.f32.mrf.mxu0
        %2043 = vmatprep.mubr.bf16.mxu0 0
        %2044 = vmatmul.mubr.bf16.gmra.mxu0 %v1760
        %v2045 = vpop.f32.mrf.mxu0
        %v2046 = vadd.f32 %v1376, %v2045
        %v2047 = vpop.f32.mrf.mxu0
        %v2048 = vpop.f32.mrf.mxu0
        %v2049 = vadd.f32 %v1376, %v2048
        %v2050 = vpop.f32.mrf.mxu0
        %2051 = vmatprep.mubr.bf16.mxu0 0
        %2052 = vmatmul.mubr.bf16.gmra.mxu0 %v1763
        %v2053 = vpop.f32.mrf.mxu0
        %v2054 = vadd.f32 %v1376, %v2053
        %v2055 = vpop.f32.mrf.mxu0
        %v2056 = vpop.f32.mrf.mxu0
        %v2057 = vadd.f32 %v1376, %v2056
        %v2058 = vpop.f32.mrf.mxu0
        %2059 = vmatprep.mubr.bf16.mxu0 0
        %2060 = vmatmul.mubr.bf16.gmra.mxu0 %v1766
        %v2061 = vpop.f32.mrf.mxu0
        %v2062 = vadd.f32 %v1376, %v2061
        %v2063 = vpop.f32.mrf.mxu0
        %v2064 = vpop.f32.mrf.mxu0
        %v2065 = vadd.f32 %v1376, %v2064
        %v2066 = vpop.f32.mrf.mxu0
        %2067 = vmatprep.mubr.bf16.mxu0 0
        %2068 = vmatmul.mubr.bf16.gmra.mxu0 %v1769
        %v2069 = vpop.f32.mrf.mxu0
        %v2070 = vadd.f32 %v1376, %v2069
        %v2071 = vpop.f32.mrf.mxu0
        %v2072 = vpop.f32.mrf.mxu0
        %v2073 = vadd.f32 %v1376, %v2072
        %v2074 = vpop.f32.mrf.mxu0
        %2075 = vmatprep.mubr.bf16.mxu0 0
        %2076 = vmatmul.mubr.bf16.gmra.mxu0 %v1772
        %v2077 = vpop.f32.mrf.mxu0
        %v2078 = vadd.f32 %v1376, %v2077
        %v2079 = vpop.f32.mrf.mxu0
        %v2080 = vpop.f32.mrf.mxu0
        %v2081 = vadd.f32 %v1376, %v2080
        %v2082 = vpop.f32.mrf.mxu0
        %2083 = vmatprep.mubr.bf16.mxu0 0
        %2084 = vmatmul.mubr.bf16.gmra.mxu0 %v1775
        %v2085 = vpop.f32.mrf.mxu0
        %v2086 = vadd.f32 %v1376, %v2085
        %v2087 = vpop.f32.mrf.mxu0
        %v2088 = vpop.f32.mrf.mxu0
        %v2089 = vadd.f32 %v1376, %v2088
        %v2090 = vpop.f32.mrf.mxu0
        %2091 = vmatprep.mubr.bf16.mxu0 0
        %2092 = vmatmul.mubr.bf16.gmra.mxu0 %v1778
        %v2093 = vpop.f32.mrf.mxu0
        %v2094 = vadd.f32 %v1376, %v2093
        %v2095 = vpop.f32.mrf.mxu0
        %v2096 = vpop.f32.mrf.mxu0
        %v2097 = vadd.f32 %v1376, %v2096
        %v2098 = vpop.f32.mrf.mxu0
        %2099 = vmatprep.mubr.bf16.mxu0 0
        %2100 = vmatmul.mubr.bf16.gmra.mxu0 %v1781
        %v2101 = vpop.f32.mrf.mxu0
        %v2102 = vadd.f32 %v1376, %v2101
        %v2103 = vpop.f32.mrf.mxu0
        %v2104 = vpop.f32.mrf.mxu0
        %v2105 = vadd.f32 %v1376, %v2104
        %v2106 = vpop.f32.mrf.mxu0
        %2107 = vmatprep.mubr.bf16.mxu0 0
        %2108 = vmatmul.mubr.bf16.gmra.mxu0 %v1784
        %v2109 = vpop.f32.mrf.mxu0
        %v2110 = vadd.f32 %v1376, %v2109
        %v2111 = vpop.f32.mrf.mxu0
        %v2112 = vpop.f32.mrf.mxu0
        %v2113 = vadd.f32 %v1376, %v2112
        %v2114 = vpop.f32.mrf.mxu0
        %2115 = vmatprep.mubr.bf16.mxu0 0
        %2116 = vmatmul.mubr.bf16.gmra.mxu0 %v1787
        %v2117 = vpop.f32.mrf.mxu0
        %v2118 = vadd.f32 %v1376, %v2117
        %v2119 = vpop.f32.mrf.mxu0
        %v2120 = vpop.f32.mrf.mxu0
        %v2121 = vadd.f32 %v1376, %v2120
        %v2122 = vpop.f32.mrf.mxu0
        %2123 = vmatprep.mubr.bf16.mxu0 0
        %2124 = vmatmul.mubr.bf16.gmra.mxu0 %v1790
        %v2125 = vpop.f32.mrf.mxu0
        %v2126 = vadd.f32 %v1376, %v2125
        %v2127 = vpop.f32.mrf.mxu0
        %v2128 = vpop.f32.mrf.mxu0
        %v2129 = vadd.f32 %v1376, %v2128
        %v2130 = vpop.f32.mrf.mxu0
        %2131 = vmatprep.mubr.bf16.mxu0 0
        %2132 = vmatmul.mubr.bf16.gmra.mxu0 %v1793
        %v2133 = vpop.f32.mrf.mxu0
        %v2134 = vadd.f32 %v1376, %v2133
        %v2135 = vpop.f32.mrf.mxu0
        %v2136 = vpop.f32.mrf.mxu0
        %v2137 = vadd.f32 %v1376, %v2136
        %v2138 = vpop.f32.mrf.mxu0
        %2139 = vmatprep.mubr.bf16.mxu0 0
        %2140 = vmatmul.mubr.bf16.gmra.mxu0 %v1796
        %v2141 = vpop.f32.mrf.mxu0
        %v2142 = vadd.f32 %v1376, %v2141
        %v2143 = vpop.f32.mrf.mxu0
        %v2144 = vpop.f32.mrf.mxu0
        %v2145 = vadd.f32 %v1376, %v2144
        %v2146 = vpop.f32.mrf.mxu0
        %2147 = vmatprep.mubr.bf16.mxu0 0
        %2148 = vmatmul.mubr.bf16.gmra.mxu0 %v1799
        %v2149 = vpop.f32.mrf.mxu0
        %v2150 = vadd.f32 %v1376, %v2149
        %v2151 = vpop.f32.mrf.mxu0
        %v2152 = vpop.f32.mrf.mxu0
        %v2153 = vadd.f32 %v1376, %v2152
        %v2154 = vpop.f32.mrf.mxu0
        %2155 = vmatprep.mubr.bf16.mxu0 0
        %2156 = vmatmul.mubr.bf16.gmra.mxu0 %v1802
        %v2157 = vpop.f32.mrf.mxu0
        %v2158 = vadd.f32 %v1376, %v2157
        %v2159 = vpop.f32.mrf.mxu0
        %v2160 = vpop.f32.mrf.mxu0
        %v2161 = vadd.f32 %v1376, %v2160
        %v2162 = vpop.f32.mrf.mxu0
        %2163 = vmatprep.mubr.bf16.mxu0 0
        %2164 = vmatmul.mubr.bf16.gmra.mxu0 %v1805
        %v2165 = vpop.f32.mrf.mxu0
        %v2166 = vadd.f32 %v1376, %v2165
        %v2167 = vpop.f32.mrf.mxu0
        %v2168 = vpop.f32.mrf.mxu0
        %v2169 = vadd.f32 %v1376, %v2168
        %v2170 = vpop.f32.mrf.mxu0
        %2171 = vmatprep.mubr.bf16.mxu0 0
        %2172 = vmatmul.mubr.bf16.gmra.mxu0 %v1808
        %v2173 = vpop.f32.mrf.mxu0
        %v2174 = vadd.f32 %v1376, %v2173
        %v2175 = vpop.f32.mrf.mxu0
        %v2176 = vpop.f32.mrf.mxu0
        %v2177 = vadd.f32 %v1376, %v2176
        %v2178 = vpop.f32.mrf.mxu0
        %2179 = vmatprep.mubr.bf16.mxu0 0
        %2180 = vmatmul.mubr.bf16.gmra.mxu0 %v1811
        %v2181 = vpop.f32.mrf.mxu0
        %v2182 = vadd.f32 %v1376, %v2181
        %v2183 = vpop.f32.mrf.mxu0
        %v2184 = vpop.f32.mrf.mxu0
        %v2185 = vadd.f32 %v1376, %v2184
        %v2186 = vpop.f32.mrf.mxu0
        %2187 = vmatprep.mubr.bf16.mxu0 0
        %2188 = vmatmul.mubr.bf16.gmra.mxu0 %v1814
        %v2189 = vpop.f32.mrf.mxu0
        %v2190 = vadd.f32 %v1376, %v2189
        %v2191 = vpop.f32.mrf.mxu0
        %v2192 = vpop.f32.mrf.mxu0
        %v2193 = vadd.f32 %v1376, %v2192
        %v2194 = vpop.f32.mrf.mxu0
        %2195 = vmatprep.mubr.bf16.mxu0 0
        %2196 = vmatmul.mubr.bf16.gmra.mxu0 %v1817
        %v2197 = vpop.f32.mrf.mxu0
        %v2198 = vadd.f32 %v1376, %v2197
        %v2199 = vpop.f32.mrf.mxu0
        %v2200 = vpop.f32.mrf.mxu0
        %v2201 = vadd.f32 %v1376, %v2200
        %v2202 = vpop.f32.mrf.mxu0
        %2203 = vmatprep.mubr.bf16.mxu0 0
        %2204 = vmatmul.mubr.bf16.gmra.mxu0 %v1820
        %v2205 = vpop.f32.mrf.mxu0
        %v2206 = vadd.f32 %v1376, %v2205
        %v2207 = vpop.f32.mrf.mxu0
        %v2208 = vpop.f32.mrf.mxu0
        %v2209 = vadd.f32 %v1376, %v2208
        %v2210 = vpop.f32.mrf.mxu0
        %2211 = vmatprep.mubr.bf16.mxu0 0
        %2212 = vmatmul.mubr.bf16.gmra.mxu0 %v1823
        %v2213 = vpop.f32.mrf.mxu0
        %v2214 = vadd.f32 %v1376, %v2213
        %v2215 = vpop.f32.mrf.mxu0
        %v2216 = vpop.f32.mrf.mxu0
        %v2217 = vadd.f32 %v1376, %v2216
        %v2218 = vpop.f32.mrf.mxu0
        %2219 = vmatprep.mubr.bf16.mxu0 0
        %2220 = vmatmul.mubr.bf16.gmra.mxu0 %v1826
        %v2221 = vpop.f32.mrf.mxu0
        %v2222 = vadd.f32 %v1376, %v2221
        %v2223 = vpop.f32.mrf.mxu0
        %v2224 = vpop.f32.mrf.mxu0
        %v2225 = vadd.f32 %v1376, %v2224
        %v2226 = vpop.f32.mrf.mxu0
        %2227 = vmatprep.mubr.bf16.mxu0 0
        %2228 = vmatmul.mubr.bf16.gmra.mxu0 %v1829
        %v2229 = vpop.f32.mrf.mxu0
        %v2230 = vadd.f32 %v1376, %v2229
        %v2231 = vpop.f32.mrf.mxu0
        %v2232 = vpop.f32.mrf.mxu0
        %v2233 = vadd.f32 %v1376, %v2232
        %v2234 = vpop.f32.mrf.mxu0
        %2235 = vmatprep.mubr.bf16.mxu0 0
        %2236 = vmatmul.mubr.bf16.gmra.mxu0 %v1832
        %v2237 = vpop.f32.mrf.mxu0
        %v2238 = vadd.f32 %v1376, %v2237
        %v2239 = vpop.f32.mrf.mxu0
        %v2240 = vpop.f32.mrf.mxu0
        %v2241 = vadd.f32 %v1376, %v2240
        %v2242 = vpop.f32.mrf.mxu0
        %2243 = vmatprep.mubr.bf16.mxu0 0
        %2244 = vmatmul.mubr.bf16.gmra.mxu0 %v1835
        %v2245 = vpop.f32.mrf.mxu0
        %v2246 = vadd.f32 %v1376, %v2245
        %v2247 = vpop.f32.mrf.mxu0
        %v2248 = vpop.f32.mrf.mxu0
        %v2249 = vadd.f32 %v1376, %v2248
        %v2250 = vpop.f32.mrf.mxu0
        %2251 = vmatprep.mubr.bf16.mxu0 0
        %2252 = vmatmul.mubr.bf16.gmra.mxu0 %v1838
        %v2253 = vpop.f32.mrf.mxu0
        %v2254 = vadd.f32 %v1376, %v2253
        %v2255 = vpop.f32.mrf.mxu0
        %v2256 = vpop.f32.mrf.mxu0
        %v2257 = vadd.f32 %v1376, %v2256
        %v2258 = vpop.f32.mrf.mxu0
        %2259 = vmatprep.mubr.bf16.mxu0 0
        %2260 = vmatmul.mubr.bf16.gmra.mxu0 %v1841
        %v2261 = vpop.f32.mrf.mxu0
        %v2262 = vadd.f32 %v1376, %v2261
        %v2263 = vpop.f32.mrf.mxu0
        %v2264 = vpop.f32.mrf.mxu0
        %v2265 = vadd.f32 %v1376, %v2264
        %v2266 = vpop.f32.mrf.mxu0
        %2267 = vmatprep.mubr.bf16.mxu0 0
        %2268 = vmatmul.mubr.bf16.gmra.mxu0 %v1844
        %v2269 = vpop.f32.mrf.mxu0
        %v2270 = vadd.f32 %v1376, %v2269
        %v2271 = vpop.f32.mrf.mxu0
        %v2272 = vpop.f32.mrf.mxu0
        %v2273 = vadd.f32 %v1376, %v2272
        %v2274 = vpop.f32.mrf.mxu0
        %2275 = vmatprep.mubr.bf16.mxu0 0
        %2276 = vmatmul.mubr.bf16.gmra.mxu0 %v1847
        %v2277 = vpop.f32.mrf.mxu0
        %v2278 = vadd.f32 %v1376, %v2277
        %v2279 = vpop.f32.mrf.mxu0
        %v2280 = vpop.f32.mrf.mxu0
        %v2281 = vadd.f32 %v1376, %v2280
        %v2282 = vpop.f32.mrf.mxu0
        %2283 = vmatprep.mubr.bf16.mxu0 0
        %2284 = vmatmul.mubr.bf16.gmra.mxu0 %v1850
        %v2285 = vpop.f32.mrf.mxu0
        %v2286 = vadd.f32 %v1376, %v2285
        %v2287 = vpop.f32.mrf.mxu0
        %v2288 = vpop.f32.mrf.mxu0
        %v2289 = vadd.f32 %v1376, %v2288
        %v2290 = vpop.f32.mrf.mxu0
        %2291 = vmatprep.mubr.bf16.mxu0 0
        %2292 = vmatmul.mubr.bf16.gmra.mxu0 %v1853
        %v2293 = vpop.f32.mrf.mxu0
        %v2294 = vadd.f32 %v1376, %v2293
        %v2295 = vpop.f32.mrf.mxu0
        %v2296 = vpop.f32.mrf.mxu0
        %v2297 = vadd.f32 %v1376, %v2296
        %v2298 = vpop.f32.mrf.mxu0
        %2299 = vmatprep.mubr.bf16.mxu0 0
        %2300 = vmatmul.mubr.bf16.gmra.mxu0 %v1856
        %v2301 = vpop.f32.mrf.mxu0
        %v2302 = vadd.f32 %v1376, %v2301
        %v2303 = vpop.f32.mrf.mxu0
        %v2304 = vpop.f32.mrf.mxu0
        %v2305 = vadd.f32 %v1376, %v2304
        %v2306 = vpop.f32.mrf.mxu0
        %2307 = vmatprep.mubr.bf16.mxu0 0
        %2308 = vmatmul.mubr.bf16.gmra.mxu0 %v1859
        %v2309 = vpop.f32.mrf.mxu0
        %v2310 = vadd.f32 %v1376, %v2309
        %v2311 = vpop.f32.mrf.mxu0
        %v2312 = vpop.f32.mrf.mxu0
        %v2313 = vadd.f32 %v1376, %v2312
        %v2314 = vpop.f32.mrf.mxu0
        %2315 = vmatprep.mubr.bf16.mxu0 0
        %2316 = vmatmul.mubr.bf16.gmra.mxu0 %v1862
        %v2317 = vpop.f32.mrf.mxu0
        %v2318 = vadd.f32 %v1376, %v2317
        %v2319 = vpop.f32.mrf.mxu0
        %v2320 = vpop.f32.mrf.mxu0
        %v2321 = vadd.f32 %v1376, %v2320
        %v2322 = vpop.f32.mrf.mxu0
        %2323 = vmatprep.mubr.bf16.mxu0 0
        %2324 = vmatmul.mubr.bf16.gmra.mxu0 %v1865
        %v2325 = vpop.f32.mrf.mxu0
        %v2326 = vadd.f32 %v1376, %v2325
        %v2327 = vpop.f32.mrf.mxu0
        %v2328 = vpop.f32.mrf.mxu0
        %v2329 = vadd.f32 %v1376, %v2328
        %v2330 = vpop.f32.mrf.mxu0
        %2331 = vmatprep.mubr.bf16.mxu0 0
        %2332 = vmatmul.mubr.bf16.gmra.mxu0 %v1868
        %v2333 = vpop.f32.mrf.mxu0
        %v2334 = vadd.f32 %v1376, %v2333
        %v2335 = vpop.f32.mrf.mxu0
        %v2336 = vpop.f32.mrf.mxu0
        %v2337 = vadd.f32 %v1376, %v2336
        %v2338 = vpop.f32.mrf.mxu0
        %2339 = vmatprep.mubr.bf16.mxu0 0
        %2340 = vmatmul.mubr.bf16.gmra.mxu0 %v1871
        %v2341 = vpop.f32.mrf.mxu0
        %v2342 = vadd.f32 %v1376, %v2341
        %v2343 = vpop.f32.mrf.mxu0
        %v2344 = vpop.f32.mrf.mxu0
        %v2345 = vadd.f32 %v1376, %v2344
        %v2346 = vpop.f32.mrf.mxu0
        %2347 = vmatprep.mubr.bf16.mxu0 0
        %2348 = vmatmul.mubr.bf16.gmra.mxu0 %v1874
        %v2349 = vpop.f32.mrf.mxu0
        %v2350 = vadd.f32 %v1376, %v2349
        %v2351 = vpop.f32.mrf.mxu0
        %v2352 = vpop.f32.mrf.mxu0
        %v2353 = vadd.f32 %v1376, %v2352
        %v2354 = vpop.f32.mrf.mxu0
        %2355 = vmatprep.mubr.bf16.mxu0 0
        %2356 = vmatmul.mubr.bf16.gmra.mxu0 %v1877
        %v2357 = vpop.f32.mrf.mxu0
        %v2358 = vadd.f32 %v1376, %v2357
        %v2359 = vpop.f32.mrf.mxu0
        %v2360 = vpop.f32.mrf.mxu0
        %v2361 = vadd.f32 %v1376, %v2360
        %v2362 = vpop.f32.mrf.mxu0
        %2363 = vmatprep.mubr.bf16.mxu0 0
        %2364 = vmatmul.mubr.bf16.gmra.mxu0 %v1880
        %v2365 = vpop.f32.mrf.mxu0
        %v2366 = vadd.f32 %v1376, %v2365
        %v2367 = vpop.f32.mrf.mxu0
        %v2368 = vpop.f32.mrf.mxu0
        %v2369 = vadd.f32 %v1376, %v2368
        %v2370 = vpop.f32.mrf.mxu0
        %2371 = vmatprep.mubr.bf16.mxu0 0
        %2372 = vmatmul.mubr.bf16.gmra.mxu0 %v1883
        %v2373 = vpop.f32.mrf.mxu0
        %v2374 = vadd.f32 %v1376, %v2373
        %v2375 = vpop.f32.mrf.mxu0
        %v2376 = vpop.f32.mrf.mxu0
        %v2377 = vadd.f32 %v1376, %v2376
        %v2378 = vpop.f32.mrf.mxu0
        %2379 = vmatprep.mubr.bf16.mxu0 0
        %2380 = vmatmul.mubr.bf16.gmra.mxu0 %v1886
        %v2381 = vpop.f32.mrf.mxu0
        %v2382 = vadd.f32 %v1376, %v2381
        %v2383 = vpop.f32.mrf.mxu0
        %v2384 = vpop.f32.mrf.mxu0
        %v2385 = vadd.f32 %v1376, %v2384
        %v2386 = vpop.f32.mrf.mxu0
        %2387 = vmatprep.mubr.bf16.mxu0 0
        %2388 = vmatmul.mubr.bf16.gmra.mxu0 %v1889
        %v2389 = vpop.f32.mrf.mxu0
        %v2390 = vadd.f32 %v1376, %v2389
        %v2391 = vpop.f32.mrf.mxu0
        %v2392 = vpop.f32.mrf.mxu0
        %v2393 = vadd.f32 %v1376, %v2392
        %v2394 = vpop.f32.mrf.mxu0
        %2395 = vmatprep.mubr.bf16.mxu0 0
        %2396 = vmatmul.mubr.bf16.gmra.mxu0 %v1892
        %v2397 = vpop.f32.mrf.mxu0
        %v2398 = vadd.f32 %v1376, %v2397
        %v2399 = vpop.f32.mrf.mxu0
        %v2400 = vpop.f32.mrf.mxu0
        %v2401 = vadd.f32 %v1376, %v2400
        %v2402 = vpop.f32.mrf.mxu0
        %2403 = vmatprep.mubr.bf16.mxu0 0
        %2404 = vmatmul.mubr.bf16.gmra.mxu0 %v1895
        %v2405 = vpop.f32.mrf.mxu0
        %v2406 = vadd.f32 %v1376, %v2405
        %v2407 = vpop.f32.mrf.mxu0
        %v2408 = vpop.f32.mrf.mxu0
        %v2409 = vadd.f32 %v1376, %v2408
        %v2410 = vpop.f32.mrf.mxu0
        %2411 = vmatprep.mubr.bf16.mxu0 0
        %2412 = vmatmul.mubr.bf16.gmra.mxu0 %v1898
        %v2413 = vpop.f32.mrf.mxu0
        %v2414 = vadd.f32 %v1376, %v2413
        %v2415 = vpop.f32.mrf.mxu0
        %v2416 = vpop.f32.mrf.mxu0
        %v2417 = vadd.f32 %v1376, %v2416
        %v2418 = vpop.f32.mrf.mxu0
        %2419 = vmatprep.mubr.bf16.mxu0 0
        %2420 = vmatmul.mubr.bf16.gmra.mxu0 %v1901
        %v2421 = vpop.f32.mrf.mxu0
        %v2422 = vadd.f32 %v1376, %v2421
        %v2423 = vpop.f32.mrf.mxu0
        %v2424 = vpop.f32.mrf.mxu0
        %v2425 = vadd.f32 %v1376, %v2424
        %v2426 = vpop.f32.mrf.mxu0
        %2427 = vmatprep.mubr.bf16.mxu0 0
        %2428 = vmatmul.mubr.bf16.gmra.mxu0 %v1904
        %v2429 = vpop.f32.mrf.mxu0
        %v2430 = vadd.f32 %v1376, %v2429
        %v2431 = vpop.f32.mrf.mxu0
        %v2432 = vpop.f32.mrf.mxu0
        %v2433 = vadd.f32 %v1376, %v2432
        %v2434 = vpop.f32.mrf.mxu0
        %2435 = vmatprep.mubr.bf16.mxu0 0
        %2436 = vmatmul.mubr.bf16.gmra.mxu0 %v1907
        %v2437 = vpop.f32.mrf.mxu0
        %v2438 = vadd.f32 %v1376, %v2437
        %v2439 = vpop.f32.mrf.mxu0
        %v2440 = vpop.f32.mrf.mxu0
        %v2441 = vadd.f32 %v1376, %v2440
        %v2442 = vpop.f32.mrf.mxu0
        %2443 = vmatprep.mubr.bf16.mxu0 0
        %2444 = vmatmul.mubr.bf16.gmra.mxu0 %v1910
        %v2445 = vpop.f32.mrf.mxu0
        %v2446 = vadd.f32 %v1376, %v2445
        %v2447 = vpop.f32.mrf.mxu0
        %v2448 = vpop.f32.mrf.mxu0
        %v2449 = vadd.f32 %v1376, %v2448
        %v2450 = vpop.f32.mrf.mxu0
        %2451 = vmatprep.mubr.bf16.mxu0 0
        %2452 = vmatmul.mubr.bf16.gmra.mxu0 %v1913
        %v2453 = vpop.f32.mrf.mxu0
        %v2454 = vadd.f32 %v1376, %v2453
        %v2455 = vpop.f32.mrf.mxu0
        %v2456 = vpop.f32.mrf.mxu0
        %v2457 = vadd.f32 %v1376, %v2456
        %v2458 = vpop.f32.mrf.mxu0
        %2459 = vdwg.mxu0
        %v2460 = vsub.f32 0.0, %v1950
        %v2461 = vsub.f32 0.0, %v1953
        %v2462 = vsub.f32 0.0, %v1958
        %v2463 = vsub.f32 0.0, %v1961
        %v2464 = vsub.f32 0.0, %v1966
        %v2465 = vsub.f32 0.0, %v1969
        %v2466 = vsub.f32 0.0, %v1974
        %v2467 = vsub.f32 0.0, %v1977
        %v2468 = vsub.f32 0.0, %v1982
        %v2469 = vsub.f32 0.0, %v1985
        %v2470 = vsub.f32 0.0, %v1990
        %v2471 = vsub.f32 0.0, %v1993
        %v2472 = vsub.f32 0.0, %v1998
        %v2473 = vsub.f32 0.0, %v2001
        %v2474 = vsub.f32 0.0, %v2006
        %v2475 = vsub.f32 0.0, %v2009
        %v2476 = vsub.f32 0.0, %v2014
        %v2477 = vsub.f32 0.0, %v2017
        %v2478 = vsub.f32 0.0, %v2022
        %v2479 = vsub.f32 0.0, %v2025
        %v2480 = vsub.f32 0.0, %v2030
        %v2481 = vsub.f32 0.0, %v2033
        %v2482 = vsub.f32 0.0, %v2038
        %v2483 = vsub.f32 0.0, %v2041
        %v2484 = vsub.f32 0.0, %v2046
        %v2485 = vsub.f32 0.0, %v2049
        %v2486 = vsub.f32 0.0, %v2054
        %v2487 = vsub.f32 0.0, %v2057
        %v2488 = vsub.f32 0.0, %v2062
        %v2489 = vsub.f32 0.0, %v2065
        %v2490 = vsub.f32 0.0, %v2070
        %v2491 = vsub.f32 0.0, %v2073
        %v2492 = vsub.f32 0.0, %v2078
        %v2493 = vsub.f32 0.0, %v2081
        %v2494 = vsub.f32 0.0, %v2086
        %v2495 = vsub.f32 0.0, %v2089
        %v2496 = vsub.f32 0.0, %v2094
        %v2497 = vsub.f32 0.0, %v2097
        %v2498 = vsub.f32 0.0, %v2102
        %v2499 = vsub.f32 0.0, %v2105
        %v2500 = vsub.f32 0.0, %v2110
        %v2501 = vsub.f32 0.0, %v2113
        %v2502 = vsub.f32 0.0, %v2118
        %v2503 = vsub.f32 0.0, %v2121
        %v2504 = vsub.f32 0.0, %v2126
        %v2505 = vsub.f32 0.0, %v2129
        %v2506 = vsub.f32 0.0, %v2134
        %v2507 = vsub.f32 0.0, %v2137
        %v2508 = vsub.f32 0.0, %v2142
        %v2509 = vsub.f32 0.0, %v2145
        %v2510 = vsub.f32 0.0, %v2150
        %v2511 = vsub.f32 0.0, %v2153
        %v2512 = vsub.f32 0.0, %v2158
        %v2513 = vsub.f32 0.0, %v2161
        %v2514 = vsub.f32 0.0, %v2166
        %v2515 = vsub.f32 0.0, %v2169
        %v2516 = vsub.f32 0.0, %v2174
        %v2517 = vsub.f32 0.0, %v2177
        %v2518 = vsub.f32 0.0, %v2182
        %v2519 = vsub.f32 0.0, %v2185
        %v2520 = vsub.f32 0.0, %v2190
        %v2521 = vsub.f32 0.0, %v2193
        %v2522 = vsub.f32 0.0, %v2198
        %v2523 = vsub.f32 0.0, %v2201
        %v2524 = vsub.f32 0.0, %v2206
        %v2525 = vsub.f32 0.0, %v2209
        %v2526 = vsub.f32 0.0, %v2214
        %v2527 = vsub.f32 0.0, %v2217
        %v2528 = vsub.f32 0.0, %v2222
        %v2529 = vsub.f32 0.0, %v2225
        %v2530 = vsub.f32 0.0, %v2230
        %v2531 = vsub.f32 0.0, %v2233
        %v2532 = vsub.f32 0.0, %v2238
        %v2533 = vsub.f32 0.0, %v2241
        %v2534 = vsub.f32 0.0, %v2246
        %v2535 = vsub.f32 0.0, %v2249
        %v2536 = vsub.f32 0.0, %v2254
        %v2537 = vsub.f32 0.0, %v2257
        %v2538 = vsub.f32 0.0, %v2262
        %v2539 = vsub.f32 0.0, %v2265
        %v2540 = vsub.f32 0.0, %v2270
        %v2541 = vsub.f32 0.0, %v2273
        %v2542 = vsub.f32 0.0, %v2278
        %v2543 = vsub.f32 0.0, %v2281
        %v2544 = vsub.f32 0.0, %v2286
        %v2545 = vsub.f32 0.0, %v2289
        %v2546 = vsub.f32 0.0, %v2294
        %v2547 = vsub.f32 0.0, %v2297
        %v2548 = vsub.f32 0.0, %v2302
        %v2549 = vsub.f32 0.0, %v2305
        %v2550 = vsub.f32 0.0, %v2310
        %v2551 = vsub.f32 0.0, %v2313
        %v2552 = vsub.f32 0.0, %v2318
        %v2553 = vsub.f32 0.0, %v2321
        %v2554 = vsub.f32 0.0, %v2326
        %v2555 = vsub.f32 0.0, %v2329
        %v2556 = vsub.f32 0.0, %v2334
        %v2557 = vsub.f32 0.0, %v2337
        %v2558 = vsub.f32 0.0, %v2342
        %v2559 = vsub.f32 0.0, %v2345
        %v2560 = vsub.f32 0.0, %v2350
        %v2561 = vsub.f32 0.0, %v2353
        %v2562 = vsub.f32 0.0, %v2358
        %v2563 = vsub.f32 0.0, %v2361
        %v2564 = vsub.f32 0.0, %v2366
        %v2565 = vsub.f32 0.0, %v2369
        %v2566 = vsub.f32 0.0, %v2374
        %v2567 = vsub.f32 0.0, %v2377
        %v2568 = vsub.f32 0.0, %v2382
        %v2569 = vsub.f32 0.0, %v2385
        %v2570 = vsub.f32 0.0, %v2390
        %v2571 = vsub.f32 0.0, %v2393
        %v2572 = vsub.f32 0.0, %v2398
        %v2573 = vsub.f32 0.0, %v2401
        %v2574 = vsub.f32 0.0, %v2406
        %v2575 = vsub.f32 0.0, %v2409
        %v2576 = vsub.f32 0.0, %v2414
        %v2577 = vsub.f32 0.0, %v2417
        %v2578 = vsub.f32 0.0, %v2422
        %v2579 = vsub.f32 0.0, %v2425
        %v2580 = vsub.f32 0.0, %v2430
        %v2581 = vsub.f32 0.0, %v2433
        %v2582 = vsub.f32 0.0, %v2438
        %v2583 = vsub.f32 0.0, %v2441
        %v2584 = vsub.f32 0.0, %v2446
        %v2585 = vsub.f32 0.0, %v2449
        %v2586 = vsub.f32 0.0, %v2454
        %v2587 = vsub.f32 0.0, %v2457
        %v2588 = vmul.f32 %v2460, 1.442695
        %v2589 = vpow.pop %v2588
        %v2590 = vmul.f32 %v2461, 1.442695
        %v2591 = vpow.pop %v2590
        %v2592 = vmul.f32 %v2462, 1.442695
        %v2593 = vpow.pop %v2592
        %v2594 = vmul.f32 %v2463, 1.442695
        %v2595 = vpow.pop %v2594
        %v2596 = vmul.f32 %v2464, 1.442695
        %v2597 = vpow.pop %v2596
        %v2598 = vmul.f32 %v2465, 1.442695
        %v2599 = vpow.pop %v2598
        %v2600 = vmul.f32 %v2466, 1.442695
        %v2601 = vpow.pop %v2600
        %v2602 = vmul.f32 %v2467, 1.442695
        %v2603 = vpow.pop %v2602
        %v2604 = vmul.f32 %v2468, 1.442695
        %v2605 = vpow.pop %v2604
        %v2606 = vmul.f32 %v2469, 1.442695
        %v2607 = vpow.pop %v2606
        %v2608 = vmul.f32 %v2470, 1.442695
        %v2609 = vpow.pop %v2608
        %v2610 = vmul.f32 %v2471, 1.442695
        %v2611 = vpow.pop %v2610
        %v2612 = vmul.f32 %v2472, 1.442695
        %v2613 = vpow.pop %v2612
        %v2614 = vmul.f32 %v2473, 1.442695
        %v2615 = vpow.pop %v2614
        %v2616 = vmul.f32 %v2474, 1.442695
        %v2617 = vpow.pop %v2616
        %v2618 = vmul.f32 %v2475, 1.442695
        %v2619 = vpow.pop %v2618
        %v2620 = vmul.f32 %v2476, 1.442695
        %v2621 = vpow.pop %v2620
        %v2622 = vmul.f32 %v2477, 1.442695
        %v2623 = vpow.pop %v2622
        %v2624 = vmul.f32 %v2478, 1.442695
        %v2625 = vpow.pop %v2624
        %v2626 = vmul.f32 %v2479, 1.442695
        %v2627 = vpow.pop %v2626
        %v2628 = vmul.f32 %v2480, 1.442695
        %v2629 = vpow.pop %v2628
        %v2630 = vmul.f32 %v2481, 1.442695
        %v2631 = vpow.pop %v2630
        %v2632 = vmul.f32 %v2482, 1.442695
        %v2633 = vpow.pop %v2632
        %v2634 = vmul.f32 %v2483, 1.442695
        %v2635 = vpow.pop %v2634
        %v2636 = vmul.f32 %v2484, 1.442695
        %v2637 = vpow.pop %v2636
        %v2638 = vmul.f32 %v2485, 1.442695
        %v2639 = vpow.pop %v2638
        %v2640 = vmul.f32 %v2486, 1.442695
        %v2641 = vpow.pop %v2640
        %v2642 = vmul.f32 %v2487, 1.442695
        %v2643 = vpow.pop %v2642
        %v2644 = vmul.f32 %v2488, 1.442695
        %v2645 = vpow.pop %v2644
        %v2646 = vmul.f32 %v2489, 1.442695
        %v2647 = vpow.pop %v2646
        %v2648 = vmul.f32 %v2490, 1.442695
        %v2649 = vpow.pop %v2648
        %v2650 = vmul.f32 %v2491, 1.442695
        %v2651 = vpow.pop %v2650
        %v2652 = vmul.f32 %v2492, 1.442695
        %v2653 = vpow.pop %v2652
        %v2654 = vmul.f32 %v2493, 1.442695
        %v2655 = vpow.pop %v2654
        %v2656 = vmul.f32 %v2494, 1.442695
        %v2657 = vpow.pop %v2656
        %v2658 = vmul.f32 %v2495, 1.442695
        %v2659 = vpow.pop %v2658
        %v2660 = vmul.f32 %v2496, 1.442695
        %v2661 = vpow.pop %v2660
        %v2662 = vmul.f32 %v2497, 1.442695
        %v2663 = vpow.pop %v2662
        %v2664 = vmul.f32 %v2498, 1.442695
        %v2665 = vpow.pop %v2664
        %v2666 = vmul.f32 %v2499, 1.442695
        %v2667 = vpow.pop %v2666
        %v2668 = vmul.f32 %v2500, 1.442695
        %v2669 = vpow.pop %v2668
        %v2670 = vmul.f32 %v2501, 1.442695
        %v2671 = vpow.pop %v2670
        %v2672 = vmul.f32 %v2502, 1.442695
        %v2673 = vpow.pop %v2672
        %v2674 = vmul.f32 %v2503, 1.442695
        %v2675 = vpow.pop %v2674
        %v2676 = vmul.f32 %v2504, 1.442695
        %v2677 = vpow.pop %v2676
        %v2678 = vmul.f32 %v2505, 1.442695
        %v2679 = vpow.pop %v2678
        %v2680 = vmul.f32 %v2506, 1.442695
        %v2681 = vpow.pop %v2680
        %v2682 = vmul.f32 %v2507, 1.442695
        %v2683 = vpow.pop %v2682
        %v2684 = vmul.f32 %v2508, 1.442695
        %v2685 = vpow.pop %v2684
        %v2686 = vmul.f32 %v2509, 1.442695
        %v2687 = vpow.pop %v2686
        %v2688 = vmul.f32 %v2510, 1.442695
        %v2689 = vpow.pop %v2688
        %v2690 = vmul.f32 %v2511, 1.442695
        %v2691 = vpow.pop %v2690
        %v2692 = vmul.f32 %v2512, 1.442695
        %v2693 = vpow.pop %v2692
        %v2694 = vmul.f32 %v2513, 1.442695
        %v2695 = vpow.pop %v2694
        %v2696 = vmul.f32 %v2514, 1.442695
        %v2697 = vpow.pop %v2696
        %v2698 = vmul.f32 %v2515, 1.442695
        %v2699 = vpow.pop %v2698
        %v2700 = vmul.f32 %v2516, 1.442695
        %v2701 = vpow.pop %v2700
        %v2702 = vmul.f32 %v2517, 1.442695
        %v2703 = vpow.pop %v2702
        %v2704 = vmul.f32 %v2518, 1.442695
        %v2705 = vpow.pop %v2704
        %v2706 = vmul.f32 %v2519, 1.442695
        %v2707 = vpow.pop %v2706
        %v2708 = vmul.f32 %v2520, 1.442695
        %v2709 = vpow.pop %v2708
        %v2710 = vmul.f32 %v2521, 1.442695
        %v2711 = vpow.pop %v2710
        %v2712 = vmul.f32 %v2522, 1.442695
        %v2713 = vpow.pop %v2712
        %v2714 = vmul.f32 %v2523, 1.442695
        %v2715 = vpow.pop %v2714
        %v2716 = vmul.f32 %v2524, 1.442695
        %v2717 = vpow.pop %v2716
        %v2718 = vmul.f32 %v2525, 1.442695
        %v2719 = vpow.pop %v2718
        %v2720 = vmul.f32 %v2526, 1.442695
        %v2721 = vpow.pop %v2720
        %v2722 = vmul.f32 %v2527, 1.442695
        %v2723 = vpow.pop %v2722
        %v2724 = vmul.f32 %v2528, 1.442695
        %v2725 = vpow.pop %v2724
        %v2726 = vmul.f32 %v2529, 1.442695
        %v2727 = vpow.pop %v2726
        %v2728 = vmul.f32 %v2530, 1.442695
        %v2729 = vpow.pop %v2728
        %v2730 = vmul.f32 %v2531, 1.442695
        %v2731 = vpow.pop %v2730
        %v2732 = vmul.f32 %v2532, 1.442695
        %v2733 = vpow.pop %v2732
        %v2734 = vmul.f32 %v2533, 1.442695
        %v2735 = vpow.pop %v2734
        %v2736 = vmul.f32 %v2534, 1.442695
        %v2737 = vpow.pop %v2736
        %v2738 = vmul.f32 %v2535, 1.442695
        %v2739 = vpow.pop %v2738
        %v2740 = vmul.f32 %v2536, 1.442695
        %v2741 = vpow.pop %v2740
        %v2742 = vmul.f32 %v2537, 1.442695
        %v2743 = vpow.pop %v2742
        %v2744 = vmul.f32 %v2538, 1.442695
        %v2745 = vpow.pop %v2744
        %v2746 = vmul.f32 %v2539, 1.442695
        %v2747 = vpow.pop %v2746
        %v2748 = vmul.f32 %v2540, 1.442695
        %v2749 = vpow.pop %v2748
        %v2750 = vmul.f32 %v2541, 1.442695
        %v2751 = vpow.pop %v2750
        %v2752 = vmul.f32 %v2542, 1.442695
        %v2753 = vpow.pop %v2752
        %v2754 = vmul.f32 %v2543, 1.442695
        %v2755 = vpow.pop %v2754
        %v2756 = vmul.f32 %v2544, 1.442695
        %v2757 = vpow.pop %v2756
        %v2758 = vmul.f32 %v2545, 1.442695
        %v2759 = vpow.pop %v2758
        %v2760 = vmul.f32 %v2546, 1.442695
        %v2761 = vpow.pop %v2760
        %v2762 = vmul.f32 %v2547, 1.442695
        %v2763 = vpow.pop %v2762
        %v2764 = vmul.f32 %v2548, 1.442695
        %v2765 = vpow.pop %v2764
        %v2766 = vmul.f32 %v2549, 1.442695
        %v2767 = vpow.pop %v2766
        %v2768 = vmul.f32 %v2550, 1.442695
        %v2769 = vpow.pop %v2768
        %v2770 = vmul.f32 %v2551, 1.442695
        %v2771 = vpow.pop %v2770
        %v2772 = vmul.f32 %v2552, 1.442695
        %v2773 = vpow.pop %v2772
        %v2774 = vmul.f32 %v2553, 1.442695
        %v2775 = vpow.pop %v2774
        %v2776 = vmul.f32 %v2554, 1.442695
        %v2777 = vpow.pop %v2776
        %v2778 = vmul.f32 %v2555, 1.442695
        %v2779 = vpow.pop %v2778
        %v2780 = vmul.f32 %v2556, 1.442695
        %v2781 = vpow.pop %v2780
        %v2782 = vmul.f32 %v2557, 1.442695
        %v2783 = vpow.pop %v2782
        %v2784 = vmul.f32 %v2558, 1.442695
        %v2785 = vpow.pop %v2784
        %v2786 = vmul.f32 %v2559, 1.442695
        %v2787 = vpow.pop %v2786
        %v2788 = vmul.f32 %v2560, 1.442695
        %v2789 = vpow.pop %v2788
        %v2790 = vmul.f32 %v2561, 1.442695
        %v2791 = vpow.pop %v2790
        %v2792 = vmul.f32 %v2562, 1.442695
        %v2793 = vpow.pop %v2792
        %v2794 = vmul.f32 %v2563, 1.442695
        %v2795 = vpow.pop %v2794
        %v2796 = vmul.f32 %v2564, 1.442695
        %v2797 = vpow.pop %v2796
        %v2798 = vmul.f32 %v2565, 1.442695
        %v2799 = vpow.pop %v2798
        %v2800 = vmul.f32 %v2566, 1.442695
        %v2801 = vpow.pop %v2800
        %v2802 = vmul.f32 %v2567, 1.442695
        %v2803 = vpow.pop %v2802
        %v2804 = vmul.f32 %v2568, 1.442695
        %v2805 = vpow.pop %v2804
        %v2806 = vmul.f32 %v2569, 1.442695
        %v2807 = vpow.pop %v2806
        %v2808 = vmul.f32 %v2570, 1.442695
        %v2809 = vpow.pop %v2808
        %v2810 = vmul.f32 %v2571, 1.442695
        %v2811 = vpow.pop %v2810
        %v2812 = vmul.f32 %v2572, 1.442695
        %v2813 = vpow.pop %v2812
        %v2814 = vmul.f32 %v2573, 1.442695
        %v2815 = vpow.pop %v2814
        %v2816 = vmul.f32 %v2574, 1.442695
        %v2817 = vpow.pop %v2816
        %v2818 = vmul.f32 %v2575, 1.442695
        %v2819 = vpow.pop %v2818
        %v2820 = vmul.f32 %v2576, 1.442695
        %v2821 = vpow.pop %v2820
        %v2822 = vmul.f32 %v2577, 1.442695
        %v2823 = vpow.pop %v2822
        %v2824 = vmul.f32 %v2578, 1.442695
        %v2825 = vpow.pop %v2824
        %v2826 = vmul.f32 %v2579, 1.442695
        %v2827 = vpow.pop %v2826
        %v2828 = vmul.f32 %v2580, 1.442695
        %v2829 = vpow.pop %v2828
        %v2830 = vmul.f32 %v2581, 1.442695
        %v2831 = vpow.pop %v2830
        %v2832 = vmul.f32 %v2582, 1.442695
        %v2833 = vpow.pop %v2832
        %v2834 = vmul.f32 %v2583, 1.442695
        %v2835 = vpow.pop %v2834
        %v2836 = vmul.f32 %v2584, 1.442695
        %v2837 = vpow.pop %v2836
        %v2838 = vmul.f32 %v2585, 1.442695
        %v2839 = vpow.pop %v2838
        %v2840 = vmul.f32 %v2586, 1.442695
        %v2841 = vpow.pop %v2840
        %v2842 = vmul.f32 %v2587, 1.442695
        %v2843 = vpow.pop %v2842
        %v2844 = vadd.f32 %v2589, 1.0
        %v2845 = vadd.f32 %v2591, 1.0
        %v2846 = vadd.f32 %v2593, 1.0
        %v2847 = vadd.f32 %v2595, 1.0
        %v2848 = vadd.f32 %v2597, 1.0
        %v2849 = vadd.f32 %v2599, 1.0
        %v2850 = vadd.f32 %v2601, 1.0
        %v2851 = vadd.f32 %v2603, 1.0
        %v2852 = vadd.f32 %v2605, 1.0
        %v2853 = vadd.f32 %v2607, 1.0
        %v2854 = vadd.f32 %v2609, 1.0
        %v2855 = vadd.f32 %v2611, 1.0
        %v2856 = vadd.f32 %v2613, 1.0
        %v2857 = vadd.f32 %v2615, 1.0
        %v2858 = vadd.f32 %v2617, 1.0
        %v2859 = vadd.f32 %v2619, 1.0
        %v2860 = vadd.f32 %v2621, 1.0
        %v2861 = vadd.f32 %v2623, 1.0
        %v2862 = vadd.f32 %v2625, 1.0
        %v2863 = vadd.f32 %v2627, 1.0
        %v2864 = vadd.f32 %v2629, 1.0
        %v2865 = vadd.f32 %v2631, 1.0
        %v2866 = vadd.f32 %v2633, 1.0
        %v2867 = vadd.f32 %v2635, 1.0
        %v2868 = vadd.f32 %v2637, 1.0
        %v2869 = vadd.f32 %v2639, 1.0
        %v2870 = vadd.f32 %v2641, 1.0
        %v2871 = vadd.f32 %v2643, 1.0
        %v2872 = vadd.f32 %v2645, 1.0
        %v2873 = vadd.f32 %v2647, 1.0
        %v2874 = vadd.f32 %v2649, 1.0
        %v2875 = vadd.f32 %v2651, 1.0
        %v2876 = vadd.f32 %v2653, 1.0
        %v2877 = vadd.f32 %v2655, 1.0
        %v2878 = vadd.f32 %v2657, 1.0
        %v2879 = vadd.f32 %v2659, 1.0
        %v2880 = vadd.f32 %v2661, 1.0
        %v2881 = vadd.f32 %v2663, 1.0
        %v2882 = vadd.f32 %v2665, 1.0
        %v2883 = vadd.f32 %v2667, 1.0
        %v2884 = vadd.f32 %v2669, 1.0
        %v2885 = vadd.f32 %v2671, 1.0
        %v2886 = vadd.f32 %v2673, 1.0
        %v2887 = vadd.f32 %v2675, 1.0
        %v2888 = vadd.f32 %v2677, 1.0
        %v2889 = vadd.f32 %v2679, 1.0
        %v2890 = vadd.f32 %v2681, 1.0
        %v2891 = vadd.f32 %v2683, 1.0
        %v2892 = vadd.f32 %v2685, 1.0
        %v2893 = vadd.f32 %v2687, 1.0
        %v2894 = vadd.f32 %v2689, 1.0
        %v2895 = vadd.f32 %v2691, 1.0
        %v2896 = vadd.f32 %v2693, 1.0
        %v2897 = vadd.f32 %v2695, 1.0
        %v2898 = vadd.f32 %v2697, 1.0
        %v2899 = vadd.f32 %v2699, 1.0
        %v2900 = vadd.f32 %v2701, 1.0
        %v2901 = vadd.f32 %v2703, 1.0
        %v2902 = vadd.f32 %v2705, 1.0
        %v2903 = vadd.f32 %v2707, 1.0
        %v2904 = vadd.f32 %v2709, 1.0
        %v2905 = vadd.f32 %v2711, 1.0
        %v2906 = vadd.f32 %v2713, 1.0
        %v2907 = vadd.f32 %v2715, 1.0
        %v2908 = vadd.f32 %v2717, 1.0
        %v2909 = vadd.f32 %v2719, 1.0
        %v2910 = vadd.f32 %v2721, 1.0
        %v2911 = vadd.f32 %v2723, 1.0
        %v2912 = vadd.f32 %v2725, 1.0
        %v2913 = vadd.f32 %v2727, 1.0
        %v2914 = vadd.f32 %v2729, 1.0
        %v2915 = vadd.f32 %v2731, 1.0
        %v2916 = vadd.f32 %v2733, 1.0
        %v2917 = vadd.f32 %v2735, 1.0
        %v2918 = vadd.f32 %v2737, 1.0
        %v2919 = vadd.f32 %v2739, 1.0
        %v2920 = vadd.f32 %v2741, 1.0
        %v2921 = vadd.f32 %v2743, 1.0
        %v2922 = vadd.f32 %v2745, 1.0
        %v2923 = vadd.f32 %v2747, 1.0
        %v2924 = vadd.f32 %v2749, 1.0
        %v2925 = vadd.f32 %v2751, 1.0
        %v2926 = vadd.f32 %v2753, 1.0
        %v2927 = vadd.f32 %v2755, 1.0
        %v2928 = vadd.f32 %v2757, 1.0
        %v2929 = vadd.f32 %v2759, 1.0
        %v2930 = vadd.f32 %v2761, 1.0
        %v2931 = vadd.f32 %v2763, 1.0
        %v2932 = vadd.f32 %v2765, 1.0
        %v2933 = vadd.f32 %v2767, 1.0
        %v2934 = vadd.f32 %v2769, 1.0
        %v2935 = vadd.f32 %v2771, 1.0
        %v2936 = vadd.f32 %v2773, 1.0
        %v2937 = vadd.f32 %v2775, 1.0
        %v2938 = vadd.f32 %v2777, 1.0
        %v2939 = vadd.f32 %v2779, 1.0
        %v2940 = vadd.f32 %v2781, 1.0
        %v2941 = vadd.f32 %v2783, 1.0
        %v2942 = vadd.f32 %v2785, 1.0
        %v2943 = vadd.f32 %v2787, 1.0
        %v2944 = vadd.f32 %v2789, 1.0
        %v2945 = vadd.f32 %v2791, 1.0
        %v2946 = vadd.f32 %v2793, 1.0
        %v2947 = vadd.f32 %v2795, 1.0
        %v2948 = vadd.f32 %v2797, 1.0
        %v2949 = vadd.f32 %v2799, 1.0
        %v2950 = vadd.f32 %v2801, 1.0
        %v2951 = vadd.f32 %v2803, 1.0
        %v2952 = vadd.f32 %v2805, 1.0
        %v2953 = vadd.f32 %v2807, 1.0
        %v2954 = vadd.f32 %v2809, 1.0
        %v2955 = vadd.f32 %v2811, 1.0
        %v2956 = vadd.f32 %v2813, 1.0
        %v2957 = vadd.f32 %v2815, 1.0
        %v2958 = vadd.f32 %v2817, 1.0
        %v2959 = vadd.f32 %v2819, 1.0
        %v2960 = vadd.f32 %v2821, 1.0
        %v2961 = vadd.f32 %v2823, 1.0
        %v2962 = vadd.f32 %v2825, 1.0
        %v2963 = vadd.f32 %v2827, 1.0
        %v2964 = vadd.f32 %v2829, 1.0
        %v2965 = vadd.f32 %v2831, 1.0
        %v2966 = vadd.f32 %v2833, 1.0
        %v2967 = vadd.f32 %v2835, 1.0
        %v2968 = vadd.f32 %v2837, 1.0
        %v2969 = vadd.f32 %v2839, 1.0
        %v2970 = vadd.f32 %v2841, 1.0
        %v2971 = vadd.f32 %v2843, 1.0
        %v2972 = vrcp.pop %v2844
        %v2973 = vrcp.pop %v2845
        %v2974 = vrcp.pop %v2846
        %v2975 = vrcp.pop %v2847
        %v2976 = vrcp.pop %v2848
        %v2977 = vrcp.pop %v2849
        %v2978 = vrcp.pop %v2850
        %v2979 = vrcp.pop %v2851
        %v2980 = vrcp.pop %v2852
        %v2981 = vrcp.pop %v2853
        %v2982 = vrcp.pop %v2854
        %v2983 = vrcp.pop %v2855
        %v2984 = vrcp.pop %v2856
        %v2985 = vrcp.pop %v2857
        %v2986 = vrcp.pop %v2858
        %v2987 = vrcp.pop %v2859
        %v2988 = vrcp.pop %v2860
        %v2989 = vrcp.pop %v2861
        %v2990 = vrcp.pop %v2862
        %v2991 = vrcp.pop %v2863
        %v2992 = vrcp.pop %v2864
        %v2993 = vrcp.pop %v2865
        %v2994 = vrcp.pop %v2866
        %v2995 = vrcp.pop %v2867
        %v2996 = vrcp.pop %v2868
        %v2997 = vrcp.pop %v2869
        %v2998 = vrcp.pop %v2870
        %v2999 = vrcp.pop %v2871
        %v3000 = vrcp.pop %v2872
        %v3001 = vrcp.pop %v2873
        %v3002 = vrcp.pop %v2874
        %v3003 = vrcp.pop %v2875
        %v3004 = vrcp.pop %v2876
        %v3005 = vrcp.pop %v2877
        %v3006 = vrcp.pop %v2878
        %v3007 = vrcp.pop %v2879
        %v3008 = vrcp.pop %v2880
        %v3009 = vrcp.pop %v2881
        %v3010 = vrcp.pop %v2882
        %v3011 = vrcp.pop %v2883
        %v3012 = vrcp.pop %v2884
        %v3013 = vrcp.pop %v2885
        %v3014 = vrcp.pop %v2886
        %v3015 = vrcp.pop %v2887
        %v3016 = vrcp.pop %v2888
        %v3017 = vrcp.pop %v2889
        %v3018 = vrcp.pop %v2890
        %v3019 = vrcp.pop %v2891
        %v3020 = vrcp.pop %v2892
        %v3021 = vrcp.pop %v2893
        %v3022 = vrcp.pop %v2894
        %v3023 = vrcp.pop %v2895
        %v3024 = vrcp.pop %v2896
        %v3025 = vrcp.pop %v2897
        %v3026 = vrcp.pop %v2898
        %v3027 = vrcp.pop %v2899
        %v3028 = vrcp.pop %v2900
        %v3029 = vrcp.pop %v2901
        %v3030 = vrcp.pop %v2902
        %v3031 = vrcp.pop %v2903
        %v3032 = vrcp.pop %v2904
        %v3033 = vrcp.pop %v2905
        %v3034 = vrcp.pop %v2906
        %v3035 = vrcp.pop %v2907
        %v3036 = vrcp.pop %v2908
        %v3037 = vrcp.pop %v2909
        %v3038 = vrcp.pop %v2910
        %v3039 = vrcp.pop %v2911
        %v3040 = vrcp.pop %v2912
        %v3041 = vrcp.pop %v2913
        %v3042 = vrcp.pop %v2914
        %v3043 = vrcp.pop %v2915
        %v3044 = vrcp.pop %v2916
        %v3045 = vrcp.pop %v2917
        %v3046 = vrcp.pop %v2918
        %v3047 = vrcp.pop %v2919
        %v3048 = vrcp.pop %v2920
        %v3049 = vrcp.pop %v2921
        %v3050 = vrcp.pop %v2922
        %v3051 = vrcp.pop %v2923
        %v3052 = vrcp.pop %v2924
        %v3053 = vrcp.pop %v2925
        %v3054 = vrcp.pop %v2926
        %v3055 = vrcp.pop %v2927
        %v3056 = vrcp.pop %v2928
        %v3057 = vrcp.pop %v2929
        %v3058 = vrcp.pop %v2930
        %v3059 = vrcp.pop %v2931
        %v3060 = vrcp.pop %v2932
        %v3061 = vrcp.pop %v2933
        %v3062 = vrcp.pop %v2934
        %v3063 = vrcp.pop %v2935
        %v3064 = vrcp.pop %v2936
        %v3065 = vrcp.pop %v2937
        %v3066 = vrcp.pop %v2938
        %v3067 = vrcp.pop %v2939
        %v3068 = vrcp.pop %v2940
        %v3069 = vrcp.pop %v2941
        %v3070 = vrcp.pop %v2942
        %v3071 = vrcp.pop %v2943
        %v3072 = vrcp.pop %v2944
        %v3073 = vrcp.pop %v2945
        %v3074 = vrcp.pop %v2946
        %v3075 = vrcp.pop %v2947
        %v3076 = vrcp.pop %v2948
        %v3077 = vrcp.pop %v2949
        %v3078 = vrcp.pop %v2950
        %v3079 = vrcp.pop %v2951
        %v3080 = vrcp.pop %v2952
        %v3081 = vrcp.pop %v2953
        %v3082 = vrcp.pop %v2954
        %v3083 = vrcp.pop %v2955
        %v3084 = vrcp.pop %v2956
        %v3085 = vrcp.pop %v2957
        %v3086 = vrcp.pop %v2958
        %v3087 = vrcp.pop %v2959
        %v3088 = vrcp.pop %v2960
        %v3089 = vrcp.pop %v2961
        %v3090 = vrcp.pop %v2962
        %v3091 = vrcp.pop %v2963
        %v3092 = vrcp.pop %v2964
        %v3093 = vrcp.pop %v2965
        %v3094 = vrcp.pop %v2966
        %v3095 = vrcp.pop %v2967
        %v3096 = vrcp.pop %v2968
        %v3097 = vrcp.pop %v2969
        %v3098 = vrcp.pop %v2970
        %v3099 = vrcp.pop %v2971
        %v3100 = vmul.f32 %v1950, %v2972
        %v3101 = vmul.f32 %v1953, %v2973
        %v3102 = vmul.f32 %v1958, %v2974
        %v3103 = vmul.f32 %v1961, %v2975
        %v3104 = vmul.f32 %v1966, %v2976
        %v3105 = vmul.f32 %v1969, %v2977
        %v3106 = vmul.f32 %v1974, %v2978
        %v3107 = vmul.f32 %v1977, %v2979
        %v3108 = vmul.f32 %v1982, %v2980
        %v3109 = vmul.f32 %v1985, %v2981
        %v3110 = vmul.f32 %v1990, %v2982
        %v3111 = vmul.f32 %v1993, %v2983
        %v3112 = vmul.f32 %v1998, %v2984
        %v3113 = vmul.f32 %v2001, %v2985
        %v3114 = vmul.f32 %v2006, %v2986
        %v3115 = vmul.f32 %v2009, %v2987
        %v3116 = vmul.f32 %v2014, %v2988
        %v3117 = vmul.f32 %v2017, %v2989
        %v3118 = vmul.f32 %v2022, %v2990
        %v3119 = vmul.f32 %v2025, %v2991
        %v3120 = vmul.f32 %v2030, %v2992
        %v3121 = vmul.f32 %v2033, %v2993
        %v3122 = vmul.f32 %v2038, %v2994
        %v3123 = vmul.f32 %v2041, %v2995
        %v3124 = vmul.f32 %v2046, %v2996
        %v3125 = vmul.f32 %v2049, %v2997
        %v3126 = vmul.f32 %v2054, %v2998
        %v3127 = vmul.f32 %v2057, %v2999
        %v3128 = vmul.f32 %v2062, %v3000
        %v3129 = vmul.f32 %v2065, %v3001
        %v3130 = vmul.f32 %v2070, %v3002
        %v3131 = vmul.f32 %v2073, %v3003
        %v3132 = vmul.f32 %v2078, %v3004
        %v3133 = vmul.f32 %v2081, %v3005
        %v3134 = vmul.f32 %v2086, %v3006
        %v3135 = vmul.f32 %v2089, %v3007
        %v3136 = vmul.f32 %v2094, %v3008
        %v3137 = vmul.f32 %v2097, %v3009
        %v3138 = vmul.f32 %v2102, %v3010
        %v3139 = vmul.f32 %v2105, %v3011
        %v3140 = vmul.f32 %v2110, %v3012
        %v3141 = vmul.f32 %v2113, %v3013
        %v3142 = vmul.f32 %v2118, %v3014
        %v3143 = vmul.f32 %v2121, %v3015
        %v3144 = vmul.f32 %v2126, %v3016
        %v3145 = vmul.f32 %v2129, %v3017
        %v3146 = vmul.f32 %v2134, %v3018
        %v3147 = vmul.f32 %v2137, %v3019
        %v3148 = vmul.f32 %v2142, %v3020
        %v3149 = vmul.f32 %v2145, %v3021
        %v3150 = vmul.f32 %v2150, %v3022
        %v3151 = vmul.f32 %v2153, %v3023
        %v3152 = vmul.f32 %v2158, %v3024
        %v3153 = vmul.f32 %v2161, %v3025
        %v3154 = vmul.f32 %v2166, %v3026
        %v3155 = vmul.f32 %v2169, %v3027
        %v3156 = vmul.f32 %v2174, %v3028
        %v3157 = vmul.f32 %v2177, %v3029
        %v3158 = vmul.f32 %v2182, %v3030
        %v3159 = vmul.f32 %v2185, %v3031
        %v3160 = vmul.f32 %v2190, %v3032
        %v3161 = vmul.f32 %v2193, %v3033
        %v3162 = vmul.f32 %v2198, %v3034
        %v3163 = vmul.f32 %v2201, %v3035
        %v3164 = vmul.f32 %v2206, %v3036
        %v3165 = vmul.f32 %v2209, %v3037
        %v3166 = vmul.f32 %v2214, %v3038
        %v3167 = vmul.f32 %v2217, %v3039
        %v3168 = vmul.f32 %v2222, %v3040
        %v3169 = vmul.f32 %v2225, %v3041
        %v3170 = vmul.f32 %v2230, %v3042
        %v3171 = vmul.f32 %v2233, %v3043
        %v3172 = vmul.f32 %v2238, %v3044
        %v3173 = vmul.f32 %v2241, %v3045
        %v3174 = vmul.f32 %v2246, %v3046
        %v3175 = vmul.f32 %v2249, %v3047
        %v3176 = vmul.f32 %v2254, %v3048
        %v3177 = vmul.f32 %v2257, %v3049
        %v3178 = vmul.f32 %v2262, %v3050
        %v3179 = vmul.f32 %v2265, %v3051
        %v3180 = vmul.f32 %v2270, %v3052
        %v3181 = vmul.f32 %v2273, %v3053
        %v3182 = vmul.f32 %v2278, %v3054
        %v3183 = vmul.f32 %v2281, %v3055
        %v3184 = vmul.f32 %v2286, %v3056
        %v3185 = vmul.f32 %v2289, %v3057
        %v3186 = vmul.f32 %v2294, %v3058
        %v3187 = vmul.f32 %v2297, %v3059
        %v3188 = vmul.f32 %v2302, %v3060
        %v3189 = vmul.f32 %v2305, %v3061
        %v3190 = vmul.f32 %v2310, %v3062
        %v3191 = vmul.f32 %v2313, %v3063
        %v3192 = vmul.f32 %v2318, %v3064
        %v3193 = vmul.f32 %v2321, %v3065
        %v3194 = vmul.f32 %v2326, %v3066
        %v3195 = vmul.f32 %v2329, %v3067
        %v3196 = vmul.f32 %v2334, %v3068
        %v3197 = vmul.f32 %v2337, %v3069
        %v3198 = vmul.f32 %v2342, %v3070
        %v3199 = vmul.f32 %v2345, %v3071
        %v3200 = vmul.f32 %v2350, %v3072
        %v3201 = vmul.f32 %v2353, %v3073
        %v3202 = vmul.f32 %v2358, %v3074
        %v3203 = vmul.f32 %v2361, %v3075
        %v3204 = vmul.f32 %v2366, %v3076
        %v3205 = vmul.f32 %v2369, %v3077
        %v3206 = vmul.f32 %v2374, %v3078
        %v3207 = vmul.f32 %v2377, %v3079
        %v3208 = vmul.f32 %v2382, %v3080
        %v3209 = vmul.f32 %v2385, %v3081
        %v3210 = vmul.f32 %v2390, %v3082
        %v3211 = vmul.f32 %v2393, %v3083
        %v3212 = vmul.f32 %v2398, %v3084
        %v3213 = vmul.f32 %v2401, %v3085
        %v3214 = vmul.f32 %v2406, %v3086
        %v3215 = vmul.f32 %v2409, %v3087
        %v3216 = vmul.f32 %v2414, %v3088
        %v3217 = vmul.f32 %v2417, %v3089
        %v3218 = vmul.f32 %v2422, %v3090
        %v3219 = vmul.f32 %v2425, %v3091
        %v3220 = vmul.f32 %v2430, %v3092
        %v3221 = vmul.f32 %v2433, %v3093
        %v3222 = vmul.f32 %v2438, %v3094
        %v3223 = vmul.f32 %v2441, %v3095
        %v3224 = vmul.f32 %v2446, %v3096
        %v3225 = vmul.f32 %v2449, %v3097
        %v3226 = vmul.f32 %v2454, %v3098
        %v3227 = vmul.f32 %v2457, %v3099
        %v3228 = vld [vmem:[#allocation2] sm:$0xff]
        %v3229 = vadd.f32 %v3100, %v3101
        %v3230 = vadd.f32 %v3229, %v3102
        %v3231 = vadd.f32 %v3230, %v3103
        %v3232 = vadd.f32 %v3231, %v3104
        %v3233 = vadd.f32 %v3232, %v3105
        %v3234 = vadd.f32 %v3233, %v3106
        %v3235 = vadd.f32 %v3234, %v3107
        %v3236 = vadd.f32 %v3235, %v3108
        %v3237 = vadd.f32 %v3236, %v3109
        %v3238 = vadd.f32 %v3237, %v3110
        %v3239 = vadd.f32 %v3238, %v3111
        %v3240 = vadd.f32 %v3239, %v3112
        %v3241 = vadd.f32 %v3240, %v3113
        %v3242 = vadd.f32 %v3241, %v3114
        %v3243 = vadd.f32 %v3242, %v3115
        %v3244 = vrot.slane %v3243, 4
        %v3245 = vadd.f32 %v3243, %v3244
        %v3246 = vrot.slane %v3245, 2
        %v3247 = vadd.f32 %v3245, %v3246
        %v3248 = vrot.slane %v3247, 1
        %v3249 = vadd.f32 %v3247, %v3248
        %v3250 = vadd.f32 %v3116, %v3117
        %v3251 = vadd.f32 %v3250, %v3118
        %v3252 = vadd.f32 %v3251, %v3119
        %v3253 = vadd.f32 %v3252, %v3120
        %v3254 = vadd.f32 %v3253, %v3121
        %v3255 = vadd.f32 %v3254, %v3122
        %v3256 = vadd.f32 %v3255, %v3123
        %v3257 = vadd.f32 %v3256, %v3124
        %v3258 = vadd.f32 %v3257, %v3125
        %v3259 = vadd.f32 %v3258, %v3126
        %v3260 = vadd.f32 %v3259, %v3127
        %v3261 = vadd.f32 %v3260, %v3128
        %v3262 = vadd.f32 %v3261, %v3129
        %v3263 = vadd.f32 %v3262, %v3130
        %v3264 = vadd.f32 %v3263, %v3131
        %v3265 = vrot.slane %v3264, 4
        %v3266 = vadd.f32 %v3264, %v3265
        %v3267 = vrot.slane %v3266, 2
        %v3268 = vadd.f32 %v3266, %v3267
        %v3269 = vrot.slane %v3268, 1
        %v3270 = vadd.f32 %v3268, %v3269
        %v3271 = vadd.f32 %v3132, %v3133
        %v3272 = vadd.f32 %v3271, %v3134
        %v3273 = vadd.f32 %v3272, %v3135
        %v3274 = vadd.f32 %v3273, %v3136
        %v3275 = vadd.f32 %v3274, %v3137
        %v3276 = vadd.f32 %v3275, %v3138
        %v3277 = vadd.f32 %v3276, %v3139
        %v3278 = vadd.f32 %v3277, %v3140
        %v3279 = vadd.f32 %v3278, %v3141
        %v3280 = vadd.f32 %v3279, %v3142
        %v3281 = vadd.f32 %v3280, %v3143
        %v3282 = vadd.f32 %v3281, %v3144
        %v3283 = vadd.f32 %v3282, %v3145
        %v3284 = vadd.f32 %v3283, %v3146
        %v3285 = vadd.f32 %v3284, %v3147
        %v3286 = vrot.slane %v3285, 4
        %v3287 = vadd.f32 %v3285, %v3286
        %v3288 = vrot.slane %v3287, 2
        %v3289 = vadd.f32 %v3287, %v3288
        %v3290 = vrot.slane %v3289, 1
        %v3291 = vadd.f32 %v3289, %v3290
        %v3292 = vadd.f32 %v3148, %v3149
        %v3293 = vadd.f32 %v3292, %v3150
        %v3294 = vadd.f32 %v3293, %v3151
        %v3295 = vadd.f32 %v3294, %v3152
        %v3296 = vadd.f32 %v3295, %v3153
        %v3297 = vadd.f32 %v3296, %v3154
        %v3298 = vadd.f32 %v3297, %v3155
        %v3299 = vadd.f32 %v3298, %v3156
        %v3300 = vadd.f32 %v3299, %v3157
        %v3301 = vadd.f32 %v3300, %v3158
        %v3302 = vadd.f32 %v3301, %v3159
        %v3303 = vadd.f32 %v3302, %v3160
        %v3304 = vadd.f32 %v3303, %v3161
        %v3305 = vadd.f32 %v3304, %v3162
        %v3306 = vadd.f32 %v3305, %v3163
        %v3307 = vrot.slane %v3306, 4
        %v3308 = vadd.f32 %v3306, %v3307
        %v3309 = vrot.slane %v3308, 2
        %v3310 = vadd.f32 %v3308, %v3309
        %v3311 = vrot.slane %v3310, 1
        %v3312 = vadd.f32 %v3310, %v3311
        %v3313 = vadd.f32 %v3164, %v3165
        %v3314 = vadd.f32 %v3313, %v3166
        %v3315 = vadd.f32 %v3314, %v3167
        %v3316 = vadd.f32 %v3315, %v3168
        %v3317 = vadd.f32 %v3316, %v3169
        %v3318 = vadd.f32 %v3317, %v3170
        %v3319 = vadd.f32 %v3318, %v3171
        %v3320 = vadd.f32 %v3319, %v3172
        %v3321 = vadd.f32 %v3320, %v3173
        %v3322 = vadd.f32 %v3321, %v3174
        %v3323 = vadd.f32 %v3322, %v3175
        %v3324 = vadd.f32 %v3323, %v3176
        %v3325 = vadd.f32 %v3324, %v3177
        %v3326 = vadd.f32 %v3325, %v3178
        %v3327 = vadd.f32 %v3326, %v3179
        %v3328 = vrot.slane %v3327, 4
        %v3329 = vadd.f32 %v3327, %v3328
        %v3330 = vrot.slane %v3329, 2
        %v3331 = vadd.f32 %v3329, %v3330
        %v3332 = vrot.slane %v3331, 1
        %v3333 = vadd.f32 %v3331, %v3332
        %v3334 = vadd.f32 %v3180, %v3181
        %v3335 = vadd.f32 %v3334, %v3182
        %v3336 = vadd.f32 %v3335, %v3183
        %v3337 = vadd.f32 %v3336, %v3184
        %v3338 = vadd.f32 %v3337, %v3185
        %v3339 = vadd.f32 %v3338, %v3186
        %v3340 = vadd.f32 %v3339, %v3187
        %v3341 = vadd.f32 %v3340, %v3188
        %v3342 = vadd.f32 %v3341, %v3189
        %v3343 = vadd.f32 %v3342, %v3190
        %v3344 = vadd.f32 %v3343, %v3191
        %v3345 = vadd.f32 %v3344, %v3192
        %v3346 = vadd.f32 %v3345, %v3193
        %v3347 = vadd.f32 %v3346, %v3194
        %v3348 = vadd.f32 %v3347, %v3195
        %v3349 = vrot.slane %v3348, 4
        %v3350 = vadd.f32 %v3348, %v3349
        %v3351 = vrot.slane %v3350, 2
        %v3352 = vadd.f32 %v3350, %v3351
        %v3353 = vrot.slane %v3352, 1
        %v3354 = vadd.f32 %v3352, %v3353
        %v3355 = vadd.f32 %v3196, %v3197
        %v3356 = vadd.f32 %v3355, %v3198
        %v3357 = vadd.f32 %v3356, %v3199
        %v3358 = vadd.f32 %v3357, %v3200
        %v3359 = vadd.f32 %v3358, %v3201
        %v3360 = vadd.f32 %v3359, %v3202
        %v3361 = vadd.f32 %v3360, %v3203
        %v3362 = vadd.f32 %v3361, %v3204
        %v3363 = vadd.f32 %v3362, %v3205
        %v3364 = vadd.f32 %v3363, %v3206
        %v3365 = vadd.f32 %v3364, %v3207
        %v3366 = vadd.f32 %v3365, %v3208
        %v3367 = vadd.f32 %v3366, %v3209
        %v3368 = vadd.f32 %v3367, %v3210
        %v3369 = vadd.f32 %v3368, %v3211
        %v3370 = vrot.slane %v3369, 4
        %v3371 = vadd.f32 %v3369, %v3370
        %v3372 = vrot.slane %v3371, 2
        %v3373 = vadd.f32 %v3371, %v3372
        %v3374 = vrot.slane %v3373, 1
        %v3375 = vadd.f32 %v3373, %v3374
        %v3376 = vadd.f32 %v3212, %v3213
        %v3377 = vadd.f32 %v3376, %v3214
        %v3378 = vadd.f32 %v3377, %v3215
        %v3379 = vadd.f32 %v3378, %v3216
        %v3380 = vadd.f32 %v3379, %v3217
        %v3381 = vadd.f32 %v3380, %v3218
        %v3382 = vadd.f32 %v3381, %v3219
        %v3383 = vadd.f32 %v3382, %v3220
        %v3384 = vadd.f32 %v3383, %v3221
        %v3385 = vadd.f32 %v3384, %v3222
        %v3386 = vadd.f32 %v3385, %v3223
        %v3387 = vadd.f32 %v3386, %v3224
        %v3388 = vadd.f32 %v3387, %v3225
        %v3389 = vadd.f32 %v3388, %v3226
        %v3390 = vadd.f32 %v3389, %v3227
        %v3391 = vrot.slane %v3390, 4
        %v3392 = vadd.f32 %v3390, %v3391
        %v3393 = vrot.slane %v3392, 2
        %v3394 = vadd.f32 %v3392, %v3393
        %v3395 = vrot.slane %v3394, 1
        %v3396 = vadd.f32 %v3394, %v3395
        %vm3405 = vcmask 1041409
        %v3406 = vsel %vm3405, %v3270, %v3249
        %vm3407 = vcmask 1042434
        %v3408 = vsel %vm3407, %v3291, %v3406
        %vm3409 = vcmask 1043459
        %v3410 = vsel %vm3409, %v3312, %v3408
        %vm3411 = vcmask 1044484
        %v3412 = vsel %vm3411, %v3333, %v3410
        %vm3413 = vcmask 1045509
        %v3414 = vsel %vm3413, %v3354, %v3412
        %vm3415 = vcmask 1046534
        %v3416 = vsel %vm3415, %v3375, %v3414
        %vm3417 = vcmask 1047559
        %v3418 = vsel %vm3417, %v3396, %v3416
        %v3420 = vadd.f32 %v3228, %v3418
        %3421 = vst [vmem:[#allocation2] sm:$0xff] %v3420
        %p3422 = scmp.eq.s32.totalorder %s26, 1
        // Predicated region
        $region270: #{tpu_custom_call.1} parent=68 // pred_check
          %p3423 = pneg %p3422
        $region271: #{tpu_custom_call.1} parent=68 // pred_check_branch
          %3425 = sbr.rel (%p3423) target = $region273
        $region272: #{tpu_custom_call.1} parent=68 // pred_region
          %s3426 = smul.u32 4, 16
          %s3427 = smul.u32 %s3426, 4
          %s3428 = sshll.u32 %s3427, 4
          %3429 = dma.done [#allocation9], %s3428
          %s3430 = scalar_lea.sflag [#allocation9], 1
          %s3431 = smul.u32 1, 4
          %s3432 = sshll.u32 %s3431, 4
          %3433 = dma.done %s3430, %s3432
          %s3434 = scalar_lea.sflag [#allocation9], 2
          %s3435 = smul.u32 4, 64
          %s3436 = smul.u32 %s3435, 2
          %s3437 = sshll.u32 %s3436, 4
          %3438 = dma.done %s3434, %s3437
          %s3439 = scalar_lea.sflag [#allocation9], 3
          %s3440 = smul.u32 1, 2
          %s3441 = sshll.u32 %s3440, 4
          %3442 = dma.done %s3439, %s3441
          %s3443 = scalar_lea.sflag [#allocation9], 4
          %s3444 = smul.u32 4, 32
          %s3445 = smul.u32 %s3444, 1
          %s3446 = sshll.u32 %s3445, 4
          %3447 = dma.done %s3443, %s3446
          %s3448 = scalar_lea.sflag [#allocation9], 5
          %s3449 = smul.u32 1, 1
          %s3450 = sshll.u32 %s3449, 4
          %3451 = dma.done %s3448, %s3450
          %v3452 = vld [vmem:[#allocation2] sm:$0xff]
          %v3453 = vmul.f32 %v3452, 0.00390625
          %v3454 = vpack.c.bf16 %v3453, %v3453
          %v3455 = vld [vmem:[#allocation3] sm:$0xff]
          %v3456 = vld [vmem:[#allocation3 + $0x8] sm:$0xff]
          %v3457 = vld [vmem:[#allocation3 + $0x10] sm:$0xff]
          %v3458 = vld [vmem:[#allocation3 + $0x18] sm:$0xff]
          %v3459 = vld [vmem:[#allocation3 + $0x20] sm:$0xff]
          %v3460 = vld [vmem:[#allocation3 + $0x28] sm:$0xff]
          %v3461 = vld [vmem:[#allocation3 + $0x30] sm:$0xff]
          %v3462 = vld [vmem:[#allocation3 + $0x38] sm:$0xff]
          %v3463 = vld [vmem:[#allocation3 + $0x40] sm:$0xff]
          %v3464 = vld [vmem:[#allocation3 + $0x48] sm:$0xff]
          %v3465 = vld [vmem:[#allocation3 + $0x50] sm:$0xff]
          %v3466 = vld [vmem:[#allocation3 + $0x58] sm:$0xff]
          %v3467 = vld [vmem:[#allocation3 + $0x60] sm:$0xff]
          %v3468 = vld [vmem:[#allocation3 + $0x68] sm:$0xff]
          %v3469 = vld [vmem:[#allocation3 + $0x70] sm:$0xff]
          %v3470 = vld [vmem:[#allocation3 + $0x78] sm:$0xff]
          %v3471 = vld [vmem:[#allocation3 + $0x80] sm:$0xff]
          %v3472 = vld [vmem:[#allocation3 + $0x88] sm:$0xff]
          %v3473 = vld [vmem:[#allocation3 + $0x90] sm:$0xff]
          %v3474 = vld [vmem:[#allocation3 + $0x98] sm:$0xff]
          %v3475 = vld [vmem:[#allocation3 + $0xa0] sm:$0xff]
          %v3476 = vld [vmem:[#allocation3 + $0xa8] sm:$0xff]
          %v3477 = vld [vmem:[#allocation3 + $0xb0] sm:$0xff]
          %v3478 = vld [vmem:[#allocation3 + $0xb8] sm:$0xff]
          %v3479 = vld [vmem:[#allocation3 + $0xc0] sm:$0xff]
          %v3480 = vld [vmem:[#allocation3 + $0xc8] sm:$0xff]
          %v3481 = vld [vmem:[#allocation3 + $0xd0] sm:$0xff]
          %v3482 = vld [vmem:[#allocation3 + $0xd8] sm:$0xff]
          %v3483 = vld [vmem:[#allocation3 + $0xe0] sm:$0xff]
          %v3484 = vld [vmem:[#allocation3 + $0xe8] sm:$0xff]
          %v3485 = vld [vmem:[#allocation3 + $0xf0] sm:$0xff]
          %v3486 = vld [vmem:[#allocation3 + $0xf8] sm:$0xff]
          %v3487 = vld [vmem:[#allocation4] sm:$0xf]
          %v3489 = vlaneseq
          %v3490 = vshrl.u32 %v3489, 7
          %v3491 = vsub.s32 0, %v3490
          %v3492 = vrot.slane %v3487, %v3491
          %v3493 = vlaneseq
          %v3494 = vshrl.u32 %v3493, 7
          %v3495 = vsub.s32 1, %v3494
          %v3496 = vrot.slane %v3487, %v3495
          %v3497 = vlaneseq
          %v3498 = vshrl.u32 %v3497, 7
          %v3499 = vsub.s32 2, %v3498
          %v3500 = vrot.slane %v3487, %v3499
          %v3501 = vlaneseq
          %v3502 = vshrl.u32 %v3501, 7
          %v3503 = vsub.s32 3, %v3502
          %v3504 = vrot.slane %v3487, %v3503
          %v3541 = vunpack.c.l.b16 %v3455
          %v3542 = vunpack.c.h.b16 %v3455
          %v3543 = vunpack.c.l.b16 %v3456
          %v3544 = vunpack.c.h.b16 %v3456
          %v3545 = vunpack.c.l.b16 %v3457
          %v3546 = vunpack.c.h.b16 %v3457
          %v3547 = vunpack.c.l.b16 %v3458
          %v3548 = vunpack.c.h.b16 %v3458
          %v3549 = vunpack.c.l.b16 %v3459
          %v3550 = vunpack.c.h.b16 %v3459
          %v3551 = vunpack.c.l.b16 %v3460
          %v3552 = vunpack.c.h.b16 %v3460
          %v3553 = vunpack.c.l.b16 %v3461
          %v3554 = vunpack.c.h.b16 %v3461
          %v3555 = vunpack.c.l.b16 %v3462
          %v3556 = vunpack.c.h.b16 %v3462
          %v3557 = vunpack.c.l.b16 %v3463
          %v3558 = vunpack.c.h.b16 %v3463
          %v3559 = vunpack.c.l.b16 %v3464
          %v3560 = vunpack.c.h.b16 %v3464
          %v3561 = vunpack.c.l.b16 %v3465
          %v3562 = vunpack.c.h.b16 %v3465
          %v3563 = vunpack.c.l.b16 %v3466
          %v3564 = vunpack.c.h.b16 %v3466
          %v3565 = vunpack.c.l.b16 %v3467
          %v3566 = vunpack.c.h.b16 %v3467
          %v3567 = vunpack.c.l.b16 %v3468
          %v3568 = vunpack.c.h.b16 %v3468
          %v3569 = vunpack.c.l.b16 %v3469
          %v3570 = vunpack.c.h.b16 %v3469
          %v3571 = vunpack.c.l.b16 %v3470
          %v3572 = vunpack.c.h.b16 %v3470
          %v3573 = vunpack.c.l.b16 %v3471
          %v3574 = vunpack.c.h.b16 %v3471
          %v3575 = vunpack.c.l.b16 %v3472
          %v3576 = vunpack.c.h.b16 %v3472
          %v3577 = vunpack.c.l.b16 %v3473
          %v3578 = vunpack.c.h.b16 %v3473
          %v3579 = vunpack.c.l.b16 %v3474
          %v3580 = vunpack.c.h.b16 %v3474
          %v3581 = vunpack.c.l.b16 %v3475
          %v3582 = vunpack.c.h.b16 %v3475
          %v3583 = vunpack.c.l.b16 %v3476
          %v3584 = vunpack.c.h.b16 %v3476
          %v3585 = vunpack.c.l.b16 %v3477
          %v3586 = vunpack.c.h.b16 %v3477
          %v3587 = vunpack.c.l.b16 %v3478
          %v3588 = vunpack.c.h.b16 %v3478
          %v3589 = vunpack.c.l.b16 %v3479
          %v3590 = vunpack.c.h.b16 %v3479
          %v3591 = vunpack.c.l.b16 %v3480
          %v3592 = vunpack.c.h.b16 %v3480
          %v3593 = vunpack.c.l.b16 %v3481
          %v3594 = vunpack.c.h.b16 %v3481
          %v3595 = vunpack.c.l.b16 %v3482
          %v3596 = vunpack.c.h.b16 %v3482
          %v3597 = vunpack.c.l.b16 %v3483
          %v3598 = vunpack.c.h.b16 %v3483
          %v3599 = vunpack.c.l.b16 %v3484
          %v3600 = vunpack.c.h.b16 %v3484
          %v3601 = vunpack.c.l.b16 %v3485
          %v3602 = vunpack.c.h.b16 %v3485
          %v3603 = vunpack.c.l.b16 %v3486
          %v3604 = vunpack.c.h.b16 %v3486
          %v3605 = vpack.c.b16 %v3545, %v3541
          %v3606 = vpack.c.b16 %v3546, %v3542
          %v3607 = vpack.c.b16 %v3547, %v3543
          %v3608 = vpack.c.b16 %v3548, %v3544
          %v3609 = vpack.c.b16 %v3553, %v3549
          %v3610 = vpack.c.b16 %v3554, %v3550
          %v3611 = vpack.c.b16 %v3555, %v3551
          %v3612 = vpack.c.b16 %v3556, %v3552
          %v3613 = vpack.c.b16 %v3561, %v3557
          %v3614 = vpack.c.b16 %v3562, %v3558
          %v3615 = vpack.c.b16 %v3563, %v3559
          %v3616 = vpack.c.b16 %v3564, %v3560
          %v3617 = vpack.c.b16 %v3569, %v3565
          %v3618 = vpack.c.b16 %v3570, %v3566
          %v3619 = vpack.c.b16 %v3571, %v3567
          %v3620 = vpack.c.b16 %v3572, %v3568
          %v3621 = vpack.c.b16 %v3577, %v3573
          %v3622 = vpack.c.b16 %v3578, %v3574
          %v3623 = vpack.c.b16 %v3579, %v3575
          %v3624 = vpack.c.b16 %v3580, %v3576
          %v3625 = vpack.c.b16 %v3585, %v3581
          %v3626 = vpack.c.b16 %v3586, %v3582
          %v3627 = vpack.c.b16 %v3587, %v3583
          %v3628 = vpack.c.b16 %v3588, %v3584
          %v3629 = vpack.c.b16 %v3593, %v3589
          %v3630 = vpack.c.b16 %v3594, %v3590
          %v3631 = vpack.c.b16 %v3595, %v3591
          %v3632 = vpack.c.b16 %v3596, %v3592
          %v3633 = vpack.c.b16 %v3601, %v3597
          %v3634 = vpack.c.b16 %v3602, %v3598
          %v3635 = vpack.c.b16 %v3603, %v3599
          %v3636 = vpack.c.b16 %v3604, %v3600
          %3669 = vmatprep.subr.bf16.mxu0 %v3634
          %3670 = vmatpush1.bf16.msra.mxu0 %v3633
          %3671 = vmatprep.subr.bf16.mxu0 %v3630
          %3672 = vmatpush1.bf16.msra.mxu0 %v3629
          %3673 = vmatprep.subr.bf16.mxu0 %v3626
          %3674 = vmatpush1.bf16.msra.mxu0 %v3625
          %3675 = vmatprep.subr.bf16.mxu0 %v3622
          %3676 = vmatpush1.bf16.msra.mxu0 %v3621
          %3677 = vmatprep.subr.bf16.mxu0 %v3618
          %3678 = vmatpush1.bf16.msra.mxu0 %v3617
          %3679 = vmatprep.subr.bf16.mxu0 %v3614
          %3680 = vmatpush1.bf16.msra.mxu0 %v3613
          %3681 = vmatprep.subr.bf16.mxu0 %v3610
          %3682 = vmatpush1.bf16.msra.mxu0 %v3609
          %3683 = vmatprep.subr.bf16.mxu0 %v3606
          %3684 = vmatpush1.bf16.msra.mxu0 %v3605
          %3685 = vmatprep.subr.bf16.mxu0 0
          %3686 = vmatpush2.bf16.msra.mxu0 0
          %3687 = vmatprep.subr.bf16.mxu0 0
          %3688 = vmatpush2.bf16.msra.mxu0 0
          %3689 = vmatprep.subr.bf16.mxu0 0
          %3690 = vmatpush2.bf16.msra.mxu0 0
          %3691 = vmatprep.subr.bf16.mxu0 0
          %3692 = vmatpush2.bf16.msra.mxu0 0
          %3693 = vmatprep.subr.bf16.mxu0 0
          %3694 = vmatpush2.bf16.msra.mxu0 0
          %3695 = vmatprep.subr.bf16.mxu0 0
          %3696 = vmatpush2.bf16.msra.mxu0 0
          %3697 = vmatprep.subr.bf16.mxu0 0
          %3698 = vmatpush2.bf16.msra.mxu0 0
          %3699 = vmatprep.subr.bf16.mxu0 0
          %3700 = vmatpush2.bf16.msra.mxu0 0
          %3701 = vmatprep.mubr.bf16.mxu0 0
          %3702 = vmatmul.mubr.bf16.gmra.mxu0 %v3454
          %v3703 = vpop.f32.mrf.mxu0
          %v3704 = vadd.f32 %v3492, %v3703
          %v3705 = vpop.f32.mrf.mxu0
          %v3706 = vadd.f32 %v3496, %v3705
          %v3707 = vpop.f32.mrf.mxu0
          %v3708 = vpop.f32.mrf.mxu0
          %3709 = vdwg.mxu0
          %3710 = vmatprep.subr.bf16.mxu0 %v3636
          %3711 = vmatpush1.bf16.msra.mxu0 %v3635
          %3712 = vmatprep.subr.bf16.mxu0 %v3632
          %3713 = vmatpush1.bf16.msra.mxu0 %v3631
          %3714 = vmatprep.subr.bf16.mxu0 %v3628
          %3715 = vmatpush1.bf16.msra.mxu0 %v3627
          %3716 = vmatprep.subr.bf16.mxu0 %v3624
          %3717 = vmatpush1.bf16.msra.mxu0 %v3623
          %3718 = vmatprep.subr.bf16.mxu0 %v3620
          %3719 = vmatpush1.bf16.msra.mxu0 %v3619
          %3720 = vmatprep.subr.bf16.mxu0 %v3616
          %3721 = vmatpush1.bf16.msra.mxu0 %v3615
          %3722 = vmatprep.subr.bf16.mxu0 %v3612
          %3723 = vmatpush1.bf16.msra.mxu0 %v3611
          %3724 = vmatprep.subr.bf16.mxu0 %v3608
          %3725 = vmatpush1.bf16.msra.mxu0 %v3607
          %3726 = vmatprep.subr.bf16.mxu0 0
          %3727 = vmatpush2.bf16.msra.mxu0 0
          %3728 = vmatprep.subr.bf16.mxu0 0
          %3729 = vmatpush2.bf16.msra.mxu0 0
          %3730 = vmatprep.subr.bf16.mxu0 0
          %3731 = vmatpush2.bf16.msra.mxu0 0
          %3732 = vmatprep.subr.bf16.mxu0 0
          %3733 = vmatpush2.bf16.msra.mxu0 0
          %3734 = vmatprep.subr.bf16.mxu0 0
          %3735 = vmatpush2.bf16.msra.mxu0 0
          %3736 = vmatprep.subr.bf16.mxu0 0
          %3737 = vmatpush2.bf16.msra.mxu0 0
          %3738 = vmatprep.subr.bf16.mxu0 0
          %3739 = vmatpush2.bf16.msra.mxu0 0
          %3740 = vmatprep.subr.bf16.mxu0 0
          %3741 = vmatpush2.bf16.msra.mxu0 0
          %3742 = vmatprep.mubr.bf16.mxu0 0
          %3743 = vmatmul.mubr.bf16.gmra.mxu0 %v3454
          %v3744 = vpop.f32.mrf.mxu0
          %v3745 = vadd.f32 %v3500, %v3744
          %v3746 = vpop.f32.mrf.mxu0
          %v3747 = vadd.f32 %v3504, %v3746
          %v3748 = vpop.f32.mrf.mxu0
          %v3749 = vpop.f32.mrf.mxu0
          %3750 = vdwg.mxu0
          %v3751 = vmax.f32 %v3704, 0.0
          %v3752 = vmax.f32 %v3706, 0.0
          %v3753 = vmax.f32 %v3745, 0.0
          %v3754 = vmax.f32 %v3747, 0.0
          %v3755 = vpack.c.bf16 %v3751, %v3751
          %v3756 = vpack.c.bf16 %v3752, %v3752
          %v3757 = vpack.c.bf16 %v3753, %v3753
          %v3758 = vpack.c.bf16 %v3754, %v3754
          %v3759 = vld [vmem:[#allocation5] sm:$0xff]
          %v3760 = vld [vmem:[#allocation5 + $0x8] sm:$0xff]
          %v3761 = vld [vmem:[#allocation5 + $0x10] sm:$0xff]
          %v3762 = vld [vmem:[#allocation5 + $0x18] sm:$0xff]
          %v3763 = vld [vmem:[#allocation5 + $0x20] sm:$0xff]
          %v3764 = vld [vmem:[#allocation5 + $0x28] sm:$0xff]
          %v3765 = vld [vmem:[#allocation5 + $0x30] sm:$0xff]
          %v3766 = vld [vmem:[#allocation5 + $0x38] sm:$0xff]
          %v3767 = vld [vmem:[#allocation5 + $0x40] sm:$0xff]
          %v3768 = vld [vmem:[#allocation5 + $0x48] sm:$0xff]
          %v3769 = vld [vmem:[#allocation5 + $0x50] sm:$0xff]
          %v3770 = vld [vmem:[#allocation5 + $0x58] sm:$0xff]
          %v3771 = vld [vmem:[#allocation5 + $0x60] sm:$0xff]
          %v3772 = vld [vmem:[#allocation5 + $0x68] sm:$0xff]
          %v3773 = vld [vmem:[#allocation5 + $0x70] sm:$0xff]
          %v3774 = vld [vmem:[#allocation5 + $0x78] sm:$0xff]
          %v3775 = vld [vmem:[#allocation5 + $0x80] sm:$0xff]
          %v3776 = vld [vmem:[#allocation5 + $0x88] sm:$0xff]
          %v3777 = vld [vmem:[#allocation5 + $0x90] sm:$0xff]
          %v3778 = vld [vmem:[#allocation5 + $0x98] sm:$0xff]
          %v3779 = vld [vmem:[#allocation5 + $0xa0] sm:$0xff]
          %v3780 = vld [vmem:[#allocation5 + $0xa8] sm:$0xff]
          %v3781 = vld [vmem:[#allocation5 + $0xb0] sm:$0xff]
          %v3782 = vld [vmem:[#allocation5 + $0xb8] sm:$0xff]
          %v3783 = vld [vmem:[#allocation5 + $0xc0] sm:$0xff]
          %v3784 = vld [vmem:[#allocation5 + $0xc8] sm:$0xff]
          %v3785 = vld [vmem:[#allocation5 + $0xd0] sm:$0xff]
          %v3786 = vld [vmem:[#allocation5 + $0xd8] sm:$0xff]
          %v3787 = vld [vmem:[#allocation5 + $0xe0] sm:$0xff]
          %v3788 = vld [vmem:[#allocation5 + $0xe8] sm:$0xff]
          %v3789 = vld [vmem:[#allocation5 + $0xf0] sm:$0xff]
          %v3790 = vld [vmem:[#allocation5 + $0xf8] sm:$0xff]
          %v3791 = vld [vmem:[#allocation5 + $0x100] sm:$0xff]
          %v3792 = vld [vmem:[#allocation5 + $0x108] sm:$0xff]
          %v3793 = vld [vmem:[#allocation5 + $0x110] sm:$0xff]
          %v3794 = vld [vmem:[#allocation5 + $0x118] sm:$0xff]
          %v3795 = vld [vmem:[#allocation5 + $0x120] sm:$0xff]
          %v3796 = vld [vmem:[#allocation5 + $0x128] sm:$0xff]
          %v3797 = vld [vmem:[#allocation5 + $0x130] sm:$0xff]
          %v3798 = vld [vmem:[#allocation5 + $0x138] sm:$0xff]
          %v3799 = vld [vmem:[#allocation5 + $0x140] sm:$0xff]
          %v3800 = vld [vmem:[#allocation5 + $0x148] sm:$0xff]
          %v3801 = vld [vmem:[#allocation5 + $0x150] sm:$0xff]
          %v3802 = vld [vmem:[#allocation5 + $0x158] sm:$0xff]
          %v3803 = vld [vmem:[#allocation5 + $0x160] sm:$0xff]
          %v3804 = vld [vmem:[#allocation5 + $0x168] sm:$0xff]
          %v3805 = vld [vmem:[#allocation5 + $0x170] sm:$0xff]
          %v3806 = vld [vmem:[#allocation5 + $0x178] sm:$0xff]
          %v3807 = vld [vmem:[#allocation5 + $0x180] sm:$0xff]
          %v3808 = vld [vmem:[#allocation5 + $0x188] sm:$0xff]
          %v3809 = vld [vmem:[#allocation5 + $0x190] sm:$0xff]
          %v3810 = vld [vmem:[#allocation5 + $0x198] sm:$0xff]
          %v3811 = vld [vmem:[#allocation5 + $0x1a0] sm:$0xff]
          %v3812 = vld [vmem:[#allocation5 + $0x1a8] sm:$0xff]
          %v3813 = vld [vmem:[#allocation5 + $0x1b0] sm:$0xff]
          %v3814 = vld [vmem:[#allocation5 + $0x1b8] sm:$0xff]
          %v3815 = vld [vmem:[#allocation5 + $0x1c0] sm:$0xff]
          %v3816 = vld [vmem:[#allocation5 + $0x1c8] sm:$0xff]
          %v3817 = vld [vmem:[#allocation5 + $0x1d0] sm:$0xff]
          %v3818 = vld [vmem:[#allocation5 + $0x1d8] sm:$0xff]
          %v3819 = vld [vmem:[#allocation5 + $0x1e0] sm:$0xff]
          %v3820 = vld [vmem:[#allocation5 + $0x1e8] sm:$0xff]
          %v3821 = vld [vmem:[#allocation5 + $0x1f0] sm:$0xff]
          %v3822 = vld [vmem:[#allocation5 + $0x1f8] sm:$0xff]
          %v3823 = vld [vmem:[#allocation6] sm:$0x3]
          %v3825 = vlaneseq
          %v3826 = vshrl.u32 %v3825, 7
          %v3827 = vsub.s32 0, %v3826
          %v3828 = vrot.slane %v3823, %v3827
          %v3829 = vlaneseq
          %v3830 = vshrl.u32 %v3829, 7
          %v3831 = vsub.s32 1, %v3830
          %v3832 = vrot.slane %v3823, %v3831
          %v3899 = vunpack.c.l.b16 %v3759
          %v3900 = vunpack.c.h.b16 %v3759
          %v3901 = vunpack.c.l.b16 %v3760
          %v3902 = vunpack.c.h.b16 %v3760
          %v3903 = vunpack.c.l.b16 %v3761
          %v3904 = vunpack.c.h.b16 %v3761
          %v3905 = vunpack.c.l.b16 %v3762
          %v3906 = vunpack.c.h.b16 %v3762
          %v3907 = vunpack.c.l.b16 %v3763
          %v3908 = vunpack.c.h.b16 %v3763
          %v3909 = vunpack.c.l.b16 %v3764
          %v3910 = vunpack.c.h.b16 %v3764
          %v3911 = vunpack.c.l.b16 %v3765
          %v3912 = vunpack.c.h.b16 %v3765
          %v3913 = vunpack.c.l.b16 %v3766
          %v3914 = vunpack.c.h.b16 %v3766
          %v3915 = vunpack.c.l.b16 %v3767
          %v3916 = vunpack.c.h.b16 %v3767
          %v3917 = vunpack.c.l.b16 %v3768
          %v3918 = vunpack.c.h.b16 %v3768
          %v3919 = vunpack.c.l.b16 %v3769
          %v3920 = vunpack.c.h.b16 %v3769
          %v3921 = vunpack.c.l.b16 %v3770
          %v3922 = vunpack.c.h.b16 %v3770
          %v3923 = vunpack.c.l.b16 %v3771
          %v3924 = vunpack.c.h.b16 %v3771
          %v3925 = vunpack.c.l.b16 %v3772
          %v3926 = vunpack.c.h.b16 %v3772
          %v3927 = vunpack.c.l.b16 %v3773
          %v3928 = vunpack.c.h.b16 %v3773
          %v3929 = vunpack.c.l.b16 %v3774
          %v3930 = vunpack.c.h.b16 %v3774
          %v3931 = vunpack.c.l.b16 %v3775
          %v3932 = vunpack.c.h.b16 %v3775
          %v3933 = vunpack.c.l.b16 %v3776
          %v3934 = vunpack.c.h.b16 %v3776
          %v3935 = vunpack.c.l.b16 %v3777
          %v3936 = vunpack.c.h.b16 %v3777
          %v3937 = vunpack.c.l.b16 %v3778
          %v3938 = vunpack.c.h.b16 %v3778
          %v3939 = vunpack.c.l.b16 %v3779
          %v3940 = vunpack.c.h.b16 %v3779
          %v3941 = vunpack.c.l.b16 %v3780
          %v3942 = vunpack.c.h.b16 %v3780
          %v3943 = vunpack.c.l.b16 %v3781
          %v3944 = vunpack.c.h.b16 %v3781
          %v3945 = vunpack.c.l.b16 %v3782
          %v3946 = vunpack.c.h.b16 %v3782
          %v3947 = vunpack.c.l.b16 %v3783
          %v3948 = vunpack.c.h.b16 %v3783
          %v3949 = vunpack.c.l.b16 %v3784
          %v3950 = vunpack.c.h.b16 %v3784
          %v3951 = vunpack.c.l.b16 %v3785
          %v3952 = vunpack.c.h.b16 %v3785
          %v3953 = vunpack.c.l.b16 %v3786
          %v3954 = vunpack.c.h.b16 %v3786
          %v3955 = vunpack.c.l.b16 %v3787
          %v3956 = vunpack.c.h.b16 %v3787
          %v3957 = vunpack.c.l.b16 %v3788
          %v3958 = vunpack.c.h.b16 %v3788
          %v3959 = vunpack.c.l.b16 %v3789
          %v3960 = vunpack.c.h.b16 %v3789
          %v3961 = vunpack.c.l.b16 %v3790
          %v3962 = vunpack.c.h.b16 %v3790
          %v3963 = vunpack.c.l.b16 %v3791
          %v3964 = vunpack.c.h.b16 %v3791
          %v3965 = vunpack.c.l.b16 %v3792
          %v3966 = vunpack.c.h.b16 %v3792
          %v3967 = vunpack.c.l.b16 %v3793
          %v3968 = vunpack.c.h.b16 %v3793
          %v3969 = vunpack.c.l.b16 %v3794
          %v3970 = vunpack.c.h.b16 %v3794
          %v3971 = vunpack.c.l.b16 %v3795
          %v3972 = vunpack.c.h.b16 %v3795
          %v3973 = vunpack.c.l.b16 %v3796
          %v3974 = vunpack.c.h.b16 %v3796
          %v3975 = vunpack.c.l.b16 %v3797
          %v3976 = vunpack.c.h.b16 %v3797
          %v3977 = vunpack.c.l.b16 %v3798
          %v3978 = vunpack.c.h.b16 %v3798
          %v3979 = vunpack.c.l.b16 %v3799
          %v3980 = vunpack.c.h.b16 %v3799
          %v3981 = vunpack.c.l.b16 %v3800
          %v3982 = vunpack.c.h.b16 %v3800
          %v3983 = vunpack.c.l.b16 %v3801
          %v3984 = vunpack.c.h.b16 %v3801
          %v3985 = vunpack.c.l.b16 %v3802
          %v3986 = vunpack.c.h.b16 %v3802
          %v3987 = vunpack.c.l.b16 %v3803
          %v3988 = vunpack.c.h.b16 %v3803
          %v3989 = vunpack.c.l.b16 %v3804
          %v3990 = vunpack.c.h.b16 %v3804
          %v3991 = vunpack.c.l.b16 %v3805
          %v3992 = vunpack.c.h.b16 %v3805
          %v3993 = vunpack.c.l.b16 %v3806
          %v3994 = vunpack.c.h.b16 %v3806
          %v3995 = vunpack.c.l.b16 %v3807
          %v3996 = vunpack.c.h.b16 %v3807
          %v3997 = vunpack.c.l.b16 %v3808
          %v3998 = vunpack.c.h.b16 %v3808
          %v3999 = vunpack.c.l.b16 %v3809
          %v4000 = vunpack.c.h.b16 %v3809
          %v4001 = vunpack.c.l.b16 %v3810
          %v4002 = vunpack.c.h.b16 %v3810
          %v4003 = vunpack.c.l.b16 %v3811
          %v4004 = vunpack.c.h.b16 %v3811
          %v4005 = vunpack.c.l.b16 %v3812
          %v4006 = vunpack.c.h.b16 %v3812
          %v4007 = vunpack.c.l.b16 %v3813
          %v4008 = vunpack.c.h.b16 %v3813
          %v4009 = vunpack.c.l.b16 %v3814
          %v4010 = vunpack.c.h.b16 %v3814
          %v4011 = vunpack.c.l.b16 %v3815
          %v4012 = vunpack.c.h.b16 %v3815
          %v4013 = vunpack.c.l.b16 %v3816
          %v4014 = vunpack.c.h.b16 %v3816
          %v4015 = vunpack.c.l.b16 %v3817
          %v4016 = vunpack.c.h.b16 %v3817
          %v4017 = vunpack.c.l.b16 %v3818
          %v4018 = vunpack.c.h.b16 %v3818
          %v4019 = vunpack.c.l.b16 %v3819
          %v4020 = vunpack.c.h.b16 %v3819
          %v4021 = vunpack.c.l.b16 %v3820
          %v4022 = vunpack.c.h.b16 %v3820
          %v4023 = vunpack.c.l.b16 %v3821
          %v4024 = vunpack.c.h.b16 %v3821
          %v4025 = vunpack.c.l.b16 %v3822
          %v4026 = vunpack.c.h.b16 %v3822
          %v4027 = vpack.c.b16 %v3901, %v3899
          %v4028 = vpack.c.b16 %v3902, %v3900
          %v4029 = vpack.c.b16 %v3905, %v3903
          %v4030 = vpack.c.b16 %v3906, %v3904
          %v4031 = vpack.c.b16 %v3909, %v3907
          %v4032 = vpack.c.b16 %v3910, %v3908
          %v4033 = vpack.c.b16 %v3913, %v3911
          %v4034 = vpack.c.b16 %v3914, %v3912
          %v4035 = vpack.c.b16 %v3917, %v3915
          %v4036 = vpack.c.b16 %v3918, %v3916
          %v4037 = vpack.c.b16 %v3921, %v3919
          %v4038 = vpack.c.b16 %v3922, %v3920
          %v4039 = vpack.c.b16 %v3925, %v3923
          %v4040 = vpack.c.b16 %v3926, %v3924
          %v4041 = vpack.c.b16 %v3929, %v3927
          %v4042 = vpack.c.b16 %v3930, %v3928
          %v4043 = vpack.c.b16 %v3933, %v3931
          %v4044 = vpack.c.b16 %v3934, %v3932
          %v4045 = vpack.c.b16 %v3937, %v3935
          %v4046 = vpack.c.b16 %v3938, %v3936
          %v4047 = vpack.c.b16 %v3941, %v3939
          %v4048 = vpack.c.b16 %v3942, %v3940
          %v4049 = vpack.c.b16 %v3945, %v3943
          %v4050 = vpack.c.b16 %v3946, %v3944
          %v4051 = vpack.c.b16 %v3949, %v3947
          %v4052 = vpack.c.b16 %v3950, %v3948
          %v4053 = vpack.c.b16 %v3953, %v3951
          %v4054 = vpack.c.b16 %v3954, %v3952
          %v4055 = vpack.c.b16 %v3957, %v3955
          %v4056 = vpack.c.b16 %v3958, %v3956
          %v4057 = vpack.c.b16 %v3961, %v3959
          %v4058 = vpack.c.b16 %v3962, %v3960
          %v4059 = vpack.c.b16 %v3965, %v3963
          %v4060 = vpack.c.b16 %v3966, %v3964
          %v4061 = vpack.c.b16 %v3969, %v3967
          %v4062 = vpack.c.b16 %v3970, %v3968
          %v4063 = vpack.c.b16 %v3973, %v3971
          %v4064 = vpack.c.b16 %v3974, %v3972
          %v4065 = vpack.c.b16 %v3977, %v3975
          %v4066 = vpack.c.b16 %v3978, %v3976
          %v4067 = vpack.c.b16 %v3981, %v3979
          %v4068 = vpack.c.b16 %v3982, %v3980
          %v4069 = vpack.c.b16 %v3985, %v3983
          %v4070 = vpack.c.b16 %v3986, %v3984
          %v4071 = vpack.c.b16 %v3989, %v3987
          %v4072 = vpack.c.b16 %v3990, %v3988
          %v4073 = vpack.c.b16 %v3993, %v3991
          %v4074 = vpack.c.b16 %v3994, %v3992
          %v4075 = vpack.c.b16 %v3997, %v3995
          %v4076 = vpack.c.b16 %v3998, %v3996
          %v4077 = vpack.c.b16 %v4001, %v3999
          %v4078 = vpack.c.b16 %v4002, %v4000
          %v4079 = vpack.c.b16 %v4005, %v4003
          %v4080 = vpack.c.b16 %v4006, %v4004
          %v4081 = vpack.c.b16 %v4009, %v4007
          %v4082 = vpack.c.b16 %v4010, %v4008
          %v4083 = vpack.c.b16 %v4013, %v4011
          %v4084 = vpack.c.b16 %v4014, %v4012
          %v4085 = vpack.c.b16 %v4017, %v4015
          %v4086 = vpack.c.b16 %v4018, %v4016
          %v4087 = vpack.c.b16 %v4021, %v4019
          %v4088 = vpack.c.b16 %v4022, %v4020
          %v4089 = vpack.c.b16 %v4025, %v4023
          %v4090 = vpack.c.b16 %v4026, %v4024
          %4155 = vmatprep.subr.bf16.mxu0 %v4042
          %4156 = vmatpush1.bf16.msra.mxu0 %v4041
          %4157 = vmatprep.subr.bf16.mxu0 %v4040
          %4158 = vmatpush1.bf16.msra.mxu0 %v4039
          %4159 = vmatprep.subr.bf16.mxu0 %v4038
          %4160 = vmatpush1.bf16.msra.mxu0 %v4037
          %4161 = vmatprep.subr.bf16.mxu0 %v4036
          %4162 = vmatpush1.bf16.msra.mxu0 %v4035
          %4163 = vmatprep.subr.bf16.mxu0 %v4034
          %4164 = vmatpush1.bf16.msra.mxu0 %v4033
          %4165 = vmatprep.subr.bf16.mxu0 %v4032
          %4166 = vmatpush1.bf16.msra.mxu0 %v4031
          %4167 = vmatprep.subr.bf16.mxu0 %v4030
          %4168 = vmatpush1.bf16.msra.mxu0 %v4029
          %4169 = vmatprep.subr.bf16.mxu0 %v4028
          %4170 = vmatpush1.bf16.msra.mxu0 %v4027
          %4171 = vmatprep.subr.bf16.mxu0 %v4058
          %4172 = vmatpush2.bf16.msra.mxu0 %v4057
          %4173 = vmatprep.subr.bf16.mxu0 %v4056
          %4174 = vmatpush2.bf16.msra.mxu0 %v4055
          %4175 = vmatprep.subr.bf16.mxu0 %v4054
          %4176 = vmatpush2.bf16.msra.mxu0 %v4053
          %4177 = vmatprep.subr.bf16.mxu0 %v4052
          %4178 = vmatpush2.bf16.msra.mxu0 %v4051
          %4179 = vmatprep.subr.bf16.mxu0 %v4050
          %4180 = vmatpush2.bf16.msra.mxu0 %v4049
          %4181 = vmatprep.subr.bf16.mxu0 %v4048
          %4182 = vmatpush2.bf16.msra.mxu0 %v4047
          %4183 = vmatprep.subr.bf16.mxu0 %v4046
          %4184 = vmatpush2.bf16.msra.mxu0 %v4045
          %4185 = vmatprep.subr.bf16.mxu0 %v4044
          %4186 = vmatpush2.bf16.msra.mxu0 %v4043
          %4187 = vmatprep.mubr.bf16.mxu0 %v3756
          %4188 = vmatmul.mubr.bf16.gmra.mxu0 %v3755
          %v4189 = vpop.f32.mrf.mxu0
          %v4190 = vadd.f32 %v3828, %v4189
          %v4191 = vpop.f32.mrf.mxu0
          %v4192 = vadd.f32 %v3832, %v4191
          %v4193 = vpop.f32.mrf.mxu0
          %v4194 = vpop.f32.mrf.mxu0
          %4195 = vdwg.mxu0
          %4196 = vmatprep.subr.bf16.mxu0 %v4074
          %4197 = vmatpush1.bf16.msra.mxu0 %v4073
          %4198 = vmatprep.subr.bf16.mxu0 %v4072
          %4199 = vmatpush1.bf16.msra.mxu0 %v4071
          %4200 = vmatprep.subr.bf16.mxu0 %v4070
          %4201 = vmatpush1.bf16.msra.mxu0 %v4069
          %4202 = vmatprep.subr.bf16.mxu0 %v4068
          %4203 = vmatpush1.bf16.msra.mxu0 %v4067
          %4204 = vmatprep.subr.bf16.mxu0 %v4066
          %4205 = vmatpush1.bf16.msra.mxu0 %v4065
          %4206 = vmatprep.subr.bf16.mxu0 %v4064
          %4207 = vmatpush1.bf16.msra.mxu0 %v4063
          %4208 = vmatprep.subr.bf16.mxu0 %v4062
          %4209 = vmatpush1.bf16.msra.mxu0 %v4061
          %4210 = vmatprep.subr.bf16.mxu0 %v4060
          %4211 = vmatpush1.bf16.msra.mxu0 %v4059
          %4212 = vmatprep.subr.bf16.mxu0 %v4090
          %4213 = vmatpush2.bf16.msra.mxu0 %v4089
          %4214 = vmatprep.subr.bf16.mxu0 %v4088
          %4215 = vmatpush2.bf16.msra.mxu0 %v4087
          %4216 = vmatprep.subr.bf16.mxu0 %v4086
          %4217 = vmatpush2.bf16.msra.mxu0 %v4085
          %4218 = vmatprep.subr.bf16.mxu0 %v4084
          %4219 = vmatpush2.bf16.msra.mxu0 %v4083
          %4220 = vmatprep.subr.bf16.mxu0 %v4082
          %4221 = vmatpush2.bf16.msra.mxu0 %v4081
          %4222 = vmatprep.subr.bf16.mxu0 %v4080
          %4223 = vmatpush2.bf16.msra.mxu0 %v4079
          %4224 = vmatprep.subr.bf16.mxu0 %v4078
          %4225 = vmatpush2.bf16.msra.mxu0 %v4077
          %4226 = vmatprep.subr.bf16.mxu0 %v4076
          %4227 = vmatpush2.bf16.msra.mxu0 %v4075
          %4228 = vmatprep.mubr.bf16.mxu0 %v3758
          %4229 = vmatmul.mubr.bf16.gmra.mxu0 %v3757
          %v4230 = vpop.f32.mrf.mxu0
          %v4231 = vadd.f32 %v4190, %v4230
          %v4232 = vpop.f32.mrf.mxu0
          %v4233 = vadd.f32 %v4192, %v4232
          %v4234 = vpop.f32.mrf.mxu0
          %v4235 = vpop.f32.mrf.mxu0
          %4236 = vdwg.mxu0
          %v4237 = vmax.f32 %v4231, 0.0
          %v4238 = vmax.f32 %v4233, 0.0
          %v4239 = vpack.c.bf16 %v4237, %v4237
          %v4240 = vpack.c.bf16 %v4238, %v4238
          %v4241 = vld [vmem:[#allocation7] sm:$0xf]
          %v4242 = vld [vmem:[#allocation7 + $0x4] sm:$0xf]
          %v4243 = vld [vmem:[#allocation7 + $0x8] sm:$0xf]
          %v4244 = vld [vmem:[#allocation7 + $0xc] sm:$0xf]
          %v4245 = vld [vmem:[#allocation7 + $0x10] sm:$0xf]
          %v4246 = vld [vmem:[#allocation7 + $0x14] sm:$0xf]
          %v4247 = vld [vmem:[#allocation7 + $0x18] sm:$0xf]
          %v4248 = vld [vmem:[#allocation7 + $0x1c] sm:$0xf]
          %v4249 = vld [vmem:[#allocation7 + $0x20] sm:$0xf]
          %v4250 = vld [vmem:[#allocation7 + $0x24] sm:$0xf]
          %v4251 = vld [vmem:[#allocation7 + $0x28] sm:$0xf]
          %v4252 = vld [vmem:[#allocation7 + $0x2c] sm:$0xf]
          %v4253 = vld [vmem:[#allocation7 + $0x30] sm:$0xf]
          %v4254 = vld [vmem:[#allocation7 + $0x34] sm:$0xf]
          %v4255 = vld [vmem:[#allocation7 + $0x38] sm:$0xf]
          %v4256 = vld [vmem:[#allocation7 + $0x3c] sm:$0xf]
          %v4257 = vld [vmem:[#allocation7 + $0x40] sm:$0xf]
          %v4258 = vld [vmem:[#allocation7 + $0x44] sm:$0xf]
          %v4259 = vld [vmem:[#allocation7 + $0x48] sm:$0xf]
          %v4260 = vld [vmem:[#allocation7 + $0x4c] sm:$0xf]
          %v4261 = vld [vmem:[#allocation7 + $0x50] sm:$0xf]
          %v4262 = vld [vmem:[#allocation7 + $0x54] sm:$0xf]
          %v4263 = vld [vmem:[#allocation7 + $0x58] sm:$0xf]
          %v4264 = vld [vmem:[#allocation7 + $0x5c] sm:$0xf]
          %v4265 = vld [vmem:[#allocation7 + $0x60] sm:$0xf]
          %v4266 = vld [vmem:[#allocation7 + $0x64] sm:$0xf]
          %v4267 = vld [vmem:[#allocation7 + $0x68] sm:$0xf]
          %v4268 = vld [vmem:[#allocation7 + $0x6c] sm:$0xf]
          %v4269 = vld [vmem:[#allocation7 + $0x70] sm:$0xf]
          %v4270 = vld [vmem:[#allocation7 + $0x74] sm:$0xf]
          %v4271 = vld [vmem:[#allocation7 + $0x78] sm:$0xf]
          %v4272 = vld [vmem:[#allocation7 + $0x7c] sm:$0xf]
          %v4273 = vld [vmem:[#allocation8] sm:$0x1]
          %v4275 = vlaneseq
          %v4276 = vshrl.u32 %v4275, 7
          %v4277 = vsub.s32 0, %v4276
          %v4278 = vrot.slane %v4273, %v4277
          %v4312 = vunpack.c.l.b16 %v4241
          %v4313 = vunpack.c.l.b16 %v4242
          %v4314 = vunpack.c.l.b16 %v4243
          %v4315 = vunpack.c.l.b16 %v4244
          %v4316 = vunpack.c.l.b16 %v4245
          %v4317 = vunpack.c.l.b16 %v4246
          %v4318 = vunpack.c.l.b16 %v4247
          %v4319 = vunpack.c.l.b16 %v4248
          %v4320 = vunpack.c.l.b16 %v4249
          %v4321 = vunpack.c.l.b16 %v4250
          %v4322 = vunpack.c.l.b16 %v4251
          %v4323 = vunpack.c.l.b16 %v4252
          %v4324 = vunpack.c.l.b16 %v4253
          %v4325 = vunpack.c.l.b16 %v4254
          %v4326 = vunpack.c.l.b16 %v4255
          %v4327 = vunpack.c.l.b16 %v4256
          %v4328 = vunpack.c.l.b16 %v4257
          %v4329 = vunpack.c.l.b16 %v4258
          %v4330 = vunpack.c.l.b16 %v4259
          %v4331 = vunpack.c.l.b16 %v4260
          %v4332 = vunpack.c.l.b16 %v4261
          %v4333 = vunpack.c.l.b16 %v4262
          %v4334 = vunpack.c.l.b16 %v4263
          %v4335 = vunpack.c.l.b16 %v4264
          %v4336 = vunpack.c.l.b16 %v4265
          %v4337 = vunpack.c.l.b16 %v4266
          %v4338 = vunpack.c.l.b16 %v4267
          %v4339 = vunpack.c.l.b16 %v4268
          %v4340 = vunpack.c.l.b16 %v4269
          %v4341 = vunpack.c.l.b16 %v4270
          %v4342 = vunpack.c.l.b16 %v4271
          %v4343 = vunpack.c.l.b16 %v4272
          %v4344 = vpack.c.b16 %v4313, %v4312
          %v4345 = vpack.c.b16 %v4315, %v4314
          %v4346 = vpack.c.b16 %v4317, %v4316
          %v4347 = vpack.c.b16 %v4319, %v4318
          %v4348 = vpack.c.b16 %v4321, %v4320
          %v4349 = vpack.c.b16 %v4323, %v4322
          %v4350 = vpack.c.b16 %v4325, %v4324
          %v4351 = vpack.c.b16 %v4327, %v4326
          %v4352 = vpack.c.b16 %v4329, %v4328
          %v4353 = vpack.c.b16 %v4331, %v4330
          %v4354 = vpack.c.b16 %v4333, %v4332
          %v4355 = vpack.c.b16 %v4335, %v4334
          %v4356 = vpack.c.b16 %v4337, %v4336
          %v4357 = vpack.c.b16 %v4339, %v4338
          %v4358 = vpack.c.b16 %v4341, %v4340
          %v4359 = vpack.c.b16 %v4343, %v4342
          %4376 = vmatprep.subr.bf16.mxu0 0
          %4377 = vmatpush1.bf16.msra.mxu0 %v4351
          %4378 = vmatprep.subr.bf16.mxu0 0
          %4379 = vmatpush1.bf16.msra.mxu0 %v4350
          %4380 = vmatprep.subr.bf16.mxu0 0
          %4381 = vmatpush1.bf16.msra.mxu0 %v4349
          %4382 = vmatprep.subr.bf16.mxu0 0
          %4383 = vmatpush1.bf16.msra.mxu0 %v4348
          %4384 = vmatprep.subr.bf16.mxu0 0
          %4385 = vmatpush1.bf16.msra.mxu0 %v4347
          %4386 = vmatprep.subr.bf16.mxu0 0
          %4387 = vmatpush1.bf16.msra.mxu0 %v4346
          %4388 = vmatprep.subr.bf16.mxu0 0
          %4389 = vmatpush1.bf16.msra.mxu0 %v4345
          %4390 = vmatprep.subr.bf16.mxu0 0
          %4391 = vmatpush1.bf16.msra.mxu0 %v4344
          %4392 = vmatprep.subr.bf16.mxu0 0
          %4393 = vmatpush2.bf16.msra.mxu0 %v4359
          %4394 = vmatprep.subr.bf16.mxu0 0
          %4395 = vmatpush2.bf16.msra.mxu0 %v4358
          %4396 = vmatprep.subr.bf16.mxu0 0
          %4397 = vmatpush2.bf16.msra.mxu0 %v4357
          %4398 = vmatprep.subr.bf16.mxu0 0
          %4399 = vmatpush2.bf16.msra.mxu0 %v4356
          %4400 = vmatprep.subr.bf16.mxu0 0
          %4401 = vmatpush2.bf16.msra.mxu0 %v4355
          %4402 = vmatprep.subr.bf16.mxu0 0
          %4403 = vmatpush2.bf16.msra.mxu0 %v4354
          %4404 = vmatprep.subr.bf16.mxu0 0
          %4405 = vmatpush2.bf16.msra.mxu0 %v4353
          %4406 = vmatprep.subr.bf16.mxu0 0
          %4407 = vmatpush2.bf16.msra.mxu0 %v4352
          %4408 = vmatprep.mubr.bf16.mxu0 %v4240
          %4409 = vmatmul.mubr.bf16.gmra.mxu0 %v4239
          %v4410 = vpop.f32.mrf.mxu0
          %v4411 = vadd.f32 %v4278, %v4410
          %v4412 = vpop.f32.mrf.mxu0
          %v4413 = vpop.f32.mrf.mxu0
          %v4414 = vpop.f32.mrf.mxu0
          %4415 = vdwg.mxu0
          %4416 = vst [vmem:[#allocation11] sm:$0xff] %v4411
        $region273: #{tpu_custom_call.1} parent=68 // pred_fallthru
          _
        // Predicated region
        $region274: #{tpu_custom_call.1} parent=68 // pred_check
          %p4417 = pneg %p121
        $region275: #{tpu_custom_call.1} parent=68 // pred_check_branch
          %4419 = sbr.rel (%p4417) target = $region277
        $region276: #{tpu_custom_call.1} parent=68 // pred_region
          %s4421 = ssub.s32 128, 128
          %4422 = vsyncadd [#allocation12], %s4421
          %s4423 = smul.addr %s25, 128
          %s4424 = scalar_lea.hbm %s9, %s4423
          %s4426 = sshll.u32 [#allocation11], 4
          %s4427 = int_to_ptr.vmem [resolvable:$true] %s4426
          %4429 = dma.vmem_to_hbm [thread:$0]  %s4427, 128, %s4424, [#allocation12]
        $region277: #{tpu_custom_call.1} parent=68 // pred_fallthru
          _
        // Predicated region
        $region278: #{tpu_custom_call.1} parent=68 // pred_check
          %p4430 = pneg %p121
        $region279: #{tpu_custom_call.1} parent=68 // pred_check_branch
          %4432 = sbr.rel (%p4430) target = $region281
        $region280: #{tpu_custom_call.1} parent=68 // pred_region
          %4433 = dma.done [#allocation12], 128
        $region281: #{tpu_custom_call.1} parent=68 // pred_fallthru
          _
      $region69: #{tpu_custom_call.1} parent=5 // pred_fallthru
        _
      %p4434 = scmp.le.s32.totalorder 2, %s16
      // Predicated region
      $region282: #{tpu_custom_call.1} parent=5 // pred_check
        %p4435 = pneg %p4434
      $region283: #{tpu_custom_call.1} parent=5 // pred_check_branch
        %4437 = sbr.rel (%p4435) target = $region285
      $region284: #{tpu_custom_call.1} parent=5 // pred_region
        %s4438 = ssub.s32 %s16, 2
      $region285: #{tpu_custom_call.1} parent=5 // pred_fallthru
        _
    $region6: #{tpu_custom_call.1} parent=1 // loop_footer
      %s20 = sadd.s32 1, %s16
    $region7: #{tpu_custom_call.1} parent=1 // loop_footer_branch
      %15 = sbr.rel target = $region3
    $region8: #{tpu_custom_call.1} parent=1 // loop_exit
      _
    %4439 = vsyncpa [#allocation12], 1
    %s4440 = scalar_lea.sflag [#allocation12], 1
    %4441 = vsyncpa %s4440, 1
  %4442 = vsyncmov [#allocation9]
  %s4443 = vpop.sfrf %4442
  %p4444 = scmp.eq.s32.totalorder %s4443, 0
  %p4445 = pneg %p4444
  %4447 = shalt.err (%p4445)
  %s4448 = scalar_lea.sflag [#allocation9], 1
  %4449 = vsyncmov %s4448
  %s4450 = vpop.sfrf %4449
  %p4451 = scmp.eq.s32.totalorder %s4450, 0
  %p4452 = pneg %p4451
  %4454 = shalt.err (%p4452)
  %s4455 = scalar_lea.sflag [#allocation9], 2
  %4456 = vsyncmov %s4455
  %s4457 = vpop.sfrf %4456
  %p4458 = scmp.eq.s32.totalorder %s4457, 0
  %p4459 = pneg %p4458
  %4461 = shalt.err (%p4459)
  %s4462 = scalar_lea.sflag [#allocation9], 3
  %4463 = vsyncmov %s4462
  %s4464 = vpop.sfrf %4463
  %p4465 = scmp.eq.s32.totalorder %s4464, 0
  %p4466 = pneg %p4465
  %4468 = shalt.err (%p4466)
  %s4469 = scalar_lea.sflag [#allocation9], 4
  %4470 = vsyncmov %s4469
  %s4471 = vpop.sfrf %4470
  %p4472 = scmp.eq.s32.totalorder %s4471, 0
  %p4473 = pneg %p4472
  %4475 = shalt.err (%p4473)
  %s4476 = scalar_lea.sflag [#allocation9], 5
  %4477 = vsyncmov %s4476
  %s4478 = vpop.sfrf %4477
  %p4479 = scmp.eq.s32.totalorder %s4478, 0
  %p4480 = pneg %p4479
  %4482 = shalt.err (%p4480)

</llo_original>
